<compile_context>
chip_gen: v5e
topology: v5e:2x2
jax: 0.10.0
libtpu: 0.0.40
codegen_flags: <defaults>
</compile_context>

<pallas_src>
import math
import numpy as np
import jax
import jax.numpy as jnp
from jax import lax
from jax.experimental import pallas as pl
from jax.experimental.pallas import tpu as pltpu

# ---------------- config (hyper-parameters implied by the module) -------------
EMBEDDING_DEPTH = 96              # encoding_irreps_out = 32x1o (dim 96)
RADIAL_DEPTH = 32                 # encoder_radial_depth -> '32x0e'
ATOM_EMB = 8                      # atom_type_embedding_dims
NUM_RADIAL = 12                   # gaussian radial basis
RBF_PAD = 16                      # lane-pad basis; extra columns hit zero weight rows (exact)
MUL_1O = EMBEDDING_DEPTH // 3     # 32
MID_1O = 64                       # 64x1o block of irreps_mid (only block reaching the output)
TN = 256                          # node tile; per-tile inputs ~14 KiB so VMEM is a non-issue
CORE_SPLIT = 2                    # leading "parallel" axis -> both TCs on v7x; sequential elsewhere

SQRT3 = math.sqrt(3.0)            # e3nn 'component' normalization for l=1
TP_ALPHA = 1.0 / math.sqrt(RADIAL_DEPTH)   # FullyConnectedTensorProduct path weight
LIN_ALPHA = 1.0 / math.sqrt(MID_1O)        # o3.Linear 1/sqrt(fan_in)

_offs_np = np.zeros((1, RBF_PAD), np.float32)
_offs_np[0, :NUM_RADIAL] = np.linspace(0.0, 1.0, NUM_RADIAL)
GAUSS_COEFF = float(-0.5 / (_offs_np[0, 1] - _offs_np[0, 0]) ** 2)

# e3nn l=1 component order is (y, z, x).
SH1_COLS = (1, 2, 0)


def _gelu(x):
    # TODO(synk): torch F.gelu uses the exact erf form; tanh approximation used
    # for Mosaic-safe lowering (relative difference < 1e-3).
    c = math.sqrt(2.0 / math.pi)
    return 0.5 * x * (1.0 + jnp.tanh(c * (x + 0.044715 * x * x * x)))


# --------------------------------- kernel ------------------------------------
def _encoder_kernel(pos_ref, onehot_ref, nemb_ref, offs_ref, w_ref, b_ref, sum_ref):
    """Per node-tile: RBF -> folded MLP chain -> 1o tensor-product path ->
    per-graph scatter sums (onehot^T @ .), accumulated into a per-core
    revisited [3, G, 32] block (m-major)."""
    i = pl.program_id(1)

    @pl.when(i == 0)
    def _():
        sum_ref[...] = jnp.zeros_like(sum_ref)

    pos = pos_ref[...]                                   # [TN, 3]
    x = pos[:, 0:1]
    y = pos[:, 1:2]
    z = pos[:, 2:3]

    # --- gaussian radial basis (padded to 16 lanes; pad columns hit zero rows)
    dist = jnp.sqrt(x * x + y * y + z * z)               # [TN, 1]
    rbf = jnp.exp(GAUSS_COEFF * (dist - offs_ref[...]) ** 2)   # [TN, RBF_PAD]

    w = w_ref[...]                                       # [88, 32] packed slab
    b = b_ref[...]                                       # [3, 32] packed biases

    # rbf_emb + radial_message MLPs with all activation-free linear pairs folded
    # host-side (w1h@w1o@w2i_top, w2h@w2o@fused_1o); only two gelus remain.
    h1 = jnp.dot(rbf, w[0:16, :], preferred_element_type=jnp.float32) + b[0:1, :]
    h2 = (jnp.dot(_gelu(h1), w[16:48, :], preferred_element_type=jnp.float32)
          + jnp.dot(nemb_ref[...], w[48:56, :], preferred_element_type=jnp.float32)
          + b[1:2, :])
    # t1 already includes tp1's 32x0e (x) 1o path, tl1 and tl2 (all linear on 1o).
    t1 = jnp.dot(_gelu(h2), w[56:88, :], preferred_element_type=jnp.float32) + b[2:3, :]  # [TN, 32]

    # --- scatter(sum) per graph: onehot^T @ (t1 * sh1_m), one m-slice at a time
    # (no lane-axis concatenate; each m writes its own [G, 32] slab).
    oh = onehot_ref[...]                                 # [TN, G]; padded rows are all-zero
    dn = (((0,), (0,)), ((), ()))                        # contract over the node axis
    for m, col in enumerate(SH1_COLS):
        sh_m = SQRT3 * pos[:, col:col + 1]               # e3nn l=1 sh, 'component' norm
        sum_ref[m, :, :] += lax.dot_general(oh, t1 * sh_m, dn,
                                            preferred_element_type=jnp.float32)


# ----------------------------- host-side folding ------------------------------
def _fold_params(p):
    # 1o chain: tp1(32x0e x 1o -> 64x1o) @ tl1(64x1o->64x1o) @ tl2(64x1o->32x1o)
    fused_1o = TP_ALPHA * (p['wtp1'] @ (LIN_ALPHA * p['l1o']) @ (LIN_ALPHA * p['w2lin']))  # [32, 32]

    w2i_top = p['w2i'][:RADIAL_DEPTH]                    # r_emb part of concat input
    w2i_bot = p['w2i'][RADIAL_DEPTH:]                    # node_emb part of concat input

    w1ho = p['w1h'] @ p['w1o']                           # rbf_emb: fold linear->linear
    b1ho = p['b1h'] @ p['w1o'] + p['b1o']
    w2a = w1ho @ w2i_top                                 # fold r_emb linear into radial_message input
    b2f = b1ho @ w2i_top + p['b2i']

    w2ho = p['w2h'] @ p['w2o']                           # radial_message: fold linear->linear
    b2ho = p['b2h'] @ p['w2o'] + p['b2o']
    w3 = w2ho @ fused_1o                                 # and fold the whole 1o linear chain
    b3f = b2ho @ fused_1o

    w1p = jnp.pad(p['w1i'], ((0, RBF_PAD - NUM_RADIAL), (0, 0)))   # zero rows for padded rbf lanes

    wslab = jnp.concatenate([w1p, w2a, w2i_bot, w3], axis=0)       # [16+32+8+32, 32] = [88, 32]
    bslab = jnp.concatenate([p['b1i'], b2f, b3f], axis=0)          # [3, 32]
    return wslab.astype(jnp.float32), bslab.astype(jnp.float32)


# --------------------------------- wrapper ------------------------------------
def equivariant_encoder_forward(pos, z, batch, num_graphs, params):
    N = pos.shape[0]
    G = int(num_graphs)
    chunk = TN * CORE_SPLIT
    Np = int(math.ceil(N / chunk) * chunk)
    pad = Np - N
    tiles_per_core = Np // chunk

    pos_p = jnp.pad(pos.astype(jnp.float32), ((0, pad), (0, 0)))
    batch_p = jnp.pad(batch.astype(jnp.int32), ((0, pad),), constant_values=-1)
    onehot = jax.nn.one_hot(batch_p, G, dtype=jnp.float32)          # padded rows -> all-zero
    node_emb = params['emb_table'][z]                               # nn.Embedding lookup (glue gather)
    node_emb = jnp.pad(node_emb.astype(jnp.float32), ((0, pad), (0, 0)))
    offs = jnp.asarray(_offs_np, jnp.float32)                       # [1, RBF_PAD]
    wslab, bslab = _fold_params(params)

    tile = lambda c, i: (c * tiles_per_core + i, 0)
    full = lambda c, i: (0, 0)

    in_specs = [pl.BlockSpec((TN, 3), tile),
                pl.BlockSpec((TN, G), tile),
                pl.BlockSpec((TN, ATOM_EMB), tile),
                pl.BlockSpec((1, RBF_PAD), full),
                pl.BlockSpec(wslab.shape, full),
                pl.BlockSpec(bslab.shape, full)]

    out_shape = jax.ShapeDtypeStruct((CORE_SPLIT * 3, G, MUL_1O), jnp.float32)
    out_specs = pl.BlockSpec((3, G, MUL_1O), lambda c, i: (c, 0, 0))

    partial = pl.pallas_call(
        _encoder_kernel,
        out_shape=out_shape,
        grid_spec=pltpu.PrefetchScalarGridSpec(
            num_scalar_prefetch=0,
            grid=(CORE_SPLIT, tiles_per_core),
            in_specs=in_specs,
            out_specs=out_specs),
        compiler_params=pltpu.CompilerParams(
            dimension_semantics=("parallel", "arbitrary")),
    )(pos_p, onehot, node_emb, offs, wslab, bslab)

    # combine per-core partials, apply mean+sum pooling scale, convert the
    # m-major [3, G, mul] accumulator to e3nn's 32x1o layout (flat = mul*3 + m).
    summed = partial.reshape(CORE_SPLIT, 3, G, MUL_1O).sum(axis=0)  # [3, G, 32]
    cnt = jnp.maximum(jnp.sum(onehot, axis=0), 1.0)                 # [G] nodes per graph
    scale = 1.0 + 1.0 / cnt                                         # mean + sum == sum * (1 + 1/count)
    enc_m = summed * scale[None, :, None]
    enc = jnp.transpose(enc_m, (1, 2, 0)).reshape(G, EMBEDDING_DEPTH)
    return enc


# ------------------------------ parameter init --------------------------------
def init_params(key):
    # TODO(synk): the MLP / GaussianEmbedding definitions are not in the provided
    # source; MLP implemented as Linear->gelu->Linear->Linear (norm=None, dropout=0).
    ks = list(jax.random.split(key, 20))

    def dense(k, fan_in, fan_out):
        return jax.random.normal(k, (fan_in, fan_out), jnp.float32) / np.sqrt(fan_in)

    def bias(k, n):
        return 0.1 * jax.random.normal(k, (1, n), jnp.float32)

    p = {}
    p['emb_table'] = jax.random.normal(ks[0], (100, ATOM_EMB), jnp.float32)
    # rbf_emb MLP (layers=1, 12 -> 32 -> 32 -> 32)
    p['w1i'] = dense(ks[1], NUM_RADIAL, RADIAL_DEPTH);              p['b1i'] = bias(ks[2], RADIAL_DEPTH)
    p['w1h'] = dense(ks[3], RADIAL_DEPTH, RADIAL_DEPTH);            p['b1h'] = bias(ks[4], RADIAL_DEPTH)
    p['w1o'] = dense(ks[5], RADIAL_DEPTH, RADIAL_DEPTH);            p['b1o'] = bias(ks[6], RADIAL_DEPTH)
    # radial_message MLP (layers=1, 40 -> 32 -> 32 -> 32)
    p['w2i'] = dense(ks[7], RADIAL_DEPTH + ATOM_EMB, RADIAL_DEPTH); p['b2i'] = bias(ks[8], RADIAL_DEPTH)
    p['w2h'] = dense(ks[9], RADIAL_DEPTH, RADIAL_DEPTH);            p['b2h'] = bias(ks[10], RADIAL_DEPTH)
    p['w2o'] = dense(ks[11], RADIAL_DEPTH, RADIAL_DEPTH);           p['b2o'] = bias(ks[12], RADIAL_DEPTH)
    # e3nn tensor-product / linear weights (std normal; path norms applied in folding)
    p['wtp1'] = jax.random.normal(ks[13], (RADIAL_DEPTH, MID_1O), jnp.float32)   # tp1 1o path
    p['l1o'] = jax.random.normal(ks[14], (MID_1O, MID_1O), jnp.float32)          # tl1 1o->1o
    p['w2lin'] = jax.random.normal(ks[15], (MID_1O, MUL_1O), jnp.float32)        # tl2 1o->32x1o
    return p


# ----------------------------------- main --------------------------------------
if __name__ == "__main__":
    key = jax.random.PRNGKey(0)
    kp, kpos, kz = jax.random.split(key, 3)
    N, G = 32, 2
    pos = jax.random.normal(kpos, (N, 3), jnp.float32)                       # data.pos
    xfeat = jax.random.randint(kz, (N, 1), 0, 100).astype(jnp.float32)       # data.x
    z = xfeat[:, 0].astype(jnp.int32)                                        # data.x[:, 0].long()
    batch = jnp.repeat(jnp.arange(G, dtype=jnp.int32), N // G)               # data.batch

    params = init_params(kp)
    enc = equivariant_encoder_forward(pos, z, batch, G, params)
    enc = jax.block_until_ready(enc)
    assert enc.shape == (G, EMBEDDING_DEPTH)
    assert bool(jnp.all(jnp.isfinite(enc)))
    print("KERNEL_OK")
</pallas_src>

<mosaic_0001>
module attributes {stable_mosaic.version = 11 : i64} {
  func.func @_encoder_kernel(%arg0: i32, %arg1: i32, %arg2: memref<256x3xf32, #tpu.memory_space<vmem>>, %arg3: memref<256x2xf32, #tpu.memory_space<vmem>>, %arg4: memref<256x8xf32, #tpu.memory_space<vmem>>, %arg5: memref<1x16xf32, #tpu.memory_space<vmem>>, %arg6: memref<88x32xf32, #tpu.memory_space<vmem>>, %arg7: memref<3x32xf32, #tpu.memory_space<vmem>>, %arg8: memref<3x2x32xf32, #tpu.memory_space<vmem>>) attributes {dimension_semantics = [#tpu.dimension_semantics<parallel>, #tpu.dimension_semantics<arbitrary>], iteration_bounds = array<i64: 2, 1>, scalar_prefetch = 0 : i64, scratch_operands = 0 : i64, tpu.core_type = #tpu.core_type<tc>, window_params = [{transform_indices = @transform_0, window_bounds = array<i64: 256, 3>}, {transform_indices = @transform_1, window_bounds = array<i64: 256, 2>}, {transform_indices = @transform_2, window_bounds = array<i64: 256, 8>}, {pipeline_mode = #tpu.pipeline_mode<synchronous>, transform_indices = @transform_3, window_bounds = array<i64: 1, 16>}, {pipeline_mode = #tpu.pipeline_mode<synchronous>, transform_indices = @transform_4, window_bounds = array<i64: 88, 32>}, {pipeline_mode = #tpu.pipeline_mode<synchronous>, transform_indices = @transform_5, window_bounds = array<i64: 3, 32>}, {transform_indices = @transform_6, window_bounds = array<i64: 3, 2, 32>}]} {
    %c0_i32 = arith.constant 0 : i32
    %0 = arith.cmpi eq, %arg1, %c0_i32 : i32
    %1 = arith.extui %0 : i1 to i32
    %c0_i32_0 = arith.constant 0 : i32
    %2 = arith.cmpi ne, %1, %c0_i32_0 : i32
    scf.if %2 {
      %cst_46 = arith.constant 0.000000e+00 : f32
      %105 = vector.broadcast %cst_46 : f32 to vector<3x2x32xf32>
      %c0_47 = arith.constant 0 : index
      %c0_48 = arith.constant 0 : index
      %c0_49 = arith.constant 0 : index
      %106 = vector.load %arg8[%c0_47, %c0_48, %c0_49] : memref<3x2x32xf32, #tpu.memory_space<vmem>>, vector<3x2x32xf32>
      tpu.vector_store %arg8[%c0_47, %c0_48, %c0_49], %105 {strides = array<i32>} : memref<3x2x32xf32, #tpu.memory_space<vmem>>, vector<3x2x32xf32>,
    } else {
    }
    %c0 = arith.constant 0 : index
    %c0_1 = arith.constant 0 : index
    %3 = vector.load %arg2[%c0, %c0_1] : memref<256x3xf32, #tpu.memory_space<vmem>>, vector<256x3xf32>
    %4 = vector.extract_strided_slice %3 {offsets = [0, 0], sizes = [256, 1], strides = [1, 1]} : vector<256x3xf32> to vector<256x1xf32>
    %5 = vector.extract_strided_slice %3 {offsets = [0, 1], sizes = [256, 1], strides = [1, 1]} : vector<256x3xf32> to vector<256x1xf32>
    %6 = vector.extract_strided_slice %3 {offsets = [0, 2], sizes = [256, 1], strides = [1, 1]} : vector<256x3xf32> to vector<256x1xf32>
    %7 = arith.mulf %4, %4 : vector<256x1xf32>
    %8 = arith.mulf %5, %5 : vector<256x1xf32>
    %9 = arith.addf %7, %8 : vector<256x1xf32>
    %10 = arith.mulf %6, %6 : vector<256x1xf32>
    %11 = arith.addf %9, %10 : vector<256x1xf32>
    %12 = math.sqrt %11 : vector<256x1xf32>
    %c0_2 = arith.constant 0 : index
    %c0_3 = arith.constant 0 : index
    %13 = vector.load %arg5[%c0_2, %c0_3] : memref<1x16xf32, #tpu.memory_space<vmem>>, vector<1x16xf32>
    %14 = vector.broadcast %12 : vector<256x1xf32> to vector<256x16xf32>
    %15 = vector.broadcast %13 : vector<1x16xf32> to vector<256x16xf32>
    %16 = arith.subf %14, %15 : vector<256x16xf32>
    %17 = arith.mulf %16, %16 : vector<256x16xf32>
    %cst = arith.constant -60.4999962 : f32
    %18 = vector.broadcast %cst : f32 to vector<256x16xf32>
    %19 = arith.mulf %18, %17 : vector<256x16xf32>
    %20 = math.exp %19 : vector<256x16xf32>
    %c0_4 = arith.constant 0 : index
    %c0_5 = arith.constant 0 : index
    %21 = vector.load %arg6[%c0_4, %c0_5] : memref<88x32xf32, #tpu.memory_space<vmem>>, vector<88x32xf32>
    %c0_6 = arith.constant 0 : index
    %c0_7 = arith.constant 0 : index
    %22 = vector.load %arg7[%c0_6, %c0_7] : memref<3x32xf32, #tpu.memory_space<vmem>>, vector<3x32xf32>
    %23 = vector.extract_strided_slice %21 {offsets = [0, 0], sizes = [16, 32], strides = [1, 1]} : vector<88x32xf32> to vector<16x32xf32>
    %cst_8 = arith.constant dense<0.000000e+00> : vector<256x32xf32>
    %24 = tpu.matmul %20, %23, %cst_8 {dimension_numbers = #tpu.dot_dimension_numbers<[1], [0], [0], [1], [0, 0, 1, 1], [], []>} : vector<256x16xf32>, vector<16x32xf32>, vector<256x32xf32> -> vector<256x32xf32>
    %25 = vector.extract_strided_slice %22 {offsets = [0, 0], sizes = [1, 32], strides = [1, 1]} : vector<3x32xf32> to vector<1x32xf32>
    %26 = vector.broadcast %25 : vector<1x32xf32> to vector<256x32xf32>
    %27 = arith.addf %24, %26 : vector<256x32xf32>
    %cst_9 = arith.constant 5.000000e-01 : f32
    %28 = vector.broadcast %cst_9 : f32 to vector<256x32xf32>
    %29 = arith.mulf %28, %27 : vector<256x32xf32>
    %cst_10 = arith.constant 4.471500e-02 : f32
    %30 = vector.broadcast %cst_10 : f32 to vector<256x32xf32>
    %31 = arith.mulf %30, %27 : vector<256x32xf32>
    %32 = arith.mulf %31, %27 : vector<256x32xf32>
    %33 = arith.mulf %32, %27 : vector<256x32xf32>
    %34 = arith.addf %27, %33 : vector<256x32xf32>
    %cst_11 = arith.constant 0.797884583 : f32
    %35 = vector.broadcast %cst_11 : f32 to vector<256x32xf32>
    %36 = arith.mulf %35, %34 : vector<256x32xf32>
    %37 = math.tanh %36 : vector<256x32xf32>
    %cst_12 = arith.constant 1.000000e+00 : f32
    %38 = vector.broadcast %cst_12 : f32 to vector<256x32xf32>
    %39 = arith.addf %38, %37 : vector<256x32xf32>
    %40 = arith.mulf %29, %39 : vector<256x32xf32>
    %41 = vector.extract_strided_slice %21 {offsets = [16, 0], sizes = [32, 32], strides = [1, 1]} : vector<88x32xf32> to vector<32x32xf32>
    %cst_13 = arith.constant dense<0.000000e+00> : vector<256x32xf32>
    %42 = tpu.matmul %40, %41, %cst_13 {dimension_numbers = #tpu.dot_dimension_numbers<[1], [0], [0], [1], [0, 0, 1, 1], [], []>} : vector<256x32xf32>, vector<32x32xf32>, vector<256x32xf32> -> vector<256x32xf32>
    %c0_14 = arith.constant 0 : index
    %c0_15 = arith.constant 0 : index
    %43 = vector.load %arg4[%c0_14, %c0_15] : memref<256x8xf32, #tpu.memory_space<vmem>>, vector<256x8xf32>
    %44 = vector.extract_strided_slice %21 {offsets = [48, 0], sizes = [8, 32], strides = [1, 1]} : vector<88x32xf32> to vector<8x32xf32>
    %cst_16 = arith.constant dense<0.000000e+00> : vector<256x32xf32>
    %45 = tpu.matmul %43, %44, %cst_16 {dimension_numbers = #tpu.dot_dimension_numbers<[1], [0], [0], [1], [0, 0, 1, 1], [], []>} : vector<256x8xf32>, vector<8x32xf32>, vector<256x32xf32> -> vector<256x32xf32>
    %46 = arith.addf %42, %45 : vector<256x32xf32>
    %47 = vector.extract_strided_slice %22 {offsets = [1, 0], sizes = [1, 32], strides = [1, 1]} : vector<3x32xf32> to vector<1x32xf32>
    %48 = vector.broadcast %47 : vector<1x32xf32> to vector<256x32xf32>
    %49 = arith.addf %46, %48 : vector<256x32xf32>
    %cst_17 = arith.constant 5.000000e-01 : f32
    %50 = vector.broadcast %cst_17 : f32 to vector<256x32xf32>
    %51 = arith.mulf %50, %49 : vector<256x32xf32>
    %cst_18 = arith.constant 4.471500e-02 : f32
    %52 = vector.broadcast %cst_18 : f32 to vector<256x32xf32>
    %53 = arith.mulf %52, %49 : vector<256x32xf32>
    %54 = arith.mulf %53, %49 : vector<256x32xf32>
    %55 = arith.mulf %54, %49 : vector<256x32xf32>
    %56 = arith.addf %49, %55 : vector<256x32xf32>
    %cst_19 = arith.constant 0.797884583 : f32
    %57 = vector.broadcast %cst_19 : f32 to vector<256x32xf32>
    %58 = arith.mulf %57, %56 : vector<256x32xf32>
    %59 = math.tanh %58 : vector<256x32xf32>
    %cst_20 = arith.constant 1.000000e+00 : f32
    %60 = vector.broadcast %cst_20 : f32 to vector<256x32xf32>
    %61 = arith.addf %60, %59 : vector<256x32xf32>
    %62 = arith.mulf %51, %61 : vector<256x32xf32>
    %63 = vector.extract_strided_slice %21 {offsets = [56, 0], sizes = [32, 32], strides = [1, 1]} : vector<88x32xf32> to vector<32x32xf32>
    %cst_21 = arith.constant dense<0.000000e+00> : vector<256x32xf32>
    %64 = tpu.matmul %62, %63, %cst_21 {dimension_numbers = #tpu.dot_dimension_numbers<[1], [0], [0], [1], [0, 0, 1, 1], [], []>} : vector<256x32xf32>, vector<32x32xf32>, vector<256x32xf32> -> vector<256x32xf32>
    %65 = vector.extract_strided_slice %22 {offsets = [2, 0], sizes = [1, 32], strides = [1, 1]} : vector<3x32xf32> to vector<1x32xf32>
    %66 = vector.broadcast %65 : vector<1x32xf32> to vector<256x32xf32>
    %67 = arith.addf %64, %66 : vector<256x32xf32>
    %c0_22 = arith.constant 0 : index
    %c0_23 = arith.constant 0 : index
    %68 = vector.load %arg3[%c0_22, %c0_23] : memref<256x2xf32, #tpu.memory_space<vmem>>, vector<256x2xf32>
    %69 = vector.extract_strided_slice %3 {offsets = [0, 1], sizes = [256, 1], strides = [1, 1]} : vector<256x3xf32> to vector<256x1xf32>
    %cst_24 = arith.constant 1.73205078 : f32
    %70 = vector.broadcast %cst_24 : f32 to vector<256x1xf32>
    %71 = arith.mulf %70, %69 : vector<256x1xf32>
    %c0_25 = arith.constant 0 : index
    %c0_26 = arith.constant 0 : index
    %c0_27 = arith.constant 0 : index
    %72 = vector.load %arg8[%c0_25, %c0_26, %c0_27] : memref<3x2x32xf32, #tpu.memory_space<vmem>>, vector<1x2x32xf32>
    %73 = vector.shape_cast %72 : vector<1x2x32xf32> to vector<2x32xf32>
    %74 = vector.broadcast %71 : vector<256x1xf32> to vector<256x32xf32>
    %75 = arith.mulf %67, %74 : vector<256x32xf32>
    %cst_28 = arith.constant dense<0.000000e+00> : vector<2x32xf32>
    %76 = tpu.matmul %68, %75, %cst_28 {dimension_numbers = #tpu.dot_dimension_numbers<[0], [0], [1], [1], [0, 1, 1, 1], [], []>} : vector<256x2xf32>, vector<256x32xf32>, vector<2x32xf32> -> vector<2x32xf32>
    %77 = arith.addf %73, %76 : vector<2x32xf32>
    %c0_29 = arith.constant 0 : index
    %c0_30 = arith.constant 0 : index
    %c0_31 = arith.constant 0 : index
    %78 = vector.load %arg8[%c0_29, %c0_30, %c0_31] : memref<3x2x32xf32, #tpu.memory_space<vmem>>, vector<1x2x32xf32>
    %79 = vector.shape_cast %78 : vector<1x2x32xf32> to vector<2x32xf32>
    %80 = vector.shape_cast %77 : vector<2x32xf32> to vector<1x2x32xf32>
    tpu.vector_store %arg8[%c0_29, %c0_30, %c0_31], %80 {strides = array<i32>} : memref<3x2x32xf32, #tpu.memory_space<vmem>>, vector<1x2x32xf32>,
    %81 = vector.extract_strided_slice %3 {offsets = [0, 2], sizes = [256, 1], strides = [1, 1]} : vector<256x3xf32> to vector<256x1xf32>
    %cst_32 = arith.constant 1.73205078 : f32
    %82 = vector.broadcast %cst_32 : f32 to vector<256x1xf32>
    %83 = arith.mulf %82, %81 : vector<256x1xf32>
    %c1 = arith.constant 1 : index
    %c0_33 = arith.constant 0 : index
    %c0_34 = arith.constant 0 : index
    %84 = vector.load %arg8[%c1, %c0_33, %c0_34] : memref<3x2x32xf32, #tpu.memory_space<vmem>>, vector<1x2x32xf32>
    %85 = vector.shape_cast %84 : vector<1x2x32xf32> to vector<2x32xf32>
    %86 = vector.broadcast %83 : vector<256x1xf32> to vector<256x32xf32>
    %87 = arith.mulf %67, %86 : vector<256x32xf32>
    %cst_35 = arith.constant dense<0.000000e+00> : vector<2x32xf32>
    %88 = tpu.matmul %68, %87, %cst_35 {dimension_numbers = #tpu.dot_dimension_numbers<[0], [0], [1], [1], [0, 1, 1, 1], [], []>} : vector<256x2xf32>, vector<256x32xf32>, vector<2x32xf32> -> vector<2x32xf32>
    %89 = arith.addf %85, %88 : vector<2x32xf32>
    %c1_36 = arith.constant 1 : index
    %c0_37 = arith.constant 0 : index
    %c0_38 = arith.constant 0 : index
    %90 = vector.load %arg8[%c1_36, %c0_37, %c0_38] : memref<3x2x32xf32, #tpu.memory_space<vmem>>, vector<1x2x32xf32>
    %91 = vector.shape_cast %90 : vector<1x2x32xf32> to vector<2x32xf32>
    %92 = vector.shape_cast %89 : vector<2x32xf32> to vector<1x2x32xf32>
    tpu.vector_store %arg8[%c1_36, %c0_37, %c0_38], %92 {strides = array<i32>} : memref<3x2x32xf32, #tpu.memory_space<vmem>>, vector<1x2x32xf32>,
    %93 = vector.extract_strided_slice %3 {offsets = [0, 0], sizes = [256, 1], strides = [1, 1]} : vector<256x3xf32> to vector<256x1xf32>
    %cst_39 = arith.constant 1.73205078 : f32
    %94 = vector.broadcast %cst_39 : f32 to vector<256x1xf32>
    %95 = arith.mulf %94, %93 : vector<256x1xf32>
    %c2 = arith.constant 2 : index
    %c0_40 = arith.constant 0 : index
    %c0_41 = arith.constant 0 : index
    %96 = vector.load %arg8[%c2, %c0_40, %c0_41] : memref<3x2x32xf32, #tpu.memory_space<vmem>>, vector<1x2x32xf32>
    %97 = vector.shape_cast %96 : vector<1x2x32xf32> to vector<2x32xf32>
    %98 = vector.broadcast %95 : vector<256x1xf32> to vector<256x32xf32>
    %99 = arith.mulf %67, %98 : vector<256x32xf32>
    %cst_42 = arith.constant dense<0.000000e+00> : vector<2x32xf32>
    %100 = tpu.matmul %68, %99, %cst_42 {dimension_numbers = #tpu.dot_dimension_numbers<[0], [0], [1], [1], [0, 1, 1, 1], [], []>} : vector<256x2xf32>, vector<256x32xf32>, vector<2x32xf32> -> vector<2x32xf32>
    %101 = arith.addf %97, %100 : vector<2x32xf32>
    %c2_43 = arith.constant 2 : index
    %c0_44 = arith.constant 0 : index
    %c0_45 = arith.constant 0 : index
    %102 = vector.load %arg8[%c2_43, %c0_44, %c0_45] : memref<3x2x32xf32, #tpu.memory_space<vmem>>, vector<1x2x32xf32>
    %103 = vector.shape_cast %102 : vector<1x2x32xf32> to vector<2x32xf32>
    %104 = vector.shape_cast %101 : vector<2x32xf32> to vector<1x2x32xf32>
    tpu.vector_store %arg8[%c2_43, %c0_44, %c0_45], %104 {strides = array<i32>} : memref<3x2x32xf32, #tpu.memory_space<vmem>>, vector<1x2x32xf32>,
    return
  }
  func.func @transform_0(%arg0: i32, %arg1: i32) -> (i32, i32) {
    %c1_i32 = arith.constant 1 : i32
    %0 = arith.muli %arg0, %c1_i32 : i32
    %1 = arith.addi %0, %arg1 : i32
    %c0_i32 = arith.constant 0 : i32
    %c0_i32_0 = arith.constant 0 : i32
    return %1, %c0_i32 : i32, i32
  }
  func.func @transform_1(%arg0: i32, %arg1: i32) -> (i32, i32) {
    %c1_i32 = arith.constant 1 : i32
    %0 = arith.muli %arg0, %c1_i32 : i32
    %1 = arith.addi %0, %arg1 : i32
    %c0_i32 = arith.constant 0 : i32
    %c0_i32_0 = arith.constant 0 : i32
    return %1, %c0_i32 : i32, i32
  }
  func.func @transform_2(%arg0: i32, %arg1: i32) -> (i32, i32) {
    %c1_i32 = arith.constant 1 : i32
    %0 = arith.muli %arg0, %c1_i32 : i32
    %1 = arith.addi %0, %arg1 : i32
    %c0_i32 = arith.constant 0 : i32
    %c0_i32_0 = arith.constant 0 : i32
    return %1, %c0_i32 : i32, i32
  }
  func.func @transform_3(%arg0: i32, %arg1: i32) -> (i32, i32) {
    %c0_i32 = arith.constant 0 : i32
    %c0_i32_0 = arith.constant 0 : i32
    %c0_i32_1 = arith.constant 0 : i32
    return %c0_i32, %c0_i32_0 : i32, i32
  }
  func.func @transform_4(%arg0: i32, %arg1: i32) -> (i32, i32) {
    %c0_i32 = arith.constant 0 : i32
    %c0_i32_0 = arith.constant 0 : i32
    %c0_i32_1 = arith.constant 0 : i32
    return %c0_i32, %c0_i32_0 : i32, i32
  }
  func.func @transform_5(%arg0: i32, %arg1: i32) -> (i32, i32) {
    %c0_i32 = arith.constant 0 : i32
    %c0_i32_0 = arith.constant 0 : i32
    %c0_i32_1 = arith.constant 0 : i32
    return %c0_i32, %c0_i32_0 : i32, i32
  }
  func.func @transform_6(%arg0: i32, %arg1: i32) -> (i32, i32, i32) {
    %c0_i32 = arith.constant 0 : i32
    %c0_i32_0 = arith.constant 0 : i32
    %c0_i32_1 = arith.constant 0 : i32
    return %arg0, %c0_i32, %c0_i32_0 : i32, i32, i32
  }
}

</mosaic_0001>

<llo_original>
// kernel: tpu_custom_call.1
$region0: #{tpu_custom_call.1}
  #allocation0 [shape = 'u32[]', space=smem, size = 0x4, offset = 0x4, fixed_abs, tag = 'smem constant byte address 0x4 - core index']
  #allocation1 [shape = 'u32[72,128]{1,0:T(1,128)}', space=vmem, size = 0x9000, scoped, tag = 'internal scratch']
  %s0 = inlined_call_operand.vmem [shape: f32[512,3], index: 0, kind: input, shape index: {}]
  %s1 = inlined_call_operand.vmem [shape: f32[512,2], index: 1, kind: input, shape index: {}]
  %s2 = inlined_call_operand.vmem [shape: f32[512,8], index: 2, kind: input, shape index: {}]
  %s3 = inlined_call_operand.vmem [shape: f32[1,16], index: 3, kind: input, shape index: {}]
  %s4 = inlined_call_operand.vmem [shape: f32[88,32], index: 4, kind: input, shape index: {}]
  %s5 = inlined_call_operand.vmem [shape: f32[3,32], index: 5, kind: input, shape index: {}]
  %s6 = inlined_call_operand.hbm [shape: f32[6,2,32], index: 6, kind: output, shape index: {}]
  %s7 = sld [smem:[#allocation0]]
  $region61: #{tpu_custom_call.1} parent=0
    _
  %s9 = ssub.s32 1, %s7
  %s10 = scalar_select 0, %s9, %s7
  $region1: #{tpu_custom_call.1} parent=0
    #allocation2 [shape = 'u8[6144]{0}', space=vmem, size = 0x1800, scoped, tag = 'output window, operand 0']
    #allocation3 [shape = 's32[2]{0}', space=sflag, size = 0x8, scoped, tag = 'scoped memory for tpu_custom_call.1']
    %11 = vsyncpa [#allocation3], 0
    %s12 = scalar_lea.sflag [#allocation3], 1
    %13 = vsyncpa %s12, 0
    loop: start=0, step=1, limit=4
    $region2: #{tpu_custom_call.1} parent=1 // loop_pre_header
      _
    $region3: #{tpu_custom_call.1} parent=1 // loop_header
      %s15 = sphi 0, %s19
      %p16 = scmp.ge.s32.totalorder %s15, 4
      %s22 = sphi 0, %s34
      %s23 = sphi 0, %s30
      %s24 = sphi 0, %s22
      %s25 = sphi 0, %s23
      %s26 = sphi 0, %s24
      %s27 = sphi 0, %s25
      %s39 = sphi 0, %s41
      %s42 = sphi 0, %s39
      %s43 = sphi 0, %s42
      %s59 = sphi 0, %s43
      %s67 = sphi 0, %s69
      %s70 = sphi 0, %s67
      %s71 = sphi 0, %s70
      %s87 = sphi 0, %s71
      %s95 = sphi 0, %s97
      %s98 = sphi 0, %s95
      %s99 = sphi 0, %s98
      %s115 = sphi 0, %s99
      %s119 = sphi 0, %s119
      %s121 = sphi 0, %s119
      %s122 = sphi 0, %s121
      %s136 = sphi 0, %s122
      %s140 = sphi 0, %s140
      %s142 = sphi 0, %s140
      %s143 = sphi 0, %s142
      %s157 = sphi 0, %s143
      %s161 = sphi 0, %s161
      %s163 = sphi 0, %s161
      %s164 = sphi 0, %s163
      %s178 = sphi 0, %s164
      %s184 = sphi 0, %s186
      %s187 = sphi 0, %s184
      %s188 = sphi 0, %s187
      %s204 = sphi 0, %s188
    $region4: #{tpu_custom_call.1} parent=1 // loop_header_branch
      %18 = sbr.rel (%p16) target = $region8
    $region5: #{tpu_custom_call.1} parent=1 // loop_body
      %s20 = ssub.s32 %s15, 1
      %s21 = ssub.s32 %s15, 2
      %s28 = sadd.s32 1, %s23
      %p29 = scmp.ge.s32.totalorder %s28, 1
      %s30 = scalar_select %p29, 0, %s28
      %s31 = sadd.s32 1, %s22
      %s32 = scalar_select %p29, %s31, %s22
      %p33 = scmp.ge.s32.totalorder %s32, 2
      %s34 = scalar_select %p33, 0, %s32
      %s35 = sadd.s32 %s22, %s23
      %s36 = sadd.s32 %s34, %s30
      %s37 = ssub.s32 %s35, %s36
      %p38 = scmp.eq.s32.totalorder %s37, 0
      %s40 = sadd.s32 %s39, 1
      %s41 = scalar_select %p38, %s39, %s40
      %p44 = pneg %p38
      %p45 = scmp.eq.s32.totalorder %s15, 1
      %p46 = por %p44, %p45
      %p47 = scmp.ne.s32.totalorder %s39, %s42
      %p48 = scmp.eq.s32.totalorder %s15, 0
      %p49 = por %p47, %p48
      %p50 = scmp.ne.s32.totalorder %s39, %s42
      %p51 = scmp.eq.s32.totalorder %s20, 1
      %p52 = por %p50, %p51
      %p53 = scmp.ne.s32.totalorder %s42, %s43
      %p54 = scmp.eq.s32.totalorder %s20, 0
      %p55 = por %p53, %p54
      %p56 = scmp.ne.s32.totalorder %s42, %s43
      %p57 = scmp.eq.s32.totalorder %s21, 1
      %p58 = por %p56, %p57
      %p60 = scmp.ne.s32.totalorder %s43, %s59
      %p61 = scmp.eq.s32.totalorder %s21, 0
      %p62 = por %p60, %p61
      %s63 = sadd.s32 %s22, %s23
      %s64 = sadd.s32 %s34, %s30
      %s65 = ssub.s32 %s63, %s64
      %p66 = scmp.eq.s32.totalorder %s65, 0
      %s68 = sadd.s32 %s67, 1
      %s69 = scalar_select %p66, %s67, %s68
      %p72 = pneg %p66
      %p73 = scmp.eq.s32.totalorder %s15, 1
      %p74 = por %p72, %p73
      %p75 = scmp.ne.s32.totalorder %s67, %s70
      %p76 = scmp.eq.s32.totalorder %s15, 0
      %p77 = por %p75, %p76
      %p78 = scmp.ne.s32.totalorder %s67, %s70
      %p79 = scmp.eq.s32.totalorder %s20, 1
      %p80 = por %p78, %p79
      %p81 = scmp.ne.s32.totalorder %s70, %s71
      %p82 = scmp.eq.s32.totalorder %s20, 0
      %p83 = por %p81, %p82
      %p84 = scmp.ne.s32.totalorder %s70, %s71
      %p85 = scmp.eq.s32.totalorder %s21, 1
      %p86 = por %p84, %p85
      %p88 = scmp.ne.s32.totalorder %s71, %s87
      %p89 = scmp.eq.s32.totalorder %s21, 0
      %p90 = por %p88, %p89
      %s91 = sadd.s32 %s22, %s23
      %s92 = sadd.s32 %s34, %s30
      %s93 = ssub.s32 %s91, %s92
      %p94 = scmp.eq.s32.totalorder %s93, 0
      %s96 = sadd.s32 %s95, 1
      %s97 = scalar_select %p94, %s95, %s96
      %p100 = pneg %p94
      %p101 = scmp.eq.s32.totalorder %s15, 1
      %p102 = por %p100, %p101
      %p103 = scmp.ne.s32.totalorder %s95, %s98
      %p104 = scmp.eq.s32.totalorder %s15, 0
      %p105 = por %p103, %p104
      %p106 = scmp.ne.s32.totalorder %s95, %s98
      %p107 = scmp.eq.s32.totalorder %s20, 1
      %p108 = por %p106, %p107
      %p109 = scmp.ne.s32.totalorder %s98, %s99
      %p110 = scmp.eq.s32.totalorder %s20, 0
      %p111 = por %p109, %p110
      %p112 = scmp.ne.s32.totalorder %s98, %s99
      %p113 = scmp.eq.s32.totalorder %s21, 1
      %p114 = por %p112, %p113
      %p116 = scmp.ne.s32.totalorder %s99, %s115
      %p117 = scmp.eq.s32.totalorder %s21, 0
      %p118 = por %p116, %p117
      %s120 = sadd.s32 %s119, 1
      %p123 = scmp.eq.s32.totalorder %s15, 1
      %p124 = scmp.ne.s32.totalorder %s119, %s121
      %p125 = scmp.eq.s32.totalorder %s15, 0
      %p126 = por %p124, %p125
      %p127 = scmp.ne.s32.totalorder %s119, %s121
      %p128 = scmp.eq.s32.totalorder %s20, 1
      %p129 = por %p127, %p128
      %p130 = scmp.ne.s32.totalorder %s121, %s122
      %p131 = scmp.eq.s32.totalorder %s20, 0
      %p132 = por %p130, %p131
      %p133 = scmp.ne.s32.totalorder %s121, %s122
      %p134 = scmp.eq.s32.totalorder %s21, 1
      %p135 = por %p133, %p134
      %p137 = scmp.ne.s32.totalorder %s122, %s136
      %p138 = scmp.eq.s32.totalorder %s21, 0
      %p139 = por %p137, %p138
      %s141 = sadd.s32 %s140, 1
      %p144 = scmp.eq.s32.totalorder %s15, 1
      %p145 = scmp.ne.s32.totalorder %s140, %s142
      %p146 = scmp.eq.s32.totalorder %s15, 0
      %p147 = por %p145, %p146
      %p148 = scmp.ne.s32.totalorder %s140, %s142
      %p149 = scmp.eq.s32.totalorder %s20, 1
      %p150 = por %p148, %p149
      %p151 = scmp.ne.s32.totalorder %s142, %s143
      %p152 = scmp.eq.s32.totalorder %s20, 0
      %p153 = por %p151, %p152
      %p154 = scmp.ne.s32.totalorder %s142, %s143
      %p155 = scmp.eq.s32.totalorder %s21, 1
      %p156 = por %p154, %p155
      %p158 = scmp.ne.s32.totalorder %s143, %s157
      %p159 = scmp.eq.s32.totalorder %s21, 0
      %p160 = por %p158, %p159
      %s162 = sadd.s32 %s161, 1
      %p165 = scmp.eq.s32.totalorder %s15, 1
      %p166 = scmp.ne.s32.totalorder %s161, %s163
      %p167 = scmp.eq.s32.totalorder %s15, 0
      %p168 = por %p166, %p167
      %p169 = scmp.ne.s32.totalorder %s161, %s163
      %p170 = scmp.eq.s32.totalorder %s20, 1
      %p171 = por %p169, %p170
      %p172 = scmp.ne.s32.totalorder %s163, %s164
      %p173 = scmp.eq.s32.totalorder %s20, 0
      %p174 = por %p172, %p173
      %p175 = scmp.ne.s32.totalorder %s163, %s164
      %p176 = scmp.eq.s32.totalorder %s21, 1
      %p177 = por %p175, %p176
      %p179 = scmp.ne.s32.totalorder %s164, %s178
      %p180 = scmp.eq.s32.totalorder %s21, 0
      %p181 = por %p179, %p180
      %s182 = ssub.s32 %s22, %s34
      %p183 = scmp.eq.s32.totalorder %s182, 0
      %s185 = sadd.s32 %s184, 1
      %s186 = scalar_select %p183, %s184, %s185
      %p189 = pneg %p183
      %p190 = scmp.eq.s32.totalorder %s15, 1
      %p191 = por %p189, %p190
      %p192 = scmp.ne.s32.totalorder %s184, %s187
      %p193 = scmp.eq.s32.totalorder %s15, 0
      %p194 = por %p192, %p193
      %p195 = scmp.ne.s32.totalorder %s184, %s187
      %p196 = scmp.eq.s32.totalorder %s20, 1
      %p197 = por %p195, %p196
      %p198 = scmp.ne.s32.totalorder %s187, %s188
      %p199 = scmp.eq.s32.totalorder %s20, 0
      %p200 = por %p198, %p199
      %p201 = scmp.ne.s32.totalorder %s187, %s188
      %p202 = scmp.eq.s32.totalorder %s21, 1
      %p203 = por %p201, %p202
      %p205 = scmp.ne.s32.totalorder %s188, %s204
      %p206 = scmp.eq.s32.totalorder %s21, 0
      %p207 = por %p205, %p206
      %p208 = scmp.le.s32.totalorder 1, %s15
      %p209 = scmp.lt.s32.totalorder %s15, 3
      %p210 = pnand %p208, %p209
      %p211 = pneg %p210
      // Predicated region
      $region9: #{tpu_custom_call.1} parent=5 // pred_check
        _
      $region10: #{tpu_custom_call.1} parent=5 // pred_check_branch
        %213 = sbr.rel (%p210) target = $region12
      $region11: #{tpu_custom_call.1} parent=5 // pred_region
        %s214 = ssub.s32 %s15, 1
        // Predicated region
        $region13: #{tpu_custom_call.1} parent=11 // pred_check
          %p215 = pneg %p132
        $region14: #{tpu_custom_call.1} parent=11 // pred_check_branch
          %217 = sbr.rel (%p215) target = $region16
        $region15: #{tpu_custom_call.1} parent=11 // pred_region
          _
        $region16: #{tpu_custom_call.1} parent=11 // pred_fallthru
          _
        // Predicated region
        $region17: #{tpu_custom_call.1} parent=11 // pred_check
          %p218 = pneg %p153
        $region18: #{tpu_custom_call.1} parent=11 // pred_check_branch
          %220 = sbr.rel (%p218) target = $region20
        $region19: #{tpu_custom_call.1} parent=11 // pred_region
          _
        $region20: #{tpu_custom_call.1} parent=11 // pred_fallthru
          _
        // Predicated region
        $region21: #{tpu_custom_call.1} parent=11 // pred_check
          %p221 = pneg %p174
        $region22: #{tpu_custom_call.1} parent=11 // pred_check_branch
          %223 = sbr.rel (%p221) target = $region24
        $region23: #{tpu_custom_call.1} parent=11 // pred_region
          _
        $region24: #{tpu_custom_call.1} parent=11 // pred_fallthru
          _
      $region12: #{tpu_custom_call.1} parent=5 // pred_fallthru
        _
      %p224 = scmp.lt.s32.totalorder %s15, 2
      // Predicated region
      $region25: #{tpu_custom_call.1} parent=5 // pred_check
        %p225 = pneg %p224
      $region26: #{tpu_custom_call.1} parent=5 // pred_check_branch
        %227 = sbr.rel (%p225) target = $region28
      $region27: #{tpu_custom_call.1} parent=5 // pred_region
        // Predicated region
        $region29: #{tpu_custom_call.1} parent=27 // pred_check
          %p228 = pneg %p49
        $region30: #{tpu_custom_call.1} parent=27 // pred_check_branch
          %230 = sbr.rel (%p228) target = $region32
        $region31: #{tpu_custom_call.1} parent=27 // pred_region
          %s231 = sadd.s32 %s22, %s23
          %s232 = smul.u32 32, %s231
          %p233 = scmp.lt.s32.totalorder %s232, 63
          %s234 = scalar_select %p233, %s232, 63
          %s235 = smul.addr %s234, 8
          %s236 = scalar_lea.vmem %s0, %s235
          %s237 = sadd.s32 %s22, %s23
          %s238 = smul.u32 32, %s237
        $region32: #{tpu_custom_call.1} parent=27 // pred_fallthru
          _
        // Predicated region
        $region33: #{tpu_custom_call.1} parent=27 // pred_check
          %p239 = pneg %p77
        $region34: #{tpu_custom_call.1} parent=27 // pred_check_branch
          %241 = sbr.rel (%p239) target = $region36
        $region35: #{tpu_custom_call.1} parent=27 // pred_region
          %s242 = sadd.s32 %s22, %s23
          %s243 = smul.u32 32, %s242
          %p244 = scmp.lt.s32.totalorder %s243, 63
          %s245 = scalar_select %p244, %s243, 63
          %s246 = smul.addr %s245, 8
          %s247 = scalar_lea.vmem %s1, %s246
          %s248 = sadd.s32 %s22, %s23
          %s249 = smul.u32 32, %s248
        $region36: #{tpu_custom_call.1} parent=27 // pred_fallthru
          _
        // Predicated region
        $region37: #{tpu_custom_call.1} parent=27 // pred_check
          %p250 = pneg %p105
        $region38: #{tpu_custom_call.1} parent=27 // pred_check_branch
          %252 = sbr.rel (%p250) target = $region40
        $region39: #{tpu_custom_call.1} parent=27 // pred_region
          %s253 = sadd.s32 %s22, %s23
          %s254 = smul.u32 32, %s253
          %p255 = scmp.lt.s32.totalorder %s254, 63
          %s256 = scalar_select %p255, %s254, 63
          %s257 = smul.addr %s256, 8
          %s258 = scalar_lea.vmem %s2, %s257
          %s259 = sadd.s32 %s22, %s23
          %s260 = smul.u32 32, %s259
        $region40: #{tpu_custom_call.1} parent=27 // pred_fallthru
          _
      $region28: #{tpu_custom_call.1} parent=5 // pred_fallthru
        _
      %p261 = scmp.le.s32.totalorder 1, %s15
      %p262 = scmp.lt.s32.totalorder %s15, 3
      %p263 = pnand %p261, %p262
      %p264 = pneg %p263
      // Predicated region
      $region41: #{tpu_custom_call.1} parent=5 // pred_check
        _
      $region42: #{tpu_custom_call.1} parent=5 // pred_check_branch
        %266 = sbr.rel (%p263) target = $region44
      $region43: #{tpu_custom_call.1} parent=5 // pred_region
        %s267 = ssub.s32 %s15, 1
        %s268 = sadd.s32 %s24, %s25
        %s269 = smul.u32 32, %s268
        %p270 = scmp.lt.s32.totalorder %s269, 63
        %s271 = scalar_select %p270, %s269, 63
        %s272 = smul.addr %s271, 8
        %s273 = scalar_lea.vmem %s0, %s272
        %p274 = pneg %p55
        %p275 = pneg %p52
        %s276 = sadd.s32 %s24, %s25
        %s277 = smul.u32 32, %s276
        %p278 = scmp.lt.s32.totalorder %s277, 63
        %s279 = scalar_select %p278, %s277, 63
        %s280 = smul.addr %s279, 8
        %s281 = scalar_lea.vmem %s1, %s280
        %p282 = pneg %p83
        %p283 = pneg %p80
        %s284 = sadd.s32 %s24, %s25
        %s285 = smul.u32 32, %s284
        %p286 = scmp.lt.s32.totalorder %s285, 63
        %s287 = scalar_select %p286, %s285, 63
        %s288 = smul.addr %s287, 8
        %s289 = scalar_lea.vmem %s2, %s288
        %p290 = pneg %p111
        %p291 = pneg %p108
        %p292 = pneg %p132
        %p293 = pneg %p129
        %p294 = pneg %p153
        %p295 = pneg %p150
        %p296 = pneg %p174
        %p297 = pneg %p171
        %p298 = pneg %p200
        %p299 = pneg %p197
        %s300 = sand.u32 %s187, 1
        %s301 = scalar_lea.sflag [#allocation3], %s300
        %s302 = sand.u32 %s187, 1
        %s303 = smul.addr %s302, 6
        %s304 = scalar_lea.vmem [#allocation2], %s303
        %s305 = sadd.s32 %s24, %s25
        %s306 = smul.u32 32, %s305
        %p307 = scmp.lt.s32.totalorder %s306, 63
        %s308 = scalar_select %p307, %s306, 63
        %s309 = smul.addr %s308, 8
        %s310 = scalar_lea.vmem %s0, %s309
        %s311 = sadd.s32 %s24, %s25
        %s312 = smul.u32 32, %s311
        %s313 = sadd.s32 %s24, %s25
        %s314 = smul.u32 32, %s313
        %p315 = scmp.lt.s32.totalorder %s314, 63
        %s316 = scalar_select %p315, %s314, 63
        %s317 = smul.addr %s316, 8
        %s318 = scalar_lea.vmem %s1, %s317
        %s319 = sadd.s32 %s24, %s25
        %s320 = smul.u32 32, %s319
        %s321 = sadd.s32 %s24, %s25
        %s322 = smul.u32 32, %s321
        %p323 = scmp.lt.s32.totalorder %s322, 63
        %s324 = scalar_select %p323, %s322, 63
        %s325 = smul.addr %s324, 8
        %s326 = scalar_lea.vmem %s2, %s325
        %s327 = sadd.s32 %s24, %s25
        %s328 = smul.u32 32, %s327
        %s329 = smul.u32 3, %s24
        %p330 = scmp.eq.s32.totalorder %s25, 0
        // Predicated region
        $region45: #{tpu_custom_call.1} parent=43 // pred_check
          %p331 = pneg %p330
        $region46: #{tpu_custom_call.1} parent=43 // pred_check_branch
          %333 = sbr.rel (%p331) target = $region48
        $region47: #{tpu_custom_call.1} parent=43 // pred_region
          %vm334 = vcmask 254976
          %335 = vst.msk [vmem:[%s304] sm:$0x3] %vm334, 0.0
          %336 = vst.msk [vmem:[%s304 + $0x2] sm:$0x3] %vm334, 0.0
          %337 = vst.msk [vmem:[%s304 + $0x4] sm:$0x3] %vm334, 0.0
        $region48: #{tpu_custom_call.1} parent=43 // pred_fallthru
          _
        %v338 = vld [vmem:[%s310] sm:$0xff]
        %v339 = vld [vmem:[%s310 + $0x8] sm:$0xff]
        %v340 = vld [vmem:[%s310 + $0x10] sm:$0xff]
        %v341 = vld [vmem:[%s310 + $0x18] sm:$0xff]
        %v342 = vld [vmem:[%s310 + $0x20] sm:$0xff]
        %v343 = vld [vmem:[%s310 + $0x28] sm:$0xff]
        %v344 = vld [vmem:[%s310 + $0x30] sm:$0xff]
        %v345 = vld [vmem:[%s310 + $0x38] sm:$0xff]
        %v346 = vld [vmem:[%s310 + $0x40] sm:$0xff]
        %v347 = vld [vmem:[%s310 + $0x48] sm:$0xff]
        %v348 = vld [vmem:[%s310 + $0x50] sm:$0xff]
        %v349 = vld [vmem:[%s310 + $0x58] sm:$0xff]
        %v350 = vld [vmem:[%s310 + $0x60] sm:$0xff]
        %v351 = vld [vmem:[%s310 + $0x68] sm:$0xff]
        %v352 = vld [vmem:[%s310 + $0x70] sm:$0xff]
        %v353 = vld [vmem:[%s310 + $0x78] sm:$0xff]
        %v354 = vld [vmem:[%s310 + $0x80] sm:$0xff]
        %v355 = vld [vmem:[%s310 + $0x88] sm:$0xff]
        %v356 = vld [vmem:[%s310 + $0x90] sm:$0xff]
        %v357 = vld [vmem:[%s310 + $0x98] sm:$0xff]
        %v358 = vld [vmem:[%s310 + $0xa0] sm:$0xff]
        %v359 = vld [vmem:[%s310 + $0xa8] sm:$0xff]
        %v360 = vld [vmem:[%s310 + $0xb0] sm:$0xff]
        %v361 = vld [vmem:[%s310 + $0xb8] sm:$0xff]
        %v362 = vld [vmem:[%s310 + $0xc0] sm:$0xff]
        %v363 = vld [vmem:[%s310 + $0xc8] sm:$0xff]
        %v364 = vld [vmem:[%s310 + $0xd0] sm:$0xff]
        %v365 = vld [vmem:[%s310 + $0xd8] sm:$0xff]
        %v366 = vld [vmem:[%s310 + $0xe0] sm:$0xff]
        %v367 = vld [vmem:[%s310 + $0xe8] sm:$0xff]
        %v368 = vld [vmem:[%s310 + $0xf0] sm:$0xff]
        %v369 = vld [vmem:[%s310 + $0xf8] sm:$0xff]
        %v370 = vmul.f32 %v338, %v338
        %v371 = vmul.f32 %v339, %v339
        %v372 = vmul.f32 %v340, %v340
        %v373 = vmul.f32 %v341, %v341
        %v374 = vmul.f32 %v342, %v342
        %v375 = vmul.f32 %v343, %v343
        %v376 = vmul.f32 %v344, %v344
        %v377 = vmul.f32 %v345, %v345
        %v378 = vmul.f32 %v346, %v346
        %v379 = vmul.f32 %v347, %v347
        %v380 = vmul.f32 %v348, %v348
        %v381 = vmul.f32 %v349, %v349
        %v382 = vmul.f32 %v350, %v350
        %v383 = vmul.f32 %v351, %v351
        %v384 = vmul.f32 %v352, %v352
        %v385 = vmul.f32 %v353, %v353
        %v386 = vmul.f32 %v354, %v354
        %v387 = vmul.f32 %v355, %v355
        %v388 = vmul.f32 %v356, %v356
        %v389 = vmul.f32 %v357, %v357
        %v390 = vmul.f32 %v358, %v358
        %v391 = vmul.f32 %v359, %v359
        %v392 = vmul.f32 %v360, %v360
        %v393 = vmul.f32 %v361, %v361
        %v394 = vmul.f32 %v362, %v362
        %v395 = vmul.f32 %v363, %v363
        %v396 = vmul.f32 %v364, %v364
        %v397 = vmul.f32 %v365, %v365
        %v398 = vmul.f32 %v366, %v366
        %v399 = vmul.f32 %v367, %v367
        %v400 = vmul.f32 %v368, %v368
        %v401 = vmul.f32 %v369, %v369
        %434 = vrot.lane.b32.xlu0 %v370, 127
        %v435 = vpop.permute.xlu0 %434
        %436 = vrot.lane.b32.xlu0 %v371, 127
        %v437 = vpop.permute.xlu0 %436
        %438 = vrot.lane.b32.xlu0 %v372, 127
        %v439 = vpop.permute.xlu0 %438
        %440 = vrot.lane.b32.xlu0 %v373, 127
        %v441 = vpop.permute.xlu0 %440
        %442 = vrot.lane.b32.xlu0 %v374, 127
        %v443 = vpop.permute.xlu0 %442
        %444 = vrot.lane.b32.xlu0 %v375, 127
        %v445 = vpop.permute.xlu0 %444
        %446 = vrot.lane.b32.xlu0 %v376, 127
        %v447 = vpop.permute.xlu0 %446
        %448 = vrot.lane.b32.xlu0 %v377, 127
        %v449 = vpop.permute.xlu0 %448
        %450 = vrot.lane.b32.xlu0 %v378, 127
        %v451 = vpop.permute.xlu0 %450
        %452 = vrot.lane.b32.xlu0 %v379, 127
        %v453 = vpop.permute.xlu0 %452
        %454 = vrot.lane.b32.xlu0 %v380, 127
        %v455 = vpop.permute.xlu0 %454
        %456 = vrot.lane.b32.xlu0 %v381, 127
        %v457 = vpop.permute.xlu0 %456
        %458 = vrot.lane.b32.xlu0 %v382, 127
        %v459 = vpop.permute.xlu0 %458
        %460 = vrot.lane.b32.xlu0 %v383, 127
        %v461 = vpop.permute.xlu0 %460
        %462 = vrot.lane.b32.xlu0 %v384, 127
        %v463 = vpop.permute.xlu0 %462
        %464 = vrot.lane.b32.xlu0 %v385, 127
        %v465 = vpop.permute.xlu0 %464
        %466 = vrot.lane.b32.xlu0 %v386, 127
        %v467 = vpop.permute.xlu0 %466
        %468 = vrot.lane.b32.xlu0 %v387, 127
        %v469 = vpop.permute.xlu0 %468
        %470 = vrot.lane.b32.xlu0 %v388, 127
        %v471 = vpop.permute.xlu0 %470
        %472 = vrot.lane.b32.xlu0 %v389, 127
        %v473 = vpop.permute.xlu0 %472
        %474 = vrot.lane.b32.xlu0 %v390, 127
        %v475 = vpop.permute.xlu0 %474
        %476 = vrot.lane.b32.xlu0 %v391, 127
        %v477 = vpop.permute.xlu0 %476
        %478 = vrot.lane.b32.xlu0 %v392, 127
        %v479 = vpop.permute.xlu0 %478
        %480 = vrot.lane.b32.xlu0 %v393, 127
        %v481 = vpop.permute.xlu0 %480
        %482 = vrot.lane.b32.xlu0 %v394, 127
        %v483 = vpop.permute.xlu0 %482
        %484 = vrot.lane.b32.xlu0 %v395, 127
        %v485 = vpop.permute.xlu0 %484
        %486 = vrot.lane.b32.xlu0 %v396, 127
        %v487 = vpop.permute.xlu0 %486
        %488 = vrot.lane.b32.xlu0 %v397, 127
        %v489 = vpop.permute.xlu0 %488
        %490 = vrot.lane.b32.xlu0 %v398, 127
        %v491 = vpop.permute.xlu0 %490
        %492 = vrot.lane.b32.xlu0 %v399, 127
        %v493 = vpop.permute.xlu0 %492
        %494 = vrot.lane.b32.xlu0 %v400, 127
        %v495 = vpop.permute.xlu0 %494
        %496 = vrot.lane.b32.xlu0 %v401, 127
        %v497 = vpop.permute.xlu0 %496
        %v530 = vadd.f32 %v370, %v435
        %v531 = vadd.f32 %v371, %v437
        %v532 = vadd.f32 %v372, %v439
        %v533 = vadd.f32 %v373, %v441
        %v534 = vadd.f32 %v374, %v443
        %v535 = vadd.f32 %v375, %v445
        %v536 = vadd.f32 %v376, %v447
        %v537 = vadd.f32 %v377, %v449
        %v538 = vadd.f32 %v378, %v451
        %v539 = vadd.f32 %v379, %v453
        %v540 = vadd.f32 %v380, %v455
        %v541 = vadd.f32 %v381, %v457
        %v542 = vadd.f32 %v382, %v459
        %v543 = vadd.f32 %v383, %v461
        %v544 = vadd.f32 %v384, %v463
        %v545 = vadd.f32 %v385, %v465
        %v546 = vadd.f32 %v386, %v467
        %v547 = vadd.f32 %v387, %v469
        %v548 = vadd.f32 %v388, %v471
        %v549 = vadd.f32 %v389, %v473
        %v550 = vadd.f32 %v390, %v475
        %v551 = vadd.f32 %v391, %v477
        %v552 = vadd.f32 %v392, %v479
        %v553 = vadd.f32 %v393, %v481
        %v554 = vadd.f32 %v394, %v483
        %v555 = vadd.f32 %v395, %v485
        %v556 = vadd.f32 %v396, %v487
        %v557 = vadd.f32 %v397, %v489
        %v558 = vadd.f32 %v398, %v491
        %v559 = vadd.f32 %v399, %v493
        %v560 = vadd.f32 %v400, %v495
        %v561 = vadd.f32 %v401, %v497
        %562 = vrot.lane.b32.xlu0 %v370, 126
        %v563 = vpop.permute.xlu0 %562
        %564 = vrot.lane.b32.xlu0 %v371, 126
        %v565 = vpop.permute.xlu0 %564
        %566 = vrot.lane.b32.xlu0 %v372, 126
        %v567 = vpop.permute.xlu0 %566
        %568 = vrot.lane.b32.xlu0 %v373, 126
        %v569 = vpop.permute.xlu0 %568
        %570 = vrot.lane.b32.xlu0 %v374, 126
        %v571 = vpop.permute.xlu0 %570
        %572 = vrot.lane.b32.xlu0 %v375, 126
        %v573 = vpop.permute.xlu0 %572
        %574 = vrot.lane.b32.xlu0 %v376, 126
        %v575 = vpop.permute.xlu0 %574
        %576 = vrot.lane.b32.xlu0 %v377, 126
        %v577 = vpop.permute.xlu0 %576
        %578 = vrot.lane.b32.xlu0 %v378, 126
        %v579 = vpop.permute.xlu0 %578
        %580 = vrot.lane.b32.xlu0 %v379, 126
        %v581 = vpop.permute.xlu0 %580
        %582 = vrot.lane.b32.xlu0 %v380, 126
        %v583 = vpop.permute.xlu0 %582
        %584 = vrot.lane.b32.xlu0 %v381, 126
        %v585 = vpop.permute.xlu0 %584
        %586 = vrot.lane.b32.xlu0 %v382, 126
        %v587 = vpop.permute.xlu0 %586
        %588 = vrot.lane.b32.xlu0 %v383, 126
        %v589 = vpop.permute.xlu0 %588
        %590 = vrot.lane.b32.xlu0 %v384, 126
        %v591 = vpop.permute.xlu0 %590
        %592 = vrot.lane.b32.xlu0 %v385, 126
        %v593 = vpop.permute.xlu0 %592
        %594 = vrot.lane.b32.xlu0 %v386, 126
        %v595 = vpop.permute.xlu0 %594
        %596 = vrot.lane.b32.xlu0 %v387, 126
        %v597 = vpop.permute.xlu0 %596
        %598 = vrot.lane.b32.xlu0 %v388, 126
        %v599 = vpop.permute.xlu0 %598
        %600 = vrot.lane.b32.xlu0 %v389, 126
        %v601 = vpop.permute.xlu0 %600
        %602 = vrot.lane.b32.xlu0 %v390, 126
        %v603 = vpop.permute.xlu0 %602
        %604 = vrot.lane.b32.xlu0 %v391, 126
        %v605 = vpop.permute.xlu0 %604
        %606 = vrot.lane.b32.xlu0 %v392, 126
        %v607 = vpop.permute.xlu0 %606
        %608 = vrot.lane.b32.xlu0 %v393, 126
        %v609 = vpop.permute.xlu0 %608
        %610 = vrot.lane.b32.xlu0 %v394, 126
        %v611 = vpop.permute.xlu0 %610
        %612 = vrot.lane.b32.xlu0 %v395, 126
        %v613 = vpop.permute.xlu0 %612
        %614 = vrot.lane.b32.xlu0 %v396, 126
        %v615 = vpop.permute.xlu0 %614
        %616 = vrot.lane.b32.xlu0 %v397, 126
        %v617 = vpop.permute.xlu0 %616
        %618 = vrot.lane.b32.xlu0 %v398, 126
        %v619 = vpop.permute.xlu0 %618
        %620 = vrot.lane.b32.xlu0 %v399, 126
        %v621 = vpop.permute.xlu0 %620
        %622 = vrot.lane.b32.xlu0 %v400, 126
        %v623 = vpop.permute.xlu0 %622
        %624 = vrot.lane.b32.xlu0 %v401, 126
        %v625 = vpop.permute.xlu0 %624
        %v658 = vadd.f32 %v530, %v563
        %v659 = vadd.f32 %v531, %v565
        %v660 = vadd.f32 %v532, %v567
        %v661 = vadd.f32 %v533, %v569
        %v662 = vadd.f32 %v534, %v571
        %v663 = vadd.f32 %v535, %v573
        %v664 = vadd.f32 %v536, %v575
        %v665 = vadd.f32 %v537, %v577
        %v666 = vadd.f32 %v538, %v579
        %v667 = vadd.f32 %v539, %v581
        %v668 = vadd.f32 %v540, %v583
        %v669 = vadd.f32 %v541, %v585
        %v670 = vadd.f32 %v542, %v587
        %v671 = vadd.f32 %v543, %v589
        %v672 = vadd.f32 %v544, %v591
        %v673 = vadd.f32 %v545, %v593
        %v674 = vadd.f32 %v546, %v595
        %v675 = vadd.f32 %v547, %v597
        %v676 = vadd.f32 %v548, %v599
        %v677 = vadd.f32 %v549, %v601
        %v678 = vadd.f32 %v550, %v603
        %v679 = vadd.f32 %v551, %v605
        %v680 = vadd.f32 %v552, %v607
        %v681 = vadd.f32 %v553, %v609
        %v682 = vadd.f32 %v554, %v611
        %v683 = vadd.f32 %v555, %v613
        %v684 = vadd.f32 %v556, %v615
        %v685 = vadd.f32 %v557, %v617
        %v686 = vadd.f32 %v558, %v619
        %v687 = vadd.f32 %v559, %v621
        %v688 = vadd.f32 %v560, %v623
        %v689 = vadd.f32 %v561, %v625
        %v690 = vrsqrt.pop %v658
        %v691 = vmul.f32 %v690, %v658
        %v692 = vmul.f32 %v691, %v690
        %v693 = vmul.f32 0.5, %v692
        %v694 = vsub.f32 1.5, %v693
        %v695 = vmul.f32 %v690, %v694
        %v696 = vmul.f32 %v658, %v695
        %vm697 = vcmp.eq.f32.partialorder %v658, inf
        %v698 = vsel %vm697, %v658, %v696
        %vm699 = vcmp.eq.f32.partialorder %v658, 0.0
        %v700 = vand.u32 %v658, 2147483648
        %v701 = vsel %vm699, %v700, %v698
        %v702 = vrsqrt.pop %v659
        %v703 = vmul.f32 %v702, %v659
        %v704 = vmul.f32 %v703, %v702
        %v705 = vmul.f32 0.5, %v704
        %v706 = vsub.f32 1.5, %v705
        %v707 = vmul.f32 %v702, %v706
        %v708 = vmul.f32 %v659, %v707
        %vm709 = vcmp.eq.f32.partialorder %v659, inf
        %v710 = vsel %vm709, %v659, %v708
        %vm711 = vcmp.eq.f32.partialorder %v659, 0.0
        %v712 = vand.u32 %v659, 2147483648
        %v713 = vsel %vm711, %v712, %v710
        %v714 = vrsqrt.pop %v660
        %v715 = vmul.f32 %v714, %v660
        %v716 = vmul.f32 %v715, %v714
        %v717 = vmul.f32 0.5, %v716
        %v718 = vsub.f32 1.5, %v717
        %v719 = vmul.f32 %v714, %v718
        %v720 = vmul.f32 %v660, %v719
        %vm721 = vcmp.eq.f32.partialorder %v660, inf
        %v722 = vsel %vm721, %v660, %v720
        %vm723 = vcmp.eq.f32.partialorder %v660, 0.0
        %v724 = vand.u32 %v660, 2147483648
        %v725 = vsel %vm723, %v724, %v722
        %v726 = vrsqrt.pop %v661
        %v727 = vmul.f32 %v726, %v661
        %v728 = vmul.f32 %v727, %v726
        %v729 = vmul.f32 0.5, %v728
        %v730 = vsub.f32 1.5, %v729
        %v731 = vmul.f32 %v726, %v730
        %v732 = vmul.f32 %v661, %v731
        %vm733 = vcmp.eq.f32.partialorder %v661, inf
        %v734 = vsel %vm733, %v661, %v732
        %vm735 = vcmp.eq.f32.partialorder %v661, 0.0
        %v736 = vand.u32 %v661, 2147483648
        %v737 = vsel %vm735, %v736, %v734
        %v738 = vrsqrt.pop %v662
        %v739 = vmul.f32 %v738, %v662
        %v740 = vmul.f32 %v739, %v738
        %v741 = vmul.f32 0.5, %v740
        %v742 = vsub.f32 1.5, %v741
        %v743 = vmul.f32 %v738, %v742
        %v744 = vmul.f32 %v662, %v743
        %vm745 = vcmp.eq.f32.partialorder %v662, inf
        %v746 = vsel %vm745, %v662, %v744
        %vm747 = vcmp.eq.f32.partialorder %v662, 0.0
        %v748 = vand.u32 %v662, 2147483648
        %v749 = vsel %vm747, %v748, %v746
        %v750 = vrsqrt.pop %v663
        %v751 = vmul.f32 %v750, %v663
        %v752 = vmul.f32 %v751, %v750
        %v753 = vmul.f32 0.5, %v752
        %v754 = vsub.f32 1.5, %v753
        %v755 = vmul.f32 %v750, %v754
        %v756 = vmul.f32 %v663, %v755
        %vm757 = vcmp.eq.f32.partialorder %v663, inf
        %v758 = vsel %vm757, %v663, %v756
        %vm759 = vcmp.eq.f32.partialorder %v663, 0.0
        %v760 = vand.u32 %v663, 2147483648
        %v761 = vsel %vm759, %v760, %v758
        %v762 = vrsqrt.pop %v664
        %v763 = vmul.f32 %v762, %v664
        %v764 = vmul.f32 %v763, %v762
        %v765 = vmul.f32 0.5, %v764
        %v766 = vsub.f32 1.5, %v765
        %v767 = vmul.f32 %v762, %v766
        %v768 = vmul.f32 %v664, %v767
        %vm769 = vcmp.eq.f32.partialorder %v664, inf
        %v770 = vsel %vm769, %v664, %v768
        %vm771 = vcmp.eq.f32.partialorder %v664, 0.0
        %v772 = vand.u32 %v664, 2147483648
        %v773 = vsel %vm771, %v772, %v770
        %v774 = vrsqrt.pop %v665
        %v775 = vmul.f32 %v774, %v665
        %v776 = vmul.f32 %v775, %v774
        %v777 = vmul.f32 0.5, %v776
        %v778 = vsub.f32 1.5, %v777
        %v779 = vmul.f32 %v774, %v778
        %v780 = vmul.f32 %v665, %v779
        %vm781 = vcmp.eq.f32.partialorder %v665, inf
        %v782 = vsel %vm781, %v665, %v780
        %vm783 = vcmp.eq.f32.partialorder %v665, 0.0
        %v784 = vand.u32 %v665, 2147483648
        %v785 = vsel %vm783, %v784, %v782
        %v786 = vrsqrt.pop %v666
        %v787 = vmul.f32 %v786, %v666
        %v788 = vmul.f32 %v787, %v786
        %v789 = vmul.f32 0.5, %v788
        %v790 = vsub.f32 1.5, %v789
        %v791 = vmul.f32 %v786, %v790
        %v792 = vmul.f32 %v666, %v791
        %vm793 = vcmp.eq.f32.partialorder %v666, inf
        %v794 = vsel %vm793, %v666, %v792
        %vm795 = vcmp.eq.f32.partialorder %v666, 0.0
        %v796 = vand.u32 %v666, 2147483648
        %v797 = vsel %vm795, %v796, %v794
        %v798 = vrsqrt.pop %v667
        %v799 = vmul.f32 %v798, %v667
        %v800 = vmul.f32 %v799, %v798
        %v801 = vmul.f32 0.5, %v800
        %v802 = vsub.f32 1.5, %v801
        %v803 = vmul.f32 %v798, %v802
        %v804 = vmul.f32 %v667, %v803
        %vm805 = vcmp.eq.f32.partialorder %v667, inf
        %v806 = vsel %vm805, %v667, %v804
        %vm807 = vcmp.eq.f32.partialorder %v667, 0.0
        %v808 = vand.u32 %v667, 2147483648
        %v809 = vsel %vm807, %v808, %v806
        %v810 = vrsqrt.pop %v668
        %v811 = vmul.f32 %v810, %v668
        %v812 = vmul.f32 %v811, %v810
        %v813 = vmul.f32 0.5, %v812
        %v814 = vsub.f32 1.5, %v813
        %v815 = vmul.f32 %v810, %v814
        %v816 = vmul.f32 %v668, %v815
        %vm817 = vcmp.eq.f32.partialorder %v668, inf
        %v818 = vsel %vm817, %v668, %v816
        %vm819 = vcmp.eq.f32.partialorder %v668, 0.0
        %v820 = vand.u32 %v668, 2147483648
        %v821 = vsel %vm819, %v820, %v818
        %v822 = vrsqrt.pop %v669
        %v823 = vmul.f32 %v822, %v669
        %v824 = vmul.f32 %v823, %v822
        %v825 = vmul.f32 0.5, %v824
        %v826 = vsub.f32 1.5, %v825
        %v827 = vmul.f32 %v822, %v826
        %v828 = vmul.f32 %v669, %v827
        %vm829 = vcmp.eq.f32.partialorder %v669, inf
        %v830 = vsel %vm829, %v669, %v828
        %vm831 = vcmp.eq.f32.partialorder %v669, 0.0
        %v832 = vand.u32 %v669, 2147483648
        %v833 = vsel %vm831, %v832, %v830
        %v834 = vrsqrt.pop %v670
        %v835 = vmul.f32 %v834, %v670
        %v836 = vmul.f32 %v835, %v834
        %v837 = vmul.f32 0.5, %v836
        %v838 = vsub.f32 1.5, %v837
        %v839 = vmul.f32 %v834, %v838
        %v840 = vmul.f32 %v670, %v839
        %vm841 = vcmp.eq.f32.partialorder %v670, inf
        %v842 = vsel %vm841, %v670, %v840
        %vm843 = vcmp.eq.f32.partialorder %v670, 0.0
        %v844 = vand.u32 %v670, 2147483648
        %v845 = vsel %vm843, %v844, %v842
        %v846 = vrsqrt.pop %v671
        %v847 = vmul.f32 %v846, %v671
        %v848 = vmul.f32 %v847, %v846
        %v849 = vmul.f32 0.5, %v848
        %v850 = vsub.f32 1.5, %v849
        %v851 = vmul.f32 %v846, %v850
        %v852 = vmul.f32 %v671, %v851
        %vm853 = vcmp.eq.f32.partialorder %v671, inf
        %v854 = vsel %vm853, %v671, %v852
        %vm855 = vcmp.eq.f32.partialorder %v671, 0.0
        %v856 = vand.u32 %v671, 2147483648
        %v857 = vsel %vm855, %v856, %v854
        %v858 = vrsqrt.pop %v672
        %v859 = vmul.f32 %v858, %v672
        %v860 = vmul.f32 %v859, %v858
        %v861 = vmul.f32 0.5, %v860
        %v862 = vsub.f32 1.5, %v861
        %v863 = vmul.f32 %v858, %v862
        %v864 = vmul.f32 %v672, %v863
        %vm865 = vcmp.eq.f32.partialorder %v672, inf
        %v866 = vsel %vm865, %v672, %v864
        %vm867 = vcmp.eq.f32.partialorder %v672, 0.0
        %v868 = vand.u32 %v672, 2147483648
        %v869 = vsel %vm867, %v868, %v866
        %v870 = vrsqrt.pop %v673
        %v871 = vmul.f32 %v870, %v673
        %v872 = vmul.f32 %v871, %v870
        %v873 = vmul.f32 0.5, %v872
        %v874 = vsub.f32 1.5, %v873
        %v875 = vmul.f32 %v870, %v874
        %v876 = vmul.f32 %v673, %v875
        %vm877 = vcmp.eq.f32.partialorder %v673, inf
        %v878 = vsel %vm877, %v673, %v876
        %vm879 = vcmp.eq.f32.partialorder %v673, 0.0
        %v880 = vand.u32 %v673, 2147483648
        %v881 = vsel %vm879, %v880, %v878
        %v882 = vrsqrt.pop %v674
        %v883 = vmul.f32 %v882, %v674
        %v884 = vmul.f32 %v883, %v882
        %v885 = vmul.f32 0.5, %v884
        %v886 = vsub.f32 1.5, %v885
        %v887 = vmul.f32 %v882, %v886
        %v888 = vmul.f32 %v674, %v887
        %vm889 = vcmp.eq.f32.partialorder %v674, inf
        %v890 = vsel %vm889, %v674, %v888
        %vm891 = vcmp.eq.f32.partialorder %v674, 0.0
        %v892 = vand.u32 %v674, 2147483648
        %v893 = vsel %vm891, %v892, %v890
        %v894 = vrsqrt.pop %v675
        %v895 = vmul.f32 %v894, %v675
        %v896 = vmul.f32 %v895, %v894
        %v897 = vmul.f32 0.5, %v896
        %v898 = vsub.f32 1.5, %v897
        %v899 = vmul.f32 %v894, %v898
        %v900 = vmul.f32 %v675, %v899
        %vm901 = vcmp.eq.f32.partialorder %v675, inf
        %v902 = vsel %vm901, %v675, %v900
        %vm903 = vcmp.eq.f32.partialorder %v675, 0.0
        %v904 = vand.u32 %v675, 2147483648
        %v905 = vsel %vm903, %v904, %v902
        %v906 = vrsqrt.pop %v676
        %v907 = vmul.f32 %v906, %v676
        %v908 = vmul.f32 %v907, %v906
        %v909 = vmul.f32 0.5, %v908
        %v910 = vsub.f32 1.5, %v909
        %v911 = vmul.f32 %v906, %v910
        %v912 = vmul.f32 %v676, %v911
        %vm913 = vcmp.eq.f32.partialorder %v676, inf
        %v914 = vsel %vm913, %v676, %v912
        %vm915 = vcmp.eq.f32.partialorder %v676, 0.0
        %v916 = vand.u32 %v676, 2147483648
        %v917 = vsel %vm915, %v916, %v914
        %v918 = vrsqrt.pop %v677
        %v919 = vmul.f32 %v918, %v677
        %v920 = vmul.f32 %v919, %v918
        %v921 = vmul.f32 0.5, %v920
        %v922 = vsub.f32 1.5, %v921
        %v923 = vmul.f32 %v918, %v922
        %v924 = vmul.f32 %v677, %v923
        %vm925 = vcmp.eq.f32.partialorder %v677, inf
        %v926 = vsel %vm925, %v677, %v924
        %vm927 = vcmp.eq.f32.partialorder %v677, 0.0
        %v928 = vand.u32 %v677, 2147483648
        %v929 = vsel %vm927, %v928, %v926
        %v930 = vrsqrt.pop %v678
        %v931 = vmul.f32 %v930, %v678
        %v932 = vmul.f32 %v931, %v930
        %v933 = vmul.f32 0.5, %v932
        %v934 = vsub.f32 1.5, %v933
        %v935 = vmul.f32 %v930, %v934
        %v936 = vmul.f32 %v678, %v935
        %vm937 = vcmp.eq.f32.partialorder %v678, inf
        %v938 = vsel %vm937, %v678, %v936
        %vm939 = vcmp.eq.f32.partialorder %v678, 0.0
        %v940 = vand.u32 %v678, 2147483648
        %v941 = vsel %vm939, %v940, %v938
        %v942 = vrsqrt.pop %v679
        %v943 = vmul.f32 %v942, %v679
        %v944 = vmul.f32 %v943, %v942
        %v945 = vmul.f32 0.5, %v944
        %v946 = vsub.f32 1.5, %v945
        %v947 = vmul.f32 %v942, %v946
        %v948 = vmul.f32 %v679, %v947
        %vm949 = vcmp.eq.f32.partialorder %v679, inf
        %v950 = vsel %vm949, %v679, %v948
        %vm951 = vcmp.eq.f32.partialorder %v679, 0.0
        %v952 = vand.u32 %v679, 2147483648
        %v953 = vsel %vm951, %v952, %v950
        %v954 = vrsqrt.pop %v680
        %v955 = vmul.f32 %v954, %v680
        %v956 = vmul.f32 %v955, %v954
        %v957 = vmul.f32 0.5, %v956
        %v958 = vsub.f32 1.5, %v957
        %v959 = vmul.f32 %v954, %v958
        %v960 = vmul.f32 %v680, %v959
        %vm961 = vcmp.eq.f32.partialorder %v680, inf
        %v962 = vsel %vm961, %v680, %v960
        %vm963 = vcmp.eq.f32.partialorder %v680, 0.0
        %v964 = vand.u32 %v680, 2147483648
        %v965 = vsel %vm963, %v964, %v962
        %v966 = vrsqrt.pop %v681
        %v967 = vmul.f32 %v966, %v681
        %v968 = vmul.f32 %v967, %v966
        %v969 = vmul.f32 0.5, %v968
        %v970 = vsub.f32 1.5, %v969
        %v971 = vmul.f32 %v966, %v970
        %v972 = vmul.f32 %v681, %v971
        %vm973 = vcmp.eq.f32.partialorder %v681, inf
        %v974 = vsel %vm973, %v681, %v972
        %vm975 = vcmp.eq.f32.partialorder %v681, 0.0
        %v976 = vand.u32 %v681, 2147483648
        %v977 = vsel %vm975, %v976, %v974
        %v978 = vrsqrt.pop %v682
        %v979 = vmul.f32 %v978, %v682
        %v980 = vmul.f32 %v979, %v978
        %v981 = vmul.f32 0.5, %v980
        %v982 = vsub.f32 1.5, %v981
        %v983 = vmul.f32 %v978, %v982
        %v984 = vmul.f32 %v682, %v983
        %vm985 = vcmp.eq.f32.partialorder %v682, inf
        %v986 = vsel %vm985, %v682, %v984
        %vm987 = vcmp.eq.f32.partialorder %v682, 0.0
        %v988 = vand.u32 %v682, 2147483648
        %v989 = vsel %vm987, %v988, %v986
        %v990 = vrsqrt.pop %v683
        %v991 = vmul.f32 %v990, %v683
        %v992 = vmul.f32 %v991, %v990
        %v993 = vmul.f32 0.5, %v992
        %v994 = vsub.f32 1.5, %v993
        %v995 = vmul.f32 %v990, %v994
        %v996 = vmul.f32 %v683, %v995
        %vm997 = vcmp.eq.f32.partialorder %v683, inf
        %v998 = vsel %vm997, %v683, %v996
        %vm999 = vcmp.eq.f32.partialorder %v683, 0.0
        %v1000 = vand.u32 %v683, 2147483648
        %v1001 = vsel %vm999, %v1000, %v998
        %v1002 = vrsqrt.pop %v684
        %v1003 = vmul.f32 %v1002, %v684
        %v1004 = vmul.f32 %v1003, %v1002
        %v1005 = vmul.f32 0.5, %v1004
        %v1006 = vsub.f32 1.5, %v1005
        %v1007 = vmul.f32 %v1002, %v1006
        %v1008 = vmul.f32 %v684, %v1007
        %vm1009 = vcmp.eq.f32.partialorder %v684, inf
        %v1010 = vsel %vm1009, %v684, %v1008
        %vm1011 = vcmp.eq.f32.partialorder %v684, 0.0
        %v1012 = vand.u32 %v684, 2147483648
        %v1013 = vsel %vm1011, %v1012, %v1010
        %v1014 = vrsqrt.pop %v685
        %v1015 = vmul.f32 %v1014, %v685
        %v1016 = vmul.f32 %v1015, %v1014
        %v1017 = vmul.f32 0.5, %v1016
        %v1018 = vsub.f32 1.5, %v1017
        %v1019 = vmul.f32 %v1014, %v1018
        %v1020 = vmul.f32 %v685, %v1019
        %vm1021 = vcmp.eq.f32.partialorder %v685, inf
        %v1022 = vsel %vm1021, %v685, %v1020
        %vm1023 = vcmp.eq.f32.partialorder %v685, 0.0
        %v1024 = vand.u32 %v685, 2147483648
        %v1025 = vsel %vm1023, %v1024, %v1022
        %v1026 = vrsqrt.pop %v686
        %v1027 = vmul.f32 %v1026, %v686
        %v1028 = vmul.f32 %v1027, %v1026
        %v1029 = vmul.f32 0.5, %v1028
        %v1030 = vsub.f32 1.5, %v1029
        %v1031 = vmul.f32 %v1026, %v1030
        %v1032 = vmul.f32 %v686, %v1031
        %vm1033 = vcmp.eq.f32.partialorder %v686, inf
        %v1034 = vsel %vm1033, %v686, %v1032
        %vm1035 = vcmp.eq.f32.partialorder %v686, 0.0
        %v1036 = vand.u32 %v686, 2147483648
        %v1037 = vsel %vm1035, %v1036, %v1034
        %v1038 = vrsqrt.pop %v687
        %v1039 = vmul.f32 %v1038, %v687
        %v1040 = vmul.f32 %v1039, %v1038
        %v1041 = vmul.f32 0.5, %v1040
        %v1042 = vsub.f32 1.5, %v1041
        %v1043 = vmul.f32 %v1038, %v1042
        %v1044 = vmul.f32 %v687, %v1043
        %vm1045 = vcmp.eq.f32.partialorder %v687, inf
        %v1046 = vsel %vm1045, %v687, %v1044
        %vm1047 = vcmp.eq.f32.partialorder %v687, 0.0
        %v1048 = vand.u32 %v687, 2147483648
        %v1049 = vsel %vm1047, %v1048, %v1046
        %v1050 = vrsqrt.pop %v688
        %v1051 = vmul.f32 %v1050, %v688
        %v1052 = vmul.f32 %v1051, %v1050
        %v1053 = vmul.f32 0.5, %v1052
        %v1054 = vsub.f32 1.5, %v1053
        %v1055 = vmul.f32 %v1050, %v1054
        %v1056 = vmul.f32 %v688, %v1055
        %vm1057 = vcmp.eq.f32.partialorder %v688, inf
        %v1058 = vsel %vm1057, %v688, %v1056
        %vm1059 = vcmp.eq.f32.partialorder %v688, 0.0
        %v1060 = vand.u32 %v688, 2147483648
        %v1061 = vsel %vm1059, %v1060, %v1058
        %v1062 = vrsqrt.pop %v689
        %v1063 = vmul.f32 %v1062, %v689
        %v1064 = vmul.f32 %v1063, %v1062
        %v1065 = vmul.f32 0.5, %v1064
        %v1066 = vsub.f32 1.5, %v1065
        %v1067 = vmul.f32 %v1062, %v1066
        %v1068 = vmul.f32 %v689, %v1067
        %vm1069 = vcmp.eq.f32.partialorder %v689, inf
        %v1070 = vsel %vm1069, %v689, %v1068
        %vm1071 = vcmp.eq.f32.partialorder %v689, 0.0
        %v1072 = vand.u32 %v689, 2147483648
        %v1073 = vsel %vm1071, %v1072, %v1070
        %v1074 = vld [vmem:[%s3] sm:$0x1]
        %1076 = vset.pattern.permute.xlu0 0
        %1077 = vperm.xlu0 %1076, %v701
        %v1078 = vpop.permute.xlu0 %1077
        %1081 = vset.pattern.permute.xlu0 0
        %1082 = vperm.xlu0 %1081, %v713
        %v1083 = vpop.permute.xlu0 %1082
        %1086 = vset.pattern.permute.xlu0 0
        %1087 = vperm.xlu0 %1086, %v725
        %v1088 = vpop.permute.xlu0 %1087
        %1091 = vset.pattern.permute.xlu0 0
        %1092 = vperm.xlu0 %1091, %v737
        %v1093 = vpop.permute.xlu0 %1092
        %1096 = vset.pattern.permute.xlu0 0
        %1097 = vperm.xlu0 %1096, %v749
        %v1098 = vpop.permute.xlu0 %1097
        %1101 = vset.pattern.permute.xlu0 0
        %1102 = vperm.xlu0 %1101, %v761
        %v1103 = vpop.permute.xlu0 %1102
        %1106 = vset.pattern.permute.xlu0 0
        %1107 = vperm.xlu0 %1106, %v773
        %v1108 = vpop.permute.xlu0 %1107
        %1111 = vset.pattern.permute.xlu0 0
        %1112 = vperm.xlu0 %1111, %v785
        %v1113 = vpop.permute.xlu0 %1112
        %1116 = vset.pattern.permute.xlu0 0
        %1117 = vperm.xlu0 %1116, %v797
        %v1118 = vpop.permute.xlu0 %1117
        %1121 = vset.pattern.permute.xlu0 0
        %1122 = vperm.xlu0 %1121, %v809
        %v1123 = vpop.permute.xlu0 %1122
        %1126 = vset.pattern.permute.xlu0 0
        %1127 = vperm.xlu0 %1126, %v821
        %v1128 = vpop.permute.xlu0 %1127
        %1131 = vset.pattern.permute.xlu0 0
        %1132 = vperm.xlu0 %1131, %v833
        %v1133 = vpop.permute.xlu0 %1132
        %1136 = vset.pattern.permute.xlu0 0
        %1137 = vperm.xlu0 %1136, %v845
        %v1138 = vpop.permute.xlu0 %1137
        %1141 = vset.pattern.permute.xlu0 0
        %1142 = vperm.xlu0 %1141, %v857
        %v1143 = vpop.permute.xlu0 %1142
        %1146 = vset.pattern.permute.xlu0 0
        %1147 = vperm.xlu0 %1146, %v869
        %v1148 = vpop.permute.xlu0 %1147
        %1151 = vset.pattern.permute.xlu0 0
        %1152 = vperm.xlu0 %1151, %v881
        %v1153 = vpop.permute.xlu0 %1152
        %1156 = vset.pattern.permute.xlu0 0
        %1157 = vperm.xlu0 %1156, %v893
        %v1158 = vpop.permute.xlu0 %1157
        %1161 = vset.pattern.permute.xlu0 0
        %1162 = vperm.xlu0 %1161, %v905
        %v1163 = vpop.permute.xlu0 %1162
        %1166 = vset.pattern.permute.xlu0 0
        %1167 = vperm.xlu0 %1166, %v917
        %v1168 = vpop.permute.xlu0 %1167
        %1171 = vset.pattern.permute.xlu0 0
        %1172 = vperm.xlu0 %1171, %v929
        %v1173 = vpop.permute.xlu0 %1172
        %1176 = vset.pattern.permute.xlu0 0
        %1177 = vperm.xlu0 %1176, %v941
        %v1178 = vpop.permute.xlu0 %1177
        %1181 = vset.pattern.permute.xlu0 0
        %1182 = vperm.xlu0 %1181, %v953
        %v1183 = vpop.permute.xlu0 %1182
        %1186 = vset.pattern.permute.xlu0 0
        %1187 = vperm.xlu0 %1186, %v965
        %v1188 = vpop.permute.xlu0 %1187
        %1191 = vset.pattern.permute.xlu0 0
        %1192 = vperm.xlu0 %1191, %v977
        %v1193 = vpop.permute.xlu0 %1192
        %1196 = vset.pattern.permute.xlu0 0
        %1197 = vperm.xlu0 %1196, %v989
        %v1198 = vpop.permute.xlu0 %1197
        %1201 = vset.pattern.permute.xlu0 0
        %1202 = vperm.xlu0 %1201, %v1001
        %v1203 = vpop.permute.xlu0 %1202
        %1206 = vset.pattern.permute.xlu0 0
        %1207 = vperm.xlu0 %1206, %v1013
        %v1208 = vpop.permute.xlu0 %1207
        %1211 = vset.pattern.permute.xlu0 0
        %1212 = vperm.xlu0 %1211, %v1025
        %v1213 = vpop.permute.xlu0 %1212
        %1216 = vset.pattern.permute.xlu0 0
        %1217 = vperm.xlu0 %1216, %v1037
        %v1218 = vpop.permute.xlu0 %1217
        %1221 = vset.pattern.permute.xlu0 0
        %1222 = vperm.xlu0 %1221, %v1049
        %v1223 = vpop.permute.xlu0 %1222
        %1226 = vset.pattern.permute.xlu0 0
        %1227 = vperm.xlu0 %1226, %v1061
        %v1228 = vpop.permute.xlu0 %1227
        %1231 = vset.pattern.permute.xlu0 0
        %1232 = vperm.xlu0 %1231, %v1073
        %v1233 = vpop.permute.xlu0 %1232
        %v1236 = vperm.slane %v1074, 0
        %v1238 = vsub.f32 %v1078, %v1236
        %v1239 = vsub.f32 %v1083, %v1236
        %v1240 = vsub.f32 %v1088, %v1236
        %v1241 = vsub.f32 %v1093, %v1236
        %v1242 = vsub.f32 %v1098, %v1236
        %v1243 = vsub.f32 %v1103, %v1236
        %v1244 = vsub.f32 %v1108, %v1236
        %v1245 = vsub.f32 %v1113, %v1236
        %v1246 = vsub.f32 %v1118, %v1236
        %v1247 = vsub.f32 %v1123, %v1236
        %v1248 = vsub.f32 %v1128, %v1236
        %v1249 = vsub.f32 %v1133, %v1236
        %v1250 = vsub.f32 %v1138, %v1236
        %v1251 = vsub.f32 %v1143, %v1236
        %v1252 = vsub.f32 %v1148, %v1236
        %v1253 = vsub.f32 %v1153, %v1236
        %v1254 = vsub.f32 %v1158, %v1236
        %v1255 = vsub.f32 %v1163, %v1236
        %v1256 = vsub.f32 %v1168, %v1236
        %v1257 = vsub.f32 %v1173, %v1236
        %v1258 = vsub.f32 %v1178, %v1236
        %v1259 = vsub.f32 %v1183, %v1236
        %v1260 = vsub.f32 %v1188, %v1236
        %v1261 = vsub.f32 %v1193, %v1236
        %v1262 = vsub.f32 %v1198, %v1236
        %v1263 = vsub.f32 %v1203, %v1236
        %v1264 = vsub.f32 %v1208, %v1236
        %v1265 = vsub.f32 %v1213, %v1236
        %v1266 = vsub.f32 %v1218, %v1236
        %v1267 = vsub.f32 %v1223, %v1236
        %v1268 = vsub.f32 %v1228, %v1236
        %v1269 = vsub.f32 %v1233, %v1236
        %v1270 = vmul.f32 %v1238, %v1238
        %v1271 = vmul.f32 %v1239, %v1239
        %v1272 = vmul.f32 %v1240, %v1240
        %v1273 = vmul.f32 %v1241, %v1241
        %v1274 = vmul.f32 %v1242, %v1242
        %v1275 = vmul.f32 %v1243, %v1243
        %v1276 = vmul.f32 %v1244, %v1244
        %v1277 = vmul.f32 %v1245, %v1245
        %v1278 = vmul.f32 %v1246, %v1246
        %v1279 = vmul.f32 %v1247, %v1247
        %v1280 = vmul.f32 %v1248, %v1248
        %v1281 = vmul.f32 %v1249, %v1249
        %v1282 = vmul.f32 %v1250, %v1250
        %v1283 = vmul.f32 %v1251, %v1251
        %v1284 = vmul.f32 %v1252, %v1252
        %v1285 = vmul.f32 %v1253, %v1253
        %v1286 = vmul.f32 %v1254, %v1254
        %v1287 = vmul.f32 %v1255, %v1255
        %v1288 = vmul.f32 %v1256, %v1256
        %v1289 = vmul.f32 %v1257, %v1257
        %v1290 = vmul.f32 %v1258, %v1258
        %v1291 = vmul.f32 %v1259, %v1259
        %v1292 = vmul.f32 %v1260, %v1260
        %v1293 = vmul.f32 %v1261, %v1261
        %v1294 = vmul.f32 %v1262, %v1262
        %v1295 = vmul.f32 %v1263, %v1263
        %v1296 = vmul.f32 %v1264, %v1264
        %v1297 = vmul.f32 %v1265, %v1265
        %v1298 = vmul.f32 %v1266, %v1266
        %v1299 = vmul.f32 %v1267, %v1267
        %v1300 = vmul.f32 %v1268, %v1268
        %v1301 = vmul.f32 %v1269, %v1269
        %v1302 = vmul.f32 %v1270, -60.499996
        %v1303 = vmul.f32 %v1271, -60.499996
        %v1304 = vmul.f32 %v1272, -60.499996
        %v1305 = vmul.f32 %v1273, -60.499996
        %v1306 = vmul.f32 %v1274, -60.499996
        %v1307 = vmul.f32 %v1275, -60.499996
        %v1308 = vmul.f32 %v1276, -60.499996
        %v1309 = vmul.f32 %v1277, -60.499996
        %v1310 = vmul.f32 %v1278, -60.499996
        %v1311 = vmul.f32 %v1279, -60.499996
        %v1312 = vmul.f32 %v1280, -60.499996
        %v1313 = vmul.f32 %v1281, -60.499996
        %v1314 = vmul.f32 %v1282, -60.499996
        %v1315 = vmul.f32 %v1283, -60.499996
        %v1316 = vmul.f32 %v1284, -60.499996
        %v1317 = vmul.f32 %v1285, -60.499996
        %v1318 = vmul.f32 %v1286, -60.499996
        %v1319 = vmul.f32 %v1287, -60.499996
        %v1320 = vmul.f32 %v1288, -60.499996
        %v1321 = vmul.f32 %v1289, -60.499996
        %v1322 = vmul.f32 %v1290, -60.499996
        %v1323 = vmul.f32 %v1291, -60.499996
        %v1324 = vmul.f32 %v1292, -60.499996
        %v1325 = vmul.f32 %v1293, -60.499996
        %v1326 = vmul.f32 %v1294, -60.499996
        %v1327 = vmul.f32 %v1295, -60.499996
        %v1328 = vmul.f32 %v1296, -60.499996
        %v1329 = vmul.f32 %v1297, -60.499996
        %v1330 = vmul.f32 %v1298, -60.499996
        %v1331 = vmul.f32 %v1299, -60.499996
        %v1332 = vmul.f32 %v1300, -60.499996
        %v1333 = vmul.f32 %v1301, -60.499996
        %v1334 = vmul.f32 %v1302, 1.442695
        %v1335 = vpow.pop %v1334
        %v1336 = vmul.f32 %v1303, 1.442695
        %v1337 = vpow.pop %v1336
        %v1338 = vmul.f32 %v1304, 1.442695
        %v1339 = vpow.pop %v1338
        %v1340 = vmul.f32 %v1305, 1.442695
        %v1341 = vpow.pop %v1340
        %v1342 = vmul.f32 %v1306, 1.442695
        %v1343 = vpow.pop %v1342
        %v1344 = vmul.f32 %v1307, 1.442695
        %v1345 = vpow.pop %v1344
        %v1346 = vmul.f32 %v1308, 1.442695
        %v1347 = vpow.pop %v1346
        %v1348 = vmul.f32 %v1309, 1.442695
        %v1349 = vpow.pop %v1348
        %v1350 = vmul.f32 %v1310, 1.442695
        %v1351 = vpow.pop %v1350
        %v1352 = vmul.f32 %v1311, 1.442695
        %v1353 = vpow.pop %v1352
        %v1354 = vmul.f32 %v1312, 1.442695
        %v1355 = vpow.pop %v1354
        %v1356 = vmul.f32 %v1313, 1.442695
        %v1357 = vpow.pop %v1356
        %v1358 = vmul.f32 %v1314, 1.442695
        %v1359 = vpow.pop %v1358
        %v1360 = vmul.f32 %v1315, 1.442695
        %v1361 = vpow.pop %v1360
        %v1362 = vmul.f32 %v1316, 1.442695
        %v1363 = vpow.pop %v1362
        %v1364 = vmul.f32 %v1317, 1.442695
        %v1365 = vpow.pop %v1364
        %v1366 = vmul.f32 %v1318, 1.442695
        %v1367 = vpow.pop %v1366
        %v1368 = vmul.f32 %v1319, 1.442695
        %v1369 = vpow.pop %v1368
        %v1370 = vmul.f32 %v1320, 1.442695
        %v1371 = vpow.pop %v1370
        %v1372 = vmul.f32 %v1321, 1.442695
        %v1373 = vpow.pop %v1372
        %v1374 = vmul.f32 %v1322, 1.442695
        %v1375 = vpow.pop %v1374
        %v1376 = vmul.f32 %v1323, 1.442695
        %v1377 = vpow.pop %v1376
        %v1378 = vmul.f32 %v1324, 1.442695
        %v1379 = vpow.pop %v1378
        %v1380 = vmul.f32 %v1325, 1.442695
        %v1381 = vpow.pop %v1380
        %v1382 = vmul.f32 %v1326, 1.442695
        %v1383 = vpow.pop %v1382
        %v1384 = vmul.f32 %v1327, 1.442695
        %v1385 = vpow.pop %v1384
        %v1386 = vmul.f32 %v1328, 1.442695
        %v1387 = vpow.pop %v1386
        %v1388 = vmul.f32 %v1329, 1.442695
        %v1389 = vpow.pop %v1388
        %v1390 = vmul.f32 %v1330, 1.442695
        %v1391 = vpow.pop %v1390
        %v1392 = vmul.f32 %v1331, 1.442695
        %v1393 = vpow.pop %v1392
        %v1394 = vmul.f32 %v1332, 1.442695
        %v1395 = vpow.pop %v1394
        %v1396 = vmul.f32 %v1333, 1.442695
        %v1397 = vpow.pop %v1396
        %v1398 = vld [vmem:[%s4] sm:$0xff]
        %v1399 = vld [vmem:[%s4 + $0x8] sm:$0xff]
        %v1400 = vld [vmem:[%s4 + $0x10] sm:$0xff]
        %v1401 = vld [vmem:[%s4 + $0x18] sm:$0xff]
        %v1402 = vld [vmem:[%s4 + $0x20] sm:$0xff]
        %v1403 = vld [vmem:[%s4 + $0x28] sm:$0xff]
        %v1404 = vld [vmem:[%s4 + $0x30] sm:$0xff]
        %v1405 = vld [vmem:[%s4 + $0x38] sm:$0xff]
        %v1406 = vld [vmem:[%s4 + $0x40] sm:$0xff]
        %v1407 = vld [vmem:[%s4 + $0x48] sm:$0xff]
        %v1408 = vld [vmem:[%s4 + $0x50] sm:$0xff]
        %v1409 = vld [vmem:[%s5] sm:$0x7]
        %v1410 = vperm.slane %v1409, 0
        %vm1411 = vcmask 130048
        %v1413 = vsel %vm1411, %v1335, 0
        %v1416 = vsel %vm1411, %v1337, 0
        %v1419 = vsel %vm1411, %v1339, 0
        %v1422 = vsel %vm1411, %v1341, 0
        %v1425 = vsel %vm1411, %v1343, 0
        %v1428 = vsel %vm1411, %v1345, 0
        %v1431 = vsel %vm1411, %v1347, 0
        %v1434 = vsel %vm1411, %v1349, 0
        %v1437 = vsel %vm1411, %v1351, 0
        %v1440 = vsel %vm1411, %v1353, 0
        %v1443 = vsel %vm1411, %v1355, 0
        %v1446 = vsel %vm1411, %v1357, 0
        %v1449 = vsel %vm1411, %v1359, 0
        %v1452 = vsel %vm1411, %v1361, 0
        %v1455 = vsel %vm1411, %v1363, 0
        %v1458 = vsel %vm1411, %v1365, 0
        %v1461 = vsel %vm1411, %v1367, 0
        %v1464 = vsel %vm1411, %v1369, 0
        %v1467 = vsel %vm1411, %v1371, 0
        %v1470 = vsel %vm1411, %v1373, 0
        %v1473 = vsel %vm1411, %v1375, 0
        %v1476 = vsel %vm1411, %v1377, 0
        %v1479 = vsel %vm1411, %v1379, 0
        %v1482 = vsel %vm1411, %v1381, 0
        %v1485 = vsel %vm1411, %v1383, 0
        %v1488 = vsel %vm1411, %v1385, 0
        %v1491 = vsel %vm1411, %v1387, 0
        %v1494 = vsel %vm1411, %v1389, 0
        %v1497 = vsel %vm1411, %v1391, 0
        %v1500 = vsel %vm1411, %v1393, 0
        %v1503 = vsel %vm1411, %v1395, 0
        %v1506 = vsel %vm1411, %v1397, 0
        %1508 = vmatpush.msra.mxu0 0.0
        %1509 = vmatpush.msra.mxu0 0.0
        %1510 = vmatpush.msra.mxu0 0.0
        %1511 = vmatpush.msra.mxu0 0.0
        %1512 = vmatpush.msra.mxu0 0.0
        %1513 = vmatpush.msra.mxu0 0.0
        %1514 = vmatpush.msra.mxu0 0.0
        %1515 = vmatpush.msra.mxu0 0.0
        %1516 = vmatpush.msra.mxu0 0.0
        %1517 = vmatpush.msra.mxu0 0.0
        %1518 = vmatpush.msra.mxu0 0.0
        %1519 = vmatpush.msra.mxu0 0.0
        %1520 = vmatpush.msra.mxu0 0.0
        %1521 = vmatpush.msra.mxu0 0.0
        %1522 = vmatpush.msra.mxu0 %v1399
        %1523 = vmatpush.msra.mxu0 %v1398
        %1524 = vmatmul.f32.gmra.mxu0 %v1413
        %v1525 = vpop.f32.mrf.mxu0
        %v1526 = vadd.f32 %v1410, %v1525
        %1527 = vmatmul.f32.gmra.mxu0 %v1416
        %v1528 = vpop.f32.mrf.mxu0
        %v1529 = vadd.f32 %v1410, %v1528
        %1530 = vmatmul.f32.gmra.mxu0 %v1419
        %v1531 = vpop.f32.mrf.mxu0
        %v1532 = vadd.f32 %v1410, %v1531
        %1533 = vmatmul.f32.gmra.mxu0 %v1422
        %v1534 = vpop.f32.mrf.mxu0
        %v1535 = vadd.f32 %v1410, %v1534
        %1536 = vmatmul.f32.gmra.mxu0 %v1425
        %v1537 = vpop.f32.mrf.mxu0
        %v1538 = vadd.f32 %v1410, %v1537
        %1539 = vmatmul.f32.gmra.mxu0 %v1428
        %v1540 = vpop.f32.mrf.mxu0
        %v1541 = vadd.f32 %v1410, %v1540
        %1542 = vmatmul.f32.gmra.mxu0 %v1431
        %v1543 = vpop.f32.mrf.mxu0
        %v1544 = vadd.f32 %v1410, %v1543
        %1545 = vmatmul.f32.gmra.mxu0 %v1434
        %v1546 = vpop.f32.mrf.mxu0
        %v1547 = vadd.f32 %v1410, %v1546
        %1548 = vmatmul.f32.gmra.mxu0 %v1437
        %v1549 = vpop.f32.mrf.mxu0
        %v1550 = vadd.f32 %v1410, %v1549
        %1551 = vmatmul.f32.gmra.mxu0 %v1440
        %v1552 = vpop.f32.mrf.mxu0
        %v1553 = vadd.f32 %v1410, %v1552
        %1554 = vmatmul.f32.gmra.mxu0 %v1443
        %v1555 = vpop.f32.mrf.mxu0
        %v1556 = vadd.f32 %v1410, %v1555
        %1557 = vmatmul.f32.gmra.mxu0 %v1446
        %v1558 = vpop.f32.mrf.mxu0
        %v1559 = vadd.f32 %v1410, %v1558
        %1560 = vmatmul.f32.gmra.mxu0 %v1449
        %v1561 = vpop.f32.mrf.mxu0
        %v1562 = vadd.f32 %v1410, %v1561
        %1563 = vmatmul.f32.gmra.mxu0 %v1452
        %v1564 = vpop.f32.mrf.mxu0
        %v1565 = vadd.f32 %v1410, %v1564
        %1566 = vmatmul.f32.gmra.mxu0 %v1455
        %v1567 = vpop.f32.mrf.mxu0
        %v1568 = vadd.f32 %v1410, %v1567
        %1569 = vmatmul.f32.gmra.mxu0 %v1458
        %v1570 = vpop.f32.mrf.mxu0
        %v1571 = vadd.f32 %v1410, %v1570
        %1572 = vmatmul.f32.gmra.mxu0 %v1461
        %v1573 = vpop.f32.mrf.mxu0
        %v1574 = vadd.f32 %v1410, %v1573
        %1575 = vmatmul.f32.gmra.mxu0 %v1464
        %v1576 = vpop.f32.mrf.mxu0
        %v1577 = vadd.f32 %v1410, %v1576
        %1578 = vmatmul.f32.gmra.mxu0 %v1467
        %v1579 = vpop.f32.mrf.mxu0
        %v1580 = vadd.f32 %v1410, %v1579
        %1581 = vmatmul.f32.gmra.mxu0 %v1470
        %v1582 = vpop.f32.mrf.mxu0
        %v1583 = vadd.f32 %v1410, %v1582
        %1584 = vmatmul.f32.gmra.mxu0 %v1473
        %v1585 = vpop.f32.mrf.mxu0
        %v1586 = vadd.f32 %v1410, %v1585
        %1587 = vmatmul.f32.gmra.mxu0 %v1476
        %v1588 = vpop.f32.mrf.mxu0
        %v1589 = vadd.f32 %v1410, %v1588
        %1590 = vmatmul.f32.gmra.mxu0 %v1479
        %v1591 = vpop.f32.mrf.mxu0
        %v1592 = vadd.f32 %v1410, %v1591
        %1593 = vmatmul.f32.gmra.mxu0 %v1482
        %v1594 = vpop.f32.mrf.mxu0
        %v1595 = vadd.f32 %v1410, %v1594
        %1596 = vmatmul.f32.gmra.mxu0 %v1485
        %v1597 = vpop.f32.mrf.mxu0
        %v1598 = vadd.f32 %v1410, %v1597
        %1599 = vmatmul.f32.gmra.mxu0 %v1488
        %v1600 = vpop.f32.mrf.mxu0
        %v1601 = vadd.f32 %v1410, %v1600
        %1602 = vmatmul.f32.gmra.mxu0 %v1491
        %v1603 = vpop.f32.mrf.mxu0
        %v1604 = vadd.f32 %v1410, %v1603
        %1605 = vmatmul.f32.gmra.mxu0 %v1494
        %v1606 = vpop.f32.mrf.mxu0
        %v1607 = vadd.f32 %v1410, %v1606
        %1608 = vmatmul.f32.gmra.mxu0 %v1497
        %v1609 = vpop.f32.mrf.mxu0
        %v1610 = vadd.f32 %v1410, %v1609
        %1611 = vmatmul.f32.gmra.mxu0 %v1500
        %v1612 = vpop.f32.mrf.mxu0
        %v1613 = vadd.f32 %v1410, %v1612
        %1614 = vmatmul.f32.gmra.mxu0 %v1503
        %v1615 = vpop.f32.mrf.mxu0
        %v1616 = vadd.f32 %v1410, %v1615
        %1617 = vmatmul.f32.gmra.mxu0 %v1506
        %v1618 = vpop.f32.mrf.mxu0
        %v1619 = vadd.f32 %v1410, %v1618
        %1620 = vdwg.mxu0
        %v1621 = vmul.f32 %v1526, 0.5
        %v1622 = vmul.f32 %v1529, 0.5
        %v1623 = vmul.f32 %v1532, 0.5
        %v1624 = vmul.f32 %v1535, 0.5
        %v1625 = vmul.f32 %v1538, 0.5
        %v1626 = vmul.f32 %v1541, 0.5
        %v1627 = vmul.f32 %v1544, 0.5
        %v1628 = vmul.f32 %v1547, 0.5
        %v1629 = vmul.f32 %v1550, 0.5
        %v1630 = vmul.f32 %v1553, 0.5
        %v1631 = vmul.f32 %v1556, 0.5
        %v1632 = vmul.f32 %v1559, 0.5
        %v1633 = vmul.f32 %v1562, 0.5
        %v1634 = vmul.f32 %v1565, 0.5
        %v1635 = vmul.f32 %v1568, 0.5
        %v1636 = vmul.f32 %v1571, 0.5
        %v1637 = vmul.f32 %v1574, 0.5
        %v1638 = vmul.f32 %v1577, 0.5
        %v1639 = vmul.f32 %v1580, 0.5
        %v1640 = vmul.f32 %v1583, 0.5
        %v1641 = vmul.f32 %v1586, 0.5
        %v1642 = vmul.f32 %v1589, 0.5
        %v1643 = vmul.f32 %v1592, 0.5
        %v1644 = vmul.f32 %v1595, 0.5
        %v1645 = vmul.f32 %v1598, 0.5
        %v1646 = vmul.f32 %v1601, 0.5
        %v1647 = vmul.f32 %v1604, 0.5
        %v1648 = vmul.f32 %v1607, 0.5
        %v1649 = vmul.f32 %v1610, 0.5
        %v1650 = vmul.f32 %v1613, 0.5
        %v1651 = vmul.f32 %v1616, 0.5
        %v1652 = vmul.f32 %v1619, 0.5
        %v1653 = vmul.f32 %v1526, 0.044715
        %v1654 = vmul.f32 %v1529, 0.044715
        %v1655 = vmul.f32 %v1532, 0.044715
        %v1656 = vmul.f32 %v1535, 0.044715
        %v1657 = vmul.f32 %v1538, 0.044715
        %v1658 = vmul.f32 %v1541, 0.044715
        %v1659 = vmul.f32 %v1544, 0.044715
        %v1660 = vmul.f32 %v1547, 0.044715
        %v1661 = vmul.f32 %v1550, 0.044715
        %v1662 = vmul.f32 %v1553, 0.044715
        %v1663 = vmul.f32 %v1556, 0.044715
        %v1664 = vmul.f32 %v1559, 0.044715
        %v1665 = vmul.f32 %v1562, 0.044715
        %v1666 = vmul.f32 %v1565, 0.044715
        %v1667 = vmul.f32 %v1568, 0.044715
        %v1668 = vmul.f32 %v1571, 0.044715
        %v1669 = vmul.f32 %v1574, 0.044715
        %v1670 = vmul.f32 %v1577, 0.044715
        %v1671 = vmul.f32 %v1580, 0.044715
        %v1672 = vmul.f32 %v1583, 0.044715
        %v1673 = vmul.f32 %v1586, 0.044715
        %v1674 = vmul.f32 %v1589, 0.044715
        %v1675 = vmul.f32 %v1592, 0.044715
        %v1676 = vmul.f32 %v1595, 0.044715
        %v1677 = vmul.f32 %v1598, 0.044715
        %v1678 = vmul.f32 %v1601, 0.044715
        %v1679 = vmul.f32 %v1604, 0.044715
        %v1680 = vmul.f32 %v1607, 0.044715
        %v1681 = vmul.f32 %v1610, 0.044715
        %v1682 = vmul.f32 %v1613, 0.044715
        %v1683 = vmul.f32 %v1616, 0.044715
        %v1684 = vmul.f32 %v1619, 0.044715
        %v1685 = vmul.f32 %v1653, %v1526
        %v1686 = vmul.f32 %v1654, %v1529
        %v1687 = vmul.f32 %v1655, %v1532
        %v1688 = vmul.f32 %v1656, %v1535
        %v1689 = vmul.f32 %v1657, %v1538
        %v1690 = vmul.f32 %v1658, %v1541
        %v1691 = vmul.f32 %v1659, %v1544
        %v1692 = vmul.f32 %v1660, %v1547
        %v1693 = vmul.f32 %v1661, %v1550
        %v1694 = vmul.f32 %v1662, %v1553
        %v1695 = vmul.f32 %v1663, %v1556
        %v1696 = vmul.f32 %v1664, %v1559
        %v1697 = vmul.f32 %v1665, %v1562
        %v1698 = vmul.f32 %v1666, %v1565
        %v1699 = vmul.f32 %v1667, %v1568
        %v1700 = vmul.f32 %v1668, %v1571
        %v1701 = vmul.f32 %v1669, %v1574
        %v1702 = vmul.f32 %v1670, %v1577
        %v1703 = vmul.f32 %v1671, %v1580
        %v1704 = vmul.f32 %v1672, %v1583
        %v1705 = vmul.f32 %v1673, %v1586
        %v1706 = vmul.f32 %v1674, %v1589
        %v1707 = vmul.f32 %v1675, %v1592
        %v1708 = vmul.f32 %v1676, %v1595
        %v1709 = vmul.f32 %v1677, %v1598
        %v1710 = vmul.f32 %v1678, %v1601
        %v1711 = vmul.f32 %v1679, %v1604
        %v1712 = vmul.f32 %v1680, %v1607
        %v1713 = vmul.f32 %v1681, %v1610
        %v1714 = vmul.f32 %v1682, %v1613
        %v1715 = vmul.f32 %v1683, %v1616
        %v1716 = vmul.f32 %v1684, %v1619
        %v1717 = vmul.f32 %v1685, %v1526
        %v1718 = vmul.f32 %v1686, %v1529
        %v1719 = vmul.f32 %v1687, %v1532
        %v1720 = vmul.f32 %v1688, %v1535
        %v1721 = vmul.f32 %v1689, %v1538
        %v1722 = vmul.f32 %v1690, %v1541
        %v1723 = vmul.f32 %v1691, %v1544
        %v1724 = vmul.f32 %v1692, %v1547
        %v1725 = vmul.f32 %v1693, %v1550
        %v1726 = vmul.f32 %v1694, %v1553
        %v1727 = vmul.f32 %v1695, %v1556
        %v1728 = vmul.f32 %v1696, %v1559
        %v1729 = vmul.f32 %v1697, %v1562
        %v1730 = vmul.f32 %v1698, %v1565
        %v1731 = vmul.f32 %v1699, %v1568
        %v1732 = vmul.f32 %v1700, %v1571
        %v1733 = vmul.f32 %v1701, %v1574
        %v1734 = vmul.f32 %v1702, %v1577
        %v1735 = vmul.f32 %v1703, %v1580
        %v1736 = vmul.f32 %v1704, %v1583
        %v1737 = vmul.f32 %v1705, %v1586
        %v1738 = vmul.f32 %v1706, %v1589
        %v1739 = vmul.f32 %v1707, %v1592
        %v1740 = vmul.f32 %v1708, %v1595
        %v1741 = vmul.f32 %v1709, %v1598
        %v1742 = vmul.f32 %v1710, %v1601
        %v1743 = vmul.f32 %v1711, %v1604
        %v1744 = vmul.f32 %v1712, %v1607
        %v1745 = vmul.f32 %v1713, %v1610
        %v1746 = vmul.f32 %v1714, %v1613
        %v1747 = vmul.f32 %v1715, %v1616
        %v1748 = vmul.f32 %v1716, %v1619
        %v1749 = vadd.f32 %v1526, %v1717
        %v1750 = vadd.f32 %v1529, %v1718
        %v1751 = vadd.f32 %v1532, %v1719
        %v1752 = vadd.f32 %v1535, %v1720
        %v1753 = vadd.f32 %v1538, %v1721
        %v1754 = vadd.f32 %v1541, %v1722
        %v1755 = vadd.f32 %v1544, %v1723
        %v1756 = vadd.f32 %v1547, %v1724
        %v1757 = vadd.f32 %v1550, %v1725
        %v1758 = vadd.f32 %v1553, %v1726
        %v1759 = vadd.f32 %v1556, %v1727
        %v1760 = vadd.f32 %v1559, %v1728
        %v1761 = vadd.f32 %v1562, %v1729
        %v1762 = vadd.f32 %v1565, %v1730
        %v1763 = vadd.f32 %v1568, %v1731
        %v1764 = vadd.f32 %v1571, %v1732
        %v1765 = vadd.f32 %v1574, %v1733
        %v1766 = vadd.f32 %v1577, %v1734
        %v1767 = vadd.f32 %v1580, %v1735
        %v1768 = vadd.f32 %v1583, %v1736
        %v1769 = vadd.f32 %v1586, %v1737
        %v1770 = vadd.f32 %v1589, %v1738
        %v1771 = vadd.f32 %v1592, %v1739
        %v1772 = vadd.f32 %v1595, %v1740
        %v1773 = vadd.f32 %v1598, %v1741
        %v1774 = vadd.f32 %v1601, %v1742
        %v1775 = vadd.f32 %v1604, %v1743
        %v1776 = vadd.f32 %v1607, %v1744
        %v1777 = vadd.f32 %v1610, %v1745
        %v1778 = vadd.f32 %v1613, %v1746
        %v1779 = vadd.f32 %v1616, %v1747
        %v1780 = vadd.f32 %v1619, %v1748
        %v1781 = vmul.f32 %v1749, 0.7978846
        %v1782 = vmul.f32 %v1750, 0.7978846
        %v1783 = vmul.f32 %v1751, 0.7978846
        %v1784 = vmul.f32 %v1752, 0.7978846
        %v1785 = vmul.f32 %v1753, 0.7978846
        %v1786 = vmul.f32 %v1754, 0.7978846
        %v1787 = vmul.f32 %v1755, 0.7978846
        %v1788 = vmul.f32 %v1756, 0.7978846
        %v1789 = vmul.f32 %v1757, 0.7978846
        %v1790 = vmul.f32 %v1758, 0.7978846
        %v1791 = vmul.f32 %v1759, 0.7978846
        %v1792 = vmul.f32 %v1760, 0.7978846
        %v1793 = vmul.f32 %v1761, 0.7978846
        %v1794 = vmul.f32 %v1762, 0.7978846
        %v1795 = vmul.f32 %v1763, 0.7978846
        %v1796 = vmul.f32 %v1764, 0.7978846
        %v1797 = vmul.f32 %v1765, 0.7978846
        %v1798 = vmul.f32 %v1766, 0.7978846
        %v1799 = vmul.f32 %v1767, 0.7978846
        %v1800 = vmul.f32 %v1768, 0.7978846
        %v1801 = vmul.f32 %v1769, 0.7978846
        %v1802 = vmul.f32 %v1770, 0.7978846
        %v1803 = vmul.f32 %v1771, 0.7978846
        %v1804 = vmul.f32 %v1772, 0.7978846
        %v1805 = vmul.f32 %v1773, 0.7978846
        %v1806 = vmul.f32 %v1774, 0.7978846
        %v1807 = vmul.f32 %v1775, 0.7978846
        %v1808 = vmul.f32 %v1776, 0.7978846
        %v1809 = vmul.f32 %v1777, 0.7978846
        %v1810 = vmul.f32 %v1778, 0.7978846
        %v1811 = vmul.f32 %v1779, 0.7978846
        %v1812 = vmul.f32 %v1780, 0.7978846
        %v1813 = vtanh.pop %v1781
        %v1814 = vtanh.pop %v1782
        %v1815 = vtanh.pop %v1783
        %v1816 = vtanh.pop %v1784
        %v1817 = vtanh.pop %v1785
        %v1818 = vtanh.pop %v1786
        %v1819 = vtanh.pop %v1787
        %v1820 = vtanh.pop %v1788
        %v1821 = vtanh.pop %v1789
        %v1822 = vtanh.pop %v1790
        %v1823 = vtanh.pop %v1791
        %v1824 = vtanh.pop %v1792
        %v1825 = vtanh.pop %v1793
        %v1826 = vtanh.pop %v1794
        %v1827 = vtanh.pop %v1795
        %v1828 = vtanh.pop %v1796
        %v1829 = vtanh.pop %v1797
        %v1830 = vtanh.pop %v1798
        %v1831 = vtanh.pop %v1799
        %v1832 = vtanh.pop %v1800
        %v1833 = vtanh.pop %v1801
        %v1834 = vtanh.pop %v1802
        %v1835 = vtanh.pop %v1803
        %v1836 = vtanh.pop %v1804
        %v1837 = vtanh.pop %v1805
        %v1838 = vtanh.pop %v1806
        %v1839 = vtanh.pop %v1807
        %v1840 = vtanh.pop %v1808
        %v1841 = vtanh.pop %v1809
        %v1842 = vtanh.pop %v1810
        %v1843 = vtanh.pop %v1811
        %v1844 = vtanh.pop %v1812
        %v1845 = vadd.f32 %v1813, 1.0
        %v1846 = vadd.f32 %v1814, 1.0
        %v1847 = vadd.f32 %v1815, 1.0
        %v1848 = vadd.f32 %v1816, 1.0
        %v1849 = vadd.f32 %v1817, 1.0
        %v1850 = vadd.f32 %v1818, 1.0
        %v1851 = vadd.f32 %v1819, 1.0
        %v1852 = vadd.f32 %v1820, 1.0
        %v1853 = vadd.f32 %v1821, 1.0
        %v1854 = vadd.f32 %v1822, 1.0
        %v1855 = vadd.f32 %v1823, 1.0
        %v1856 = vadd.f32 %v1824, 1.0
        %v1857 = vadd.f32 %v1825, 1.0
        %v1858 = vadd.f32 %v1826, 1.0
        %v1859 = vadd.f32 %v1827, 1.0
        %v1860 = vadd.f32 %v1828, 1.0
        %v1861 = vadd.f32 %v1829, 1.0
        %v1862 = vadd.f32 %v1830, 1.0
        %v1863 = vadd.f32 %v1831, 1.0
        %v1864 = vadd.f32 %v1832, 1.0
        %v1865 = vadd.f32 %v1833, 1.0
        %v1866 = vadd.f32 %v1834, 1.0
        %v1867 = vadd.f32 %v1835, 1.0
        %v1868 = vadd.f32 %v1836, 1.0
        %v1869 = vadd.f32 %v1837, 1.0
        %v1870 = vadd.f32 %v1838, 1.0
        %v1871 = vadd.f32 %v1839, 1.0
        %v1872 = vadd.f32 %v1840, 1.0
        %v1873 = vadd.f32 %v1841, 1.0
        %v1874 = vadd.f32 %v1842, 1.0
        %v1875 = vadd.f32 %v1843, 1.0
        %v1876 = vadd.f32 %v1844, 1.0
        %v1877 = vmul.f32 %v1621, %v1845
        %v1878 = vmul.f32 %v1622, %v1846
        %v1879 = vmul.f32 %v1623, %v1847
        %v1880 = vmul.f32 %v1624, %v1848
        %v1881 = vmul.f32 %v1625, %v1849
        %v1882 = vmul.f32 %v1626, %v1850
        %v1883 = vmul.f32 %v1627, %v1851
        %v1884 = vmul.f32 %v1628, %v1852
        %v1885 = vmul.f32 %v1629, %v1853
        %v1886 = vmul.f32 %v1630, %v1854
        %v1887 = vmul.f32 %v1631, %v1855
        %v1888 = vmul.f32 %v1632, %v1856
        %v1889 = vmul.f32 %v1633, %v1857
        %v1890 = vmul.f32 %v1634, %v1858
        %v1891 = vmul.f32 %v1635, %v1859
        %v1892 = vmul.f32 %v1636, %v1860
        %v1893 = vmul.f32 %v1637, %v1861
        %v1894 = vmul.f32 %v1638, %v1862
        %v1895 = vmul.f32 %v1639, %v1863
        %v1896 = vmul.f32 %v1640, %v1864
        %v1897 = vmul.f32 %v1641, %v1865
        %v1898 = vmul.f32 %v1642, %v1866
        %v1899 = vmul.f32 %v1643, %v1867
        %v1900 = vmul.f32 %v1644, %v1868
        %v1901 = vmul.f32 %v1645, %v1869
        %v1902 = vmul.f32 %v1646, %v1870
        %v1903 = vmul.f32 %v1647, %v1871
        %v1904 = vmul.f32 %v1648, %v1872
        %v1905 = vmul.f32 %v1649, %v1873
        %v1906 = vmul.f32 %v1650, %v1874
        %v1907 = vmul.f32 %v1651, %v1875
        %v1908 = vmul.f32 %v1652, %v1876
        %v1909 = vld [vmem:[%s326] sm:$0xff]
        %v1910 = vld [vmem:[%s326 + $0x8] sm:$0xff]
        %v1911 = vld [vmem:[%s326 + $0x10] sm:$0xff]
        %v1912 = vld [vmem:[%s326 + $0x18] sm:$0xff]
        %v1913 = vld [vmem:[%s326 + $0x20] sm:$0xff]
        %v1914 = vld [vmem:[%s326 + $0x28] sm:$0xff]
        %v1915 = vld [vmem:[%s326 + $0x30] sm:$0xff]
        %v1916 = vld [vmem:[%s326 + $0x38] sm:$0xff]
        %v1917 = vld [vmem:[%s326 + $0x40] sm:$0xff]
        %v1918 = vld [vmem:[%s326 + $0x48] sm:$0xff]
        %v1919 = vld [vmem:[%s326 + $0x50] sm:$0xff]
        %v1920 = vld [vmem:[%s326 + $0x58] sm:$0xff]
        %v1921 = vld [vmem:[%s326 + $0x60] sm:$0xff]
        %v1922 = vld [vmem:[%s326 + $0x68] sm:$0xff]
        %v1923 = vld [vmem:[%s326 + $0x70] sm:$0xff]
        %v1924 = vld [vmem:[%s326 + $0x78] sm:$0xff]
        %v1925 = vld [vmem:[%s326 + $0x80] sm:$0xff]
        %v1926 = vld [vmem:[%s326 + $0x88] sm:$0xff]
        %v1927 = vld [vmem:[%s326 + $0x90] sm:$0xff]
        %v1928 = vld [vmem:[%s326 + $0x98] sm:$0xff]
        %v1929 = vld [vmem:[%s326 + $0xa0] sm:$0xff]
        %v1930 = vld [vmem:[%s326 + $0xa8] sm:$0xff]
        %v1931 = vld [vmem:[%s326 + $0xb0] sm:$0xff]
        %v1932 = vld [vmem:[%s326 + $0xb8] sm:$0xff]
        %v1933 = vld [vmem:[%s326 + $0xc0] sm:$0xff]
        %v1934 = vld [vmem:[%s326 + $0xc8] sm:$0xff]
        %v1935 = vld [vmem:[%s326 + $0xd0] sm:$0xff]
        %v1936 = vld [vmem:[%s326 + $0xd8] sm:$0xff]
        %v1937 = vld [vmem:[%s326 + $0xe0] sm:$0xff]
        %v1938 = vld [vmem:[%s326 + $0xe8] sm:$0xff]
        %v1939 = vld [vmem:[%s326 + $0xf0] sm:$0xff]
        %v1940 = vld [vmem:[%s326 + $0xf8] sm:$0xff]
        %vm1941 = vcmask 64512
        %v1943 = vsel %vm1941, %v1909, 0
        %v1946 = vsel %vm1941, %v1910, 0
        %v1949 = vsel %vm1941, %v1911, 0
        %v1952 = vsel %vm1941, %v1912, 0
        %v1955 = vsel %vm1941, %v1913, 0
        %v1958 = vsel %vm1941, %v1914, 0
        %v1961 = vsel %vm1941, %v1915, 0
        %v1964 = vsel %vm1941, %v1916, 0
        %v1967 = vsel %vm1941, %v1917, 0
        %v1970 = vsel %vm1941, %v1918, 0
        %v1973 = vsel %vm1941, %v1919, 0
        %v1976 = vsel %vm1941, %v1920, 0
        %v1979 = vsel %vm1941, %v1921, 0
        %v1982 = vsel %vm1941, %v1922, 0
        %v1985 = vsel %vm1941, %v1923, 0
        %v1988 = vsel %vm1941, %v1924, 0
        %v1991 = vsel %vm1941, %v1925, 0
        %v1994 = vsel %vm1941, %v1926, 0
        %v1997 = vsel %vm1941, %v1927, 0
        %v2000 = vsel %vm1941, %v1928, 0
        %v2003 = vsel %vm1941, %v1929, 0
        %v2006 = vsel %vm1941, %v1930, 0
        %v2009 = vsel %vm1941, %v1931, 0
        %v2012 = vsel %vm1941, %v1932, 0
        %v2015 = vsel %vm1941, %v1933, 0
        %v2018 = vsel %vm1941, %v1934, 0
        %v2021 = vsel %vm1941, %v1935, 0
        %v2024 = vsel %vm1941, %v1936, 0
        %v2027 = vsel %vm1941, %v1937, 0
        %v2030 = vsel %vm1941, %v1938, 0
        %v2033 = vsel %vm1941, %v1939, 0
        %v2036 = vsel %vm1941, %v1940, 0
        %2038 = vmatpush.msra.mxu0 0.0
        %2039 = vmatpush.msra.mxu0 0.0
        %2040 = vmatpush.msra.mxu0 0.0
        %2041 = vmatpush.msra.mxu0 0.0
        %2042 = vmatpush.msra.mxu0 0.0
        %2043 = vmatpush.msra.mxu0 0.0
        %2044 = vmatpush.msra.mxu0 0.0
        %2045 = vmatpush.msra.mxu0 0.0
        %2046 = vmatpush.msra.mxu0 0.0
        %2047 = vmatpush.msra.mxu0 0.0
        %2048 = vmatpush.msra.mxu0 0.0
        %2049 = vmatpush.msra.mxu0 0.0
        %2050 = vmatpush.msra.mxu0 0.0
        %2051 = vmatpush.msra.mxu0 0.0
        %2052 = vmatpush.msra.mxu0 0.0
        %2053 = vmatpush.msra.mxu0 %v1404
        %2054 = vmatmul.f32.gmra.mxu0 %v1943
        %v2055 = vpop.f32.mrf.mxu0
        %v2056 = vadd.f32 0.0, %v2055
        %2057 = vmatmul.f32.gmra.mxu0 %v1946
        %v2058 = vpop.f32.mrf.mxu0
        %v2059 = vadd.f32 0.0, %v2058
        %2060 = vmatmul.f32.gmra.mxu0 %v1949
        %v2061 = vpop.f32.mrf.mxu0
        %v2062 = vadd.f32 0.0, %v2061
        %2063 = vmatmul.f32.gmra.mxu0 %v1952
        %v2064 = vpop.f32.mrf.mxu0
        %v2065 = vadd.f32 0.0, %v2064
        %2066 = vmatmul.f32.gmra.mxu0 %v1955
        %v2067 = vpop.f32.mrf.mxu0
        %v2068 = vadd.f32 0.0, %v2067
        %2069 = vmatmul.f32.gmra.mxu0 %v1958
        %v2070 = vpop.f32.mrf.mxu0
        %v2071 = vadd.f32 0.0, %v2070
        %2072 = vmatmul.f32.gmra.mxu0 %v1961
        %v2073 = vpop.f32.mrf.mxu0
        %v2074 = vadd.f32 0.0, %v2073
        %2075 = vmatmul.f32.gmra.mxu0 %v1964
        %v2076 = vpop.f32.mrf.mxu0
        %v2077 = vadd.f32 0.0, %v2076
        %2078 = vmatmul.f32.gmra.mxu0 %v1967
        %v2079 = vpop.f32.mrf.mxu0
        %v2080 = vadd.f32 0.0, %v2079
        %2081 = vmatmul.f32.gmra.mxu0 %v1970
        %v2082 = vpop.f32.mrf.mxu0
        %v2083 = vadd.f32 0.0, %v2082
        %2084 = vmatmul.f32.gmra.mxu0 %v1973
        %v2085 = vpop.f32.mrf.mxu0
        %v2086 = vadd.f32 0.0, %v2085
        %2087 = vmatmul.f32.gmra.mxu0 %v1976
        %v2088 = vpop.f32.mrf.mxu0
        %v2089 = vadd.f32 0.0, %v2088
        %2090 = vmatmul.f32.gmra.mxu0 %v1979
        %v2091 = vpop.f32.mrf.mxu0
        %v2092 = vadd.f32 0.0, %v2091
        %2093 = vmatmul.f32.gmra.mxu0 %v1982
        %v2094 = vpop.f32.mrf.mxu0
        %v2095 = vadd.f32 0.0, %v2094
        %2096 = vmatmul.f32.gmra.mxu0 %v1985
        %v2097 = vpop.f32.mrf.mxu0
        %v2098 = vadd.f32 0.0, %v2097
        %2099 = vmatmul.f32.gmra.mxu0 %v1988
        %v2100 = vpop.f32.mrf.mxu0
        %v2101 = vadd.f32 0.0, %v2100
        %2102 = vmatmul.f32.gmra.mxu0 %v1991
        %v2103 = vpop.f32.mrf.mxu0
        %v2104 = vadd.f32 0.0, %v2103
        %2105 = vmatmul.f32.gmra.mxu0 %v1994
        %v2106 = vpop.f32.mrf.mxu0
        %v2107 = vadd.f32 0.0, %v2106
        %2108 = vmatmul.f32.gmra.mxu0 %v1997
        %v2109 = vpop.f32.mrf.mxu0
        %v2110 = vadd.f32 0.0, %v2109
        %2111 = vmatmul.f32.gmra.mxu0 %v2000
        %v2112 = vpop.f32.mrf.mxu0
        %v2113 = vadd.f32 0.0, %v2112
        %2114 = vmatmul.f32.gmra.mxu0 %v2003
        %v2115 = vpop.f32.mrf.mxu0
        %v2116 = vadd.f32 0.0, %v2115
        %2117 = vmatmul.f32.gmra.mxu0 %v2006
        %v2118 = vpop.f32.mrf.mxu0
        %v2119 = vadd.f32 0.0, %v2118
        %2120 = vmatmul.f32.gmra.mxu0 %v2009
        %v2121 = vpop.f32.mrf.mxu0
        %v2122 = vadd.f32 0.0, %v2121
        %2123 = vmatmul.f32.gmra.mxu0 %v2012
        %v2124 = vpop.f32.mrf.mxu0
        %v2125 = vadd.f32 0.0, %v2124
        %2126 = vmatmul.f32.gmra.mxu0 %v2015
        %v2127 = vpop.f32.mrf.mxu0
        %v2128 = vadd.f32 0.0, %v2127
        %2129 = vmatmul.f32.gmra.mxu0 %v2018
        %v2130 = vpop.f32.mrf.mxu0
        %v2131 = vadd.f32 0.0, %v2130
        %2132 = vmatmul.f32.gmra.mxu0 %v2021
        %v2133 = vpop.f32.mrf.mxu0
        %v2134 = vadd.f32 0.0, %v2133
        %2135 = vmatmul.f32.gmra.mxu0 %v2024
        %v2136 = vpop.f32.mrf.mxu0
        %v2137 = vadd.f32 0.0, %v2136
        %2138 = vmatmul.f32.gmra.mxu0 %v2027
        %v2139 = vpop.f32.mrf.mxu0
        %v2140 = vadd.f32 0.0, %v2139
        %2141 = vmatmul.f32.gmra.mxu0 %v2030
        %v2142 = vpop.f32.mrf.mxu0
        %v2143 = vadd.f32 0.0, %v2142
        %2144 = vmatmul.f32.gmra.mxu0 %v2033
        %v2145 = vpop.f32.mrf.mxu0
        %v2146 = vadd.f32 0.0, %v2145
        %2147 = vmatmul.f32.gmra.mxu0 %v2036
        %v2148 = vpop.f32.mrf.mxu0
        %v2149 = vadd.f32 0.0, %v2148
        %2150 = vdwg.mxu0
        %vm2151 = vcmask 261120
        %v2153 = vsel %vm2151, %v1877, 0
        %v2156 = vsel %vm2151, %v1878, 0
        %v2159 = vsel %vm2151, %v1879, 0
        %v2162 = vsel %vm2151, %v1880, 0
        %v2165 = vsel %vm2151, %v1881, 0
        %v2168 = vsel %vm2151, %v1882, 0
        %v2171 = vsel %vm2151, %v1883, 0
        %v2174 = vsel %vm2151, %v1884, 0
        %v2177 = vsel %vm2151, %v1885, 0
        %v2180 = vsel %vm2151, %v1886, 0
        %v2183 = vsel %vm2151, %v1887, 0
        %v2186 = vsel %vm2151, %v1888, 0
        %v2189 = vsel %vm2151, %v1889, 0
        %v2192 = vsel %vm2151, %v1890, 0
        %v2195 = vsel %vm2151, %v1891, 0
        %v2198 = vsel %vm2151, %v1892, 0
        %v2201 = vsel %vm2151, %v1893, 0
        %v2204 = vsel %vm2151, %v1894, 0
        %v2207 = vsel %vm2151, %v1895, 0
        %v2210 = vsel %vm2151, %v1896, 0
        %v2213 = vsel %vm2151, %v1897, 0
        %v2216 = vsel %vm2151, %v1898, 0
        %v2219 = vsel %vm2151, %v1899, 0
        %v2222 = vsel %vm2151, %v1900, 0
        %v2225 = vsel %vm2151, %v1901, 0
        %v2228 = vsel %vm2151, %v1902, 0
        %v2231 = vsel %vm2151, %v1903, 0
        %v2234 = vsel %vm2151, %v1904, 0
        %v2237 = vsel %vm2151, %v1905, 0
        %v2240 = vsel %vm2151, %v1906, 0
        %v2243 = vsel %vm2151, %v1907, 0
        %v2246 = vsel %vm2151, %v1908, 0
        %2248 = vmatpush.msra.mxu0 0.0
        %2249 = vmatpush.msra.mxu0 0.0
        %2250 = vmatpush.msra.mxu0 0.0
        %2251 = vmatpush.msra.mxu0 0.0
        %2252 = vmatpush.msra.mxu0 0.0
        %2253 = vmatpush.msra.mxu0 0.0
        %2254 = vmatpush.msra.mxu0 0.0
        %2255 = vmatpush.msra.mxu0 0.0
        %2256 = vmatpush.msra.mxu0 0.0
        %2257 = vmatpush.msra.mxu0 0.0
        %2258 = vmatpush.msra.mxu0 0.0
        %2259 = vmatpush.msra.mxu0 0.0
        %2260 = vmatpush.msra.mxu0 %v1403
        %2261 = vmatpush.msra.mxu0 %v1402
        %2262 = vmatpush.msra.mxu0 %v1401
        %2263 = vmatpush.msra.mxu0 %v1400
        %2264 = vmatmul.f32.gmra.mxu0 %v2153
        %v2265 = vpop.f32.mrf.mxu0
        %v2266 = vadd.f32 %v2056, %v2265
        %2267 = vmatmul.f32.gmra.mxu0 %v2156
        %v2268 = vpop.f32.mrf.mxu0
        %v2269 = vadd.f32 %v2059, %v2268
        %2270 = vmatmul.f32.gmra.mxu0 %v2159
        %v2271 = vpop.f32.mrf.mxu0
        %v2272 = vadd.f32 %v2062, %v2271
        %2273 = vmatmul.f32.gmra.mxu0 %v2162
        %v2274 = vpop.f32.mrf.mxu0
        %v2275 = vadd.f32 %v2065, %v2274
        %2276 = vmatmul.f32.gmra.mxu0 %v2165
        %v2277 = vpop.f32.mrf.mxu0
        %v2278 = vadd.f32 %v2068, %v2277
        %2279 = vmatmul.f32.gmra.mxu0 %v2168
        %v2280 = vpop.f32.mrf.mxu0
        %v2281 = vadd.f32 %v2071, %v2280
        %2282 = vmatmul.f32.gmra.mxu0 %v2171
        %v2283 = vpop.f32.mrf.mxu0
        %v2284 = vadd.f32 %v2074, %v2283
        %2285 = vmatmul.f32.gmra.mxu0 %v2174
        %v2286 = vpop.f32.mrf.mxu0
        %v2287 = vadd.f32 %v2077, %v2286
        %2288 = vmatmul.f32.gmra.mxu0 %v2177
        %v2289 = vpop.f32.mrf.mxu0
        %v2290 = vadd.f32 %v2080, %v2289
        %2291 = vmatmul.f32.gmra.mxu0 %v2180
        %v2292 = vpop.f32.mrf.mxu0
        %v2293 = vadd.f32 %v2083, %v2292
        %2294 = vmatmul.f32.gmra.mxu0 %v2183
        %v2295 = vpop.f32.mrf.mxu0
        %v2296 = vadd.f32 %v2086, %v2295
        %2297 = vmatmul.f32.gmra.mxu0 %v2186
        %v2298 = vpop.f32.mrf.mxu0
        %v2299 = vadd.f32 %v2089, %v2298
        %2300 = vmatmul.f32.gmra.mxu0 %v2189
        %v2301 = vpop.f32.mrf.mxu0
        %v2302 = vadd.f32 %v2092, %v2301
        %2303 = vmatmul.f32.gmra.mxu0 %v2192
        %v2304 = vpop.f32.mrf.mxu0
        %v2305 = vadd.f32 %v2095, %v2304
        %2306 = vmatmul.f32.gmra.mxu0 %v2195
        %v2307 = vpop.f32.mrf.mxu0
        %v2308 = vadd.f32 %v2098, %v2307
        %2309 = vmatmul.f32.gmra.mxu0 %v2198
        %v2310 = vpop.f32.mrf.mxu0
        %v2311 = vadd.f32 %v2101, %v2310
        %2312 = vmatmul.f32.gmra.mxu0 %v2201
        %v2313 = vpop.f32.mrf.mxu0
        %v2314 = vadd.f32 %v2104, %v2313
        %2315 = vmatmul.f32.gmra.mxu0 %v2204
        %v2316 = vpop.f32.mrf.mxu0
        %v2317 = vadd.f32 %v2107, %v2316
        %2318 = vmatmul.f32.gmra.mxu0 %v2207
        %v2319 = vpop.f32.mrf.mxu0
        %v2320 = vadd.f32 %v2110, %v2319
        %2321 = vmatmul.f32.gmra.mxu0 %v2210
        %v2322 = vpop.f32.mrf.mxu0
        %v2323 = vadd.f32 %v2113, %v2322
        %2324 = vmatmul.f32.gmra.mxu0 %v2213
        %v2325 = vpop.f32.mrf.mxu0
        %v2326 = vadd.f32 %v2116, %v2325
        %2327 = vmatmul.f32.gmra.mxu0 %v2216
        %v2328 = vpop.f32.mrf.mxu0
        %v2329 = vadd.f32 %v2119, %v2328
        %2330 = vmatmul.f32.gmra.mxu0 %v2219
        %v2331 = vpop.f32.mrf.mxu0
        %v2332 = vadd.f32 %v2122, %v2331
        %2333 = vmatmul.f32.gmra.mxu0 %v2222
        %v2334 = vpop.f32.mrf.mxu0
        %v2335 = vadd.f32 %v2125, %v2334
        %2336 = vmatmul.f32.gmra.mxu0 %v2225
        %v2337 = vpop.f32.mrf.mxu0
        %v2338 = vadd.f32 %v2128, %v2337
        %2339 = vmatmul.f32.gmra.mxu0 %v2228
        %v2340 = vpop.f32.mrf.mxu0
        %v2341 = vadd.f32 %v2131, %v2340
        %2342 = vmatmul.f32.gmra.mxu0 %v2231
        %v2343 = vpop.f32.mrf.mxu0
        %v2344 = vadd.f32 %v2134, %v2343
        %2345 = vmatmul.f32.gmra.mxu0 %v2234
        %v2346 = vpop.f32.mrf.mxu0
        %v2347 = vadd.f32 %v2137, %v2346
        %2348 = vmatmul.f32.gmra.mxu0 %v2237
        %v2349 = vpop.f32.mrf.mxu0
        %v2350 = vadd.f32 %v2140, %v2349
        %2351 = vmatmul.f32.gmra.mxu0 %v2240
        %v2352 = vpop.f32.mrf.mxu0
        %v2353 = vadd.f32 %v2143, %v2352
        %2354 = vmatmul.f32.gmra.mxu0 %v2243
        %v2355 = vpop.f32.mrf.mxu0
        %v2356 = vadd.f32 %v2146, %v2355
        %2357 = vmatmul.f32.gmra.mxu0 %v2246
        %v2358 = vpop.f32.mrf.mxu0
        %v2359 = vadd.f32 %v2149, %v2358
        %2360 = vdwg.mxu0
        %v2361 = vperm.slane %v1409, 1
        %v2362 = vadd.f32 %v2266, %v2361
        %v2363 = vadd.f32 %v2269, %v2361
        %v2364 = vadd.f32 %v2272, %v2361
        %v2365 = vadd.f32 %v2275, %v2361
        %v2366 = vadd.f32 %v2278, %v2361
        %v2367 = vadd.f32 %v2281, %v2361
        %v2368 = vadd.f32 %v2284, %v2361
        %v2369 = vadd.f32 %v2287, %v2361
        %v2370 = vadd.f32 %v2290, %v2361
        %v2371 = vadd.f32 %v2293, %v2361
        %v2372 = vadd.f32 %v2296, %v2361
        %v2373 = vadd.f32 %v2299, %v2361
        %v2374 = vadd.f32 %v2302, %v2361
        %v2375 = vadd.f32 %v2305, %v2361
        %v2376 = vadd.f32 %v2308, %v2361
        %v2377 = vadd.f32 %v2311, %v2361
        %v2378 = vadd.f32 %v2314, %v2361
        %v2379 = vadd.f32 %v2317, %v2361
        %v2380 = vadd.f32 %v2320, %v2361
        %v2381 = vadd.f32 %v2323, %v2361
        %v2382 = vadd.f32 %v2326, %v2361
        %v2383 = vadd.f32 %v2329, %v2361
        %v2384 = vadd.f32 %v2332, %v2361
        %v2385 = vadd.f32 %v2335, %v2361
        %v2386 = vadd.f32 %v2338, %v2361
        %v2387 = vadd.f32 %v2341, %v2361
        %v2388 = vadd.f32 %v2344, %v2361
        %v2389 = vadd.f32 %v2347, %v2361
        %v2390 = vadd.f32 %v2350, %v2361
        %v2391 = vadd.f32 %v2353, %v2361
        %v2392 = vadd.f32 %v2356, %v2361
        %v2393 = vadd.f32 %v2359, %v2361
        %v2394 = vmul.f32 %v2362, 0.5
        %v2395 = vmul.f32 %v2363, 0.5
        %v2396 = vmul.f32 %v2364, 0.5
        %v2397 = vmul.f32 %v2365, 0.5
        %v2398 = vmul.f32 %v2366, 0.5
        %v2399 = vmul.f32 %v2367, 0.5
        %v2400 = vmul.f32 %v2368, 0.5
        %v2401 = vmul.f32 %v2369, 0.5
        %v2402 = vmul.f32 %v2370, 0.5
        %v2403 = vmul.f32 %v2371, 0.5
        %v2404 = vmul.f32 %v2372, 0.5
        %v2405 = vmul.f32 %v2373, 0.5
        %v2406 = vmul.f32 %v2374, 0.5
        %v2407 = vmul.f32 %v2375, 0.5
        %v2408 = vmul.f32 %v2376, 0.5
        %v2409 = vmul.f32 %v2377, 0.5
        %v2410 = vmul.f32 %v2378, 0.5
        %v2411 = vmul.f32 %v2379, 0.5
        %v2412 = vmul.f32 %v2380, 0.5
        %v2413 = vmul.f32 %v2381, 0.5
        %v2414 = vmul.f32 %v2382, 0.5
        %v2415 = vmul.f32 %v2383, 0.5
        %v2416 = vmul.f32 %v2384, 0.5
        %v2417 = vmul.f32 %v2385, 0.5
        %v2418 = vmul.f32 %v2386, 0.5
        %v2419 = vmul.f32 %v2387, 0.5
        %v2420 = vmul.f32 %v2388, 0.5
        %v2421 = vmul.f32 %v2389, 0.5
        %v2422 = vmul.f32 %v2390, 0.5
        %v2423 = vmul.f32 %v2391, 0.5
        %v2424 = vmul.f32 %v2392, 0.5
        %v2425 = vmul.f32 %v2393, 0.5
        %v2426 = vmul.f32 %v2362, 0.044715
        %v2427 = vmul.f32 %v2363, 0.044715
        %v2428 = vmul.f32 %v2364, 0.044715
        %v2429 = vmul.f32 %v2365, 0.044715
        %v2430 = vmul.f32 %v2366, 0.044715
        %v2431 = vmul.f32 %v2367, 0.044715
        %v2432 = vmul.f32 %v2368, 0.044715
        %v2433 = vmul.f32 %v2369, 0.044715
        %v2434 = vmul.f32 %v2370, 0.044715
        %v2435 = vmul.f32 %v2371, 0.044715
        %v2436 = vmul.f32 %v2372, 0.044715
        %v2437 = vmul.f32 %v2373, 0.044715
        %v2438 = vmul.f32 %v2374, 0.044715
        %v2439 = vmul.f32 %v2375, 0.044715
        %v2440 = vmul.f32 %v2376, 0.044715
        %v2441 = vmul.f32 %v2377, 0.044715
        %v2442 = vmul.f32 %v2378, 0.044715
        %v2443 = vmul.f32 %v2379, 0.044715
        %v2444 = vmul.f32 %v2380, 0.044715
        %v2445 = vmul.f32 %v2381, 0.044715
        %v2446 = vmul.f32 %v2382, 0.044715
        %v2447 = vmul.f32 %v2383, 0.044715
        %v2448 = vmul.f32 %v2384, 0.044715
        %v2449 = vmul.f32 %v2385, 0.044715
        %v2450 = vmul.f32 %v2386, 0.044715
        %v2451 = vmul.f32 %v2387, 0.044715
        %v2452 = vmul.f32 %v2388, 0.044715
        %v2453 = vmul.f32 %v2389, 0.044715
        %v2454 = vmul.f32 %v2390, 0.044715
        %v2455 = vmul.f32 %v2391, 0.044715
        %v2456 = vmul.f32 %v2392, 0.044715
        %v2457 = vmul.f32 %v2393, 0.044715
        %v2458 = vmul.f32 %v2426, %v2362
        %v2459 = vmul.f32 %v2427, %v2363
        %v2460 = vmul.f32 %v2428, %v2364
        %v2461 = vmul.f32 %v2429, %v2365
        %v2462 = vmul.f32 %v2430, %v2366
        %v2463 = vmul.f32 %v2431, %v2367
        %v2464 = vmul.f32 %v2432, %v2368
        %v2465 = vmul.f32 %v2433, %v2369
        %v2466 = vmul.f32 %v2434, %v2370
        %v2467 = vmul.f32 %v2435, %v2371
        %v2468 = vmul.f32 %v2436, %v2372
        %v2469 = vmul.f32 %v2437, %v2373
        %v2470 = vmul.f32 %v2438, %v2374
        %v2471 = vmul.f32 %v2439, %v2375
        %v2472 = vmul.f32 %v2440, %v2376
        %v2473 = vmul.f32 %v2441, %v2377
        %v2474 = vmul.f32 %v2442, %v2378
        %v2475 = vmul.f32 %v2443, %v2379
        %v2476 = vmul.f32 %v2444, %v2380
        %v2477 = vmul.f32 %v2445, %v2381
        %v2478 = vmul.f32 %v2446, %v2382
        %v2479 = vmul.f32 %v2447, %v2383
        %v2480 = vmul.f32 %v2448, %v2384
        %v2481 = vmul.f32 %v2449, %v2385
        %v2482 = vmul.f32 %v2450, %v2386
        %v2483 = vmul.f32 %v2451, %v2387
        %v2484 = vmul.f32 %v2452, %v2388
        %v2485 = vmul.f32 %v2453, %v2389
        %v2486 = vmul.f32 %v2454, %v2390
        %v2487 = vmul.f32 %v2455, %v2391
        %v2488 = vmul.f32 %v2456, %v2392
        %v2489 = vmul.f32 %v2457, %v2393
        %v2490 = vmul.f32 %v2458, %v2362
        %v2491 = vmul.f32 %v2459, %v2363
        %v2492 = vmul.f32 %v2460, %v2364
        %v2493 = vmul.f32 %v2461, %v2365
        %v2494 = vmul.f32 %v2462, %v2366
        %v2495 = vmul.f32 %v2463, %v2367
        %v2496 = vmul.f32 %v2464, %v2368
        %v2497 = vmul.f32 %v2465, %v2369
        %v2498 = vmul.f32 %v2466, %v2370
        %v2499 = vmul.f32 %v2467, %v2371
        %v2500 = vmul.f32 %v2468, %v2372
        %v2501 = vmul.f32 %v2469, %v2373
        %v2502 = vmul.f32 %v2470, %v2374
        %v2503 = vmul.f32 %v2471, %v2375
        %v2504 = vmul.f32 %v2472, %v2376
        %v2505 = vmul.f32 %v2473, %v2377
        %v2506 = vmul.f32 %v2474, %v2378
        %v2507 = vmul.f32 %v2475, %v2379
        %v2508 = vmul.f32 %v2476, %v2380
        %v2509 = vmul.f32 %v2477, %v2381
        %v2510 = vmul.f32 %v2478, %v2382
        %v2511 = vmul.f32 %v2479, %v2383
        %v2512 = vmul.f32 %v2480, %v2384
        %v2513 = vmul.f32 %v2481, %v2385
        %v2514 = vmul.f32 %v2482, %v2386
        %v2515 = vmul.f32 %v2483, %v2387
        %v2516 = vmul.f32 %v2484, %v2388
        %v2517 = vmul.f32 %v2485, %v2389
        %v2518 = vmul.f32 %v2486, %v2390
        %v2519 = vmul.f32 %v2487, %v2391
        %v2520 = vmul.f32 %v2488, %v2392
        %v2521 = vmul.f32 %v2489, %v2393
        %v2522 = vadd.f32 %v2362, %v2490
        %v2523 = vadd.f32 %v2363, %v2491
        %v2524 = vadd.f32 %v2364, %v2492
        %v2525 = vadd.f32 %v2365, %v2493
        %v2526 = vadd.f32 %v2366, %v2494
        %v2527 = vadd.f32 %v2367, %v2495
        %v2528 = vadd.f32 %v2368, %v2496
        %v2529 = vadd.f32 %v2369, %v2497
        %v2530 = vadd.f32 %v2370, %v2498
        %v2531 = vadd.f32 %v2371, %v2499
        %v2532 = vadd.f32 %v2372, %v2500
        %v2533 = vadd.f32 %v2373, %v2501
        %v2534 = vadd.f32 %v2374, %v2502
        %v2535 = vadd.f32 %v2375, %v2503
        %v2536 = vadd.f32 %v2376, %v2504
        %v2537 = vadd.f32 %v2377, %v2505
        %v2538 = vadd.f32 %v2378, %v2506
        %v2539 = vadd.f32 %v2379, %v2507
        %v2540 = vadd.f32 %v2380, %v2508
        %v2541 = vadd.f32 %v2381, %v2509
        %v2542 = vadd.f32 %v2382, %v2510
        %v2543 = vadd.f32 %v2383, %v2511
        %v2544 = vadd.f32 %v2384, %v2512
        %v2545 = vadd.f32 %v2385, %v2513
        %v2546 = vadd.f32 %v2386, %v2514
        %v2547 = vadd.f32 %v2387, %v2515
        %v2548 = vadd.f32 %v2388, %v2516
        %v2549 = vadd.f32 %v2389, %v2517
        %v2550 = vadd.f32 %v2390, %v2518
        %v2551 = vadd.f32 %v2391, %v2519
        %v2552 = vadd.f32 %v2392, %v2520
        %v2553 = vadd.f32 %v2393, %v2521
        %v2554 = vmul.f32 %v2522, 0.7978846
        %v2555 = vmul.f32 %v2523, 0.7978846
        %v2556 = vmul.f32 %v2524, 0.7978846
        %v2557 = vmul.f32 %v2525, 0.7978846
        %v2558 = vmul.f32 %v2526, 0.7978846
        %v2559 = vmul.f32 %v2527, 0.7978846
        %v2560 = vmul.f32 %v2528, 0.7978846
        %v2561 = vmul.f32 %v2529, 0.7978846
        %v2562 = vmul.f32 %v2530, 0.7978846
        %v2563 = vmul.f32 %v2531, 0.7978846
        %v2564 = vmul.f32 %v2532, 0.7978846
        %v2565 = vmul.f32 %v2533, 0.7978846
        %v2566 = vmul.f32 %v2534, 0.7978846
        %v2567 = vmul.f32 %v2535, 0.7978846
        %v2568 = vmul.f32 %v2536, 0.7978846
        %v2569 = vmul.f32 %v2537, 0.7978846
        %v2570 = vmul.f32 %v2538, 0.7978846
        %v2571 = vmul.f32 %v2539, 0.7978846
        %v2572 = vmul.f32 %v2540, 0.7978846
        %v2573 = vmul.f32 %v2541, 0.7978846
        %v2574 = vmul.f32 %v2542, 0.7978846
        %v2575 = vmul.f32 %v2543, 0.7978846
        %v2576 = vmul.f32 %v2544, 0.7978846
        %v2577 = vmul.f32 %v2545, 0.7978846
        %v2578 = vmul.f32 %v2546, 0.7978846
        %v2579 = vmul.f32 %v2547, 0.7978846
        %v2580 = vmul.f32 %v2548, 0.7978846
        %v2581 = vmul.f32 %v2549, 0.7978846
        %v2582 = vmul.f32 %v2550, 0.7978846
        %v2583 = vmul.f32 %v2551, 0.7978846
        %v2584 = vmul.f32 %v2552, 0.7978846
        %v2585 = vmul.f32 %v2553, 0.7978846
        %v2586 = vtanh.pop %v2554
        %v2587 = vtanh.pop %v2555
        %v2588 = vtanh.pop %v2556
        %v2589 = vtanh.pop %v2557
        %v2590 = vtanh.pop %v2558
        %v2591 = vtanh.pop %v2559
        %v2592 = vtanh.pop %v2560
        %v2593 = vtanh.pop %v2561
        %v2594 = vtanh.pop %v2562
        %v2595 = vtanh.pop %v2563
        %v2596 = vtanh.pop %v2564
        %v2597 = vtanh.pop %v2565
        %v2598 = vtanh.pop %v2566
        %v2599 = vtanh.pop %v2567
        %v2600 = vtanh.pop %v2568
        %v2601 = vtanh.pop %v2569
        %v2602 = vtanh.pop %v2570
        %v2603 = vtanh.pop %v2571
        %v2604 = vtanh.pop %v2572
        %v2605 = vtanh.pop %v2573
        %v2606 = vtanh.pop %v2574
        %v2607 = vtanh.pop %v2575
        %v2608 = vtanh.pop %v2576
        %v2609 = vtanh.pop %v2577
        %v2610 = vtanh.pop %v2578
        %v2611 = vtanh.pop %v2579
        %v2612 = vtanh.pop %v2580
        %v2613 = vtanh.pop %v2581
        %v2614 = vtanh.pop %v2582
        %v2615 = vtanh.pop %v2583
        %v2616 = vtanh.pop %v2584
        %v2617 = vtanh.pop %v2585
        %v2618 = vadd.f32 %v2586, 1.0
        %v2619 = vadd.f32 %v2587, 1.0
        %v2620 = vadd.f32 %v2588, 1.0
        %v2621 = vadd.f32 %v2589, 1.0
        %v2622 = vadd.f32 %v2590, 1.0
        %v2623 = vadd.f32 %v2591, 1.0
        %v2624 = vadd.f32 %v2592, 1.0
        %v2625 = vadd.f32 %v2593, 1.0
        %v2626 = vadd.f32 %v2594, 1.0
        %v2627 = vadd.f32 %v2595, 1.0
        %v2628 = vadd.f32 %v2596, 1.0
        %v2629 = vadd.f32 %v2597, 1.0
        %v2630 = vadd.f32 %v2598, 1.0
        %v2631 = vadd.f32 %v2599, 1.0
        %v2632 = vadd.f32 %v2600, 1.0
        %v2633 = vadd.f32 %v2601, 1.0
        %v2634 = vadd.f32 %v2602, 1.0
        %v2635 = vadd.f32 %v2603, 1.0
        %v2636 = vadd.f32 %v2604, 1.0
        %v2637 = vadd.f32 %v2605, 1.0
        %v2638 = vadd.f32 %v2606, 1.0
        %v2639 = vadd.f32 %v2607, 1.0
        %v2640 = vadd.f32 %v2608, 1.0
        %v2641 = vadd.f32 %v2609, 1.0
        %v2642 = vadd.f32 %v2610, 1.0
        %v2643 = vadd.f32 %v2611, 1.0
        %v2644 = vadd.f32 %v2612, 1.0
        %v2645 = vadd.f32 %v2613, 1.0
        %v2646 = vadd.f32 %v2614, 1.0
        %v2647 = vadd.f32 %v2615, 1.0
        %v2648 = vadd.f32 %v2616, 1.0
        %v2649 = vadd.f32 %v2617, 1.0
        %v2650 = vmul.f32 %v2394, %v2618
        %v2651 = vmul.f32 %v2395, %v2619
        %v2652 = vmul.f32 %v2396, %v2620
        %v2653 = vmul.f32 %v2397, %v2621
        %v2654 = vmul.f32 %v2398, %v2622
        %v2655 = vmul.f32 %v2399, %v2623
        %v2656 = vmul.f32 %v2400, %v2624
        %v2657 = vmul.f32 %v2401, %v2625
        %v2658 = vmul.f32 %v2402, %v2626
        %v2659 = vmul.f32 %v2403, %v2627
        %v2660 = vmul.f32 %v2404, %v2628
        %v2661 = vmul.f32 %v2405, %v2629
        %v2662 = vmul.f32 %v2406, %v2630
        %v2663 = vmul.f32 %v2407, %v2631
        %v2664 = vmul.f32 %v2408, %v2632
        %v2665 = vmul.f32 %v2409, %v2633
        %v2666 = vmul.f32 %v2410, %v2634
        %v2667 = vmul.f32 %v2411, %v2635
        %v2668 = vmul.f32 %v2412, %v2636
        %v2669 = vmul.f32 %v2413, %v2637
        %v2670 = vmul.f32 %v2414, %v2638
        %v2671 = vmul.f32 %v2415, %v2639
        %v2672 = vmul.f32 %v2416, %v2640
        %v2673 = vmul.f32 %v2417, %v2641
        %v2674 = vmul.f32 %v2418, %v2642
        %v2675 = vmul.f32 %v2419, %v2643
        %v2676 = vmul.f32 %v2420, %v2644
        %v2677 = vmul.f32 %v2421, %v2645
        %v2678 = vmul.f32 %v2422, %v2646
        %v2679 = vmul.f32 %v2423, %v2647
        %v2680 = vmul.f32 %v2424, %v2648
        %v2681 = vmul.f32 %v2425, %v2649
        %v2682 = vperm.slane %v1409, 2
        %v2684 = vsel %vm2151, %v2650, 0
        %v2687 = vsel %vm2151, %v2651, 0
        %v2690 = vsel %vm2151, %v2652, 0
        %v2693 = vsel %vm2151, %v2653, 0
        %v2696 = vsel %vm2151, %v2654, 0
        %v2699 = vsel %vm2151, %v2655, 0
        %v2702 = vsel %vm2151, %v2656, 0
        %v2705 = vsel %vm2151, %v2657, 0
        %v2708 = vsel %vm2151, %v2658, 0
        %v2711 = vsel %vm2151, %v2659, 0
        %v2714 = vsel %vm2151, %v2660, 0
        %v2717 = vsel %vm2151, %v2661, 0
        %v2720 = vsel %vm2151, %v2662, 0
        %v2723 = vsel %vm2151, %v2663, 0
        %v2726 = vsel %vm2151, %v2664, 0
        %v2729 = vsel %vm2151, %v2665, 0
        %v2732 = vsel %vm2151, %v2666, 0
        %v2735 = vsel %vm2151, %v2667, 0
        %v2738 = vsel %vm2151, %v2668, 0
        %v2741 = vsel %vm2151, %v2669, 0
        %v2744 = vsel %vm2151, %v2670, 0
        %v2747 = vsel %vm2151, %v2671, 0
        %v2750 = vsel %vm2151, %v2672, 0
        %v2753 = vsel %vm2151, %v2673, 0
        %v2756 = vsel %vm2151, %v2674, 0
        %v2759 = vsel %vm2151, %v2675, 0
        %v2762 = vsel %vm2151, %v2676, 0
        %v2765 = vsel %vm2151, %v2677, 0
        %v2768 = vsel %vm2151, %v2678, 0
        %v2771 = vsel %vm2151, %v2679, 0
        %v2774 = vsel %vm2151, %v2680, 0
        %v2777 = vsel %vm2151, %v2681, 0
        %2779 = vmatpush.msra.mxu0 0.0
        %2780 = vmatpush.msra.mxu0 0.0
        %2781 = vmatpush.msra.mxu0 0.0
        %2782 = vmatpush.msra.mxu0 0.0
        %2783 = vmatpush.msra.mxu0 0.0
        %2784 = vmatpush.msra.mxu0 0.0
        %2785 = vmatpush.msra.mxu0 0.0
        %2786 = vmatpush.msra.mxu0 0.0
        %2787 = vmatpush.msra.mxu0 0.0
        %2788 = vmatpush.msra.mxu0 0.0
        %2789 = vmatpush.msra.mxu0 0.0
        %2790 = vmatpush.msra.mxu0 0.0
        %2791 = vmatpush.msra.mxu0 %v1408
        %2792 = vmatpush.msra.mxu0 %v1407
        %2793 = vmatpush.msra.mxu0 %v1406
        %2794 = vmatpush.msra.mxu0 %v1405
        %2795 = vmatmul.f32.gmra.mxu0 %v2684
        %v2796 = vpop.f32.mrf.mxu0
        %v2797 = vadd.f32 %v2682, %v2796
        %2798 = vmatmul.f32.gmra.mxu0 %v2687
        %v2799 = vpop.f32.mrf.mxu0
        %v2800 = vadd.f32 %v2682, %v2799
        %2801 = vmatmul.f32.gmra.mxu0 %v2690
        %v2802 = vpop.f32.mrf.mxu0
        %v2803 = vadd.f32 %v2682, %v2802
        %2804 = vmatmul.f32.gmra.mxu0 %v2693
        %v2805 = vpop.f32.mrf.mxu0
        %v2806 = vadd.f32 %v2682, %v2805
        %2807 = vmatmul.f32.gmra.mxu0 %v2696
        %v2808 = vpop.f32.mrf.mxu0
        %v2809 = vadd.f32 %v2682, %v2808
        %2810 = vmatmul.f32.gmra.mxu0 %v2699
        %v2811 = vpop.f32.mrf.mxu0
        %v2812 = vadd.f32 %v2682, %v2811
        %2813 = vmatmul.f32.gmra.mxu0 %v2702
        %v2814 = vpop.f32.mrf.mxu0
        %v2815 = vadd.f32 %v2682, %v2814
        %2816 = vmatmul.f32.gmra.mxu0 %v2705
        %v2817 = vpop.f32.mrf.mxu0
        %v2818 = vadd.f32 %v2682, %v2817
        %2819 = vmatmul.f32.gmra.mxu0 %v2708
        %v2820 = vpop.f32.mrf.mxu0
        %v2821 = vadd.f32 %v2682, %v2820
        %2822 = vmatmul.f32.gmra.mxu0 %v2711
        %v2823 = vpop.f32.mrf.mxu0
        %v2824 = vadd.f32 %v2682, %v2823
        %2825 = vmatmul.f32.gmra.mxu0 %v2714
        %v2826 = vpop.f32.mrf.mxu0
        %v2827 = vadd.f32 %v2682, %v2826
        %2828 = vmatmul.f32.gmra.mxu0 %v2717
        %v2829 = vpop.f32.mrf.mxu0
        %v2830 = vadd.f32 %v2682, %v2829
        %2831 = vmatmul.f32.gmra.mxu0 %v2720
        %v2832 = vpop.f32.mrf.mxu0
        %v2833 = vadd.f32 %v2682, %v2832
        %2834 = vmatmul.f32.gmra.mxu0 %v2723
        %v2835 = vpop.f32.mrf.mxu0
        %v2836 = vadd.f32 %v2682, %v2835
        %2837 = vmatmul.f32.gmra.mxu0 %v2726
        %v2838 = vpop.f32.mrf.mxu0
        %v2839 = vadd.f32 %v2682, %v2838
        %2840 = vmatmul.f32.gmra.mxu0 %v2729
        %v2841 = vpop.f32.mrf.mxu0
        %v2842 = vadd.f32 %v2682, %v2841
        %2843 = vmatmul.f32.gmra.mxu0 %v2732
        %v2844 = vpop.f32.mrf.mxu0
        %v2845 = vadd.f32 %v2682, %v2844
        %2846 = vmatmul.f32.gmra.mxu0 %v2735
        %v2847 = vpop.f32.mrf.mxu0
        %v2848 = vadd.f32 %v2682, %v2847
        %2849 = vmatmul.f32.gmra.mxu0 %v2738
        %v2850 = vpop.f32.mrf.mxu0
        %v2851 = vadd.f32 %v2682, %v2850
        %2852 = vmatmul.f32.gmra.mxu0 %v2741
        %v2853 = vpop.f32.mrf.mxu0
        %v2854 = vadd.f32 %v2682, %v2853
        %2855 = vmatmul.f32.gmra.mxu0 %v2744
        %v2856 = vpop.f32.mrf.mxu0
        %v2857 = vadd.f32 %v2682, %v2856
        %2858 = vmatmul.f32.gmra.mxu0 %v2747
        %v2859 = vpop.f32.mrf.mxu0
        %v2860 = vadd.f32 %v2682, %v2859
        %2861 = vmatmul.f32.gmra.mxu0 %v2750
        %v2862 = vpop.f32.mrf.mxu0
        %v2863 = vadd.f32 %v2682, %v2862
        %2864 = vmatmul.f32.gmra.mxu0 %v2753
        %v2865 = vpop.f32.mrf.mxu0
        %v2866 = vadd.f32 %v2682, %v2865
        %2867 = vmatmul.f32.gmra.mxu0 %v2756
        %v2868 = vpop.f32.mrf.mxu0
        %v2869 = vadd.f32 %v2682, %v2868
        %2870 = vmatmul.f32.gmra.mxu0 %v2759
        %v2871 = vpop.f32.mrf.mxu0
        %v2872 = vadd.f32 %v2682, %v2871
        %2873 = vmatmul.f32.gmra.mxu0 %v2762
        %v2874 = vpop.f32.mrf.mxu0
        %v2875 = vadd.f32 %v2682, %v2874
        %2876 = vmatmul.f32.gmra.mxu0 %v2765
        %v2877 = vpop.f32.mrf.mxu0
        %v2878 = vadd.f32 %v2682, %v2877
        %2879 = vmatmul.f32.gmra.mxu0 %v2768
        %v2880 = vpop.f32.mrf.mxu0
        %v2881 = vadd.f32 %v2682, %v2880
        %2882 = vmatmul.f32.gmra.mxu0 %v2771
        %v2883 = vpop.f32.mrf.mxu0
        %v2884 = vadd.f32 %v2682, %v2883
        %2885 = vmatmul.f32.gmra.mxu0 %v2774
        %v2886 = vpop.f32.mrf.mxu0
        %v2887 = vadd.f32 %v2682, %v2886
        %2888 = vmatmul.f32.gmra.mxu0 %v2777
        %v2889 = vpop.f32.mrf.mxu0
        %v2890 = vadd.f32 %v2682, %v2889
        %2891 = vdwg.mxu0
        %v2892 = vld [vmem:[%s318] sm:$0xff]
        %v2893 = vld [vmem:[%s318 + $0x8] sm:$0xff]
        %v2894 = vld [vmem:[%s318 + $0x10] sm:$0xff]
        %v2895 = vld [vmem:[%s318 + $0x18] sm:$0xff]
        %v2896 = vld [vmem:[%s318 + $0x20] sm:$0xff]
        %v2897 = vld [vmem:[%s318 + $0x28] sm:$0xff]
        %v2898 = vld [vmem:[%s318 + $0x30] sm:$0xff]
        %v2899 = vld [vmem:[%s318 + $0x38] sm:$0xff]
        %v2900 = vld [vmem:[%s318 + $0x40] sm:$0xff]
        %v2901 = vld [vmem:[%s318 + $0x48] sm:$0xff]
        %v2902 = vld [vmem:[%s318 + $0x50] sm:$0xff]
        %v2903 = vld [vmem:[%s318 + $0x58] sm:$0xff]
        %v2904 = vld [vmem:[%s318 + $0x60] sm:$0xff]
        %v2905 = vld [vmem:[%s318 + $0x68] sm:$0xff]
        %v2906 = vld [vmem:[%s318 + $0x70] sm:$0xff]
        %v2907 = vld [vmem:[%s318 + $0x78] sm:$0xff]
        %v2908 = vld [vmem:[%s318 + $0x80] sm:$0xff]
        %v2909 = vld [vmem:[%s318 + $0x88] sm:$0xff]
        %v2910 = vld [vmem:[%s318 + $0x90] sm:$0xff]
        %v2911 = vld [vmem:[%s318 + $0x98] sm:$0xff]
        %v2912 = vld [vmem:[%s318 + $0xa0] sm:$0xff]
        %v2913 = vld [vmem:[%s318 + $0xa8] sm:$0xff]
        %v2914 = vld [vmem:[%s318 + $0xb0] sm:$0xff]
        %v2915 = vld [vmem:[%s318 + $0xb8] sm:$0xff]
        %v2916 = vld [vmem:[%s318 + $0xc0] sm:$0xff]
        %v2917 = vld [vmem:[%s318 + $0xc8] sm:$0xff]
        %v2918 = vld [vmem:[%s318 + $0xd0] sm:$0xff]
        %v2919 = vld [vmem:[%s318 + $0xd8] sm:$0xff]
        %v2920 = vld [vmem:[%s318 + $0xe0] sm:$0xff]
        %v2921 = vld [vmem:[%s318 + $0xe8] sm:$0xff]
        %v2922 = vld [vmem:[%s318 + $0xf0] sm:$0xff]
        %v2923 = vld [vmem:[%s318 + $0xf8] sm:$0xff]
        %v2924 = vmul.f32 %v338, 1.7320508
        %v2925 = vmul.f32 %v339, 1.7320508
        %v2926 = vmul.f32 %v340, 1.7320508
        %v2927 = vmul.f32 %v341, 1.7320508
        %v2928 = vmul.f32 %v342, 1.7320508
        %v2929 = vmul.f32 %v343, 1.7320508
        %v2930 = vmul.f32 %v344, 1.7320508
        %v2931 = vmul.f32 %v345, 1.7320508
        %v2932 = vmul.f32 %v346, 1.7320508
        %v2933 = vmul.f32 %v347, 1.7320508
        %v2934 = vmul.f32 %v348, 1.7320508
        %v2935 = vmul.f32 %v349, 1.7320508
        %v2936 = vmul.f32 %v350, 1.7320508
        %v2937 = vmul.f32 %v351, 1.7320508
        %v2938 = vmul.f32 %v352, 1.7320508
        %v2939 = vmul.f32 %v353, 1.7320508
        %v2940 = vmul.f32 %v354, 1.7320508
        %v2941 = vmul.f32 %v355, 1.7320508
        %v2942 = vmul.f32 %v356, 1.7320508
        %v2943 = vmul.f32 %v357, 1.7320508
        %v2944 = vmul.f32 %v358, 1.7320508
        %v2945 = vmul.f32 %v359, 1.7320508
        %v2946 = vmul.f32 %v360, 1.7320508
        %v2947 = vmul.f32 %v361, 1.7320508
        %v2948 = vmul.f32 %v362, 1.7320508
        %v2949 = vmul.f32 %v363, 1.7320508
        %v2950 = vmul.f32 %v364, 1.7320508
        %v2951 = vmul.f32 %v365, 1.7320508
        %v2952 = vmul.f32 %v366, 1.7320508
        %v2953 = vmul.f32 %v367, 1.7320508
        %v2954 = vmul.f32 %v368, 1.7320508
        %v2955 = vmul.f32 %v369, 1.7320508
        %v2956 = vld [vmem:[%s304] sm:$0x3]
        %2958 = vset.pattern.permute.xlu0 1
        %2959 = vperm.xlu0 %2958, %v2924
        %v2960 = vpop.permute.xlu0 %2959
        %2963 = vset.pattern.permute.xlu0 1
        %2964 = vperm.xlu0 %2963, %v2925
        %v2965 = vpop.permute.xlu0 %2964
        %2968 = vset.pattern.permute.xlu0 1
        %2969 = vperm.xlu0 %2968, %v2926
        %v2970 = vpop.permute.xlu0 %2969
        %2973 = vset.pattern.permute.xlu0 1
        %2974 = vperm.xlu0 %2973, %v2927
        %v2975 = vpop.permute.xlu0 %2974
        %2978 = vset.pattern.permute.xlu0 1
        %2979 = vperm.xlu0 %2978, %v2928
        %v2980 = vpop.permute.xlu0 %2979
        %2983 = vset.pattern.permute.xlu0 1
        %2984 = vperm.xlu0 %2983, %v2929
        %v2985 = vpop.permute.xlu0 %2984
        %2988 = vset.pattern.permute.xlu0 1
        %2989 = vperm.xlu0 %2988, %v2930
        %v2990 = vpop.permute.xlu0 %2989
        %2993 = vset.pattern.permute.xlu0 1
        %2994 = vperm.xlu0 %2993, %v2931
        %v2995 = vpop.permute.xlu0 %2994
        %2998 = vset.pattern.permute.xlu0 1
        %2999 = vperm.xlu0 %2998, %v2932
        %v3000 = vpop.permute.xlu0 %2999
        %3003 = vset.pattern.permute.xlu0 1
        %3004 = vperm.xlu0 %3003, %v2933
        %v3005 = vpop.permute.xlu0 %3004
        %3008 = vset.pattern.permute.xlu0 1
        %3009 = vperm.xlu0 %3008, %v2934
        %v3010 = vpop.permute.xlu0 %3009
        %3013 = vset.pattern.permute.xlu0 1
        %3014 = vperm.xlu0 %3013, %v2935
        %v3015 = vpop.permute.xlu0 %3014
        %3018 = vset.pattern.permute.xlu0 1
        %3019 = vperm.xlu0 %3018, %v2936
        %v3020 = vpop.permute.xlu0 %3019
        %3023 = vset.pattern.permute.xlu0 1
        %3024 = vperm.xlu0 %3023, %v2937
        %v3025 = vpop.permute.xlu0 %3024
        %3028 = vset.pattern.permute.xlu0 1
        %3029 = vperm.xlu0 %3028, %v2938
        %v3030 = vpop.permute.xlu0 %3029
        %3033 = vset.pattern.permute.xlu0 1
        %3034 = vperm.xlu0 %3033, %v2939
        %v3035 = vpop.permute.xlu0 %3034
        %3038 = vset.pattern.permute.xlu0 1
        %3039 = vperm.xlu0 %3038, %v2940
        %v3040 = vpop.permute.xlu0 %3039
        %3043 = vset.pattern.permute.xlu0 1
        %3044 = vperm.xlu0 %3043, %v2941
        %v3045 = vpop.permute.xlu0 %3044
        %3048 = vset.pattern.permute.xlu0 1
        %3049 = vperm.xlu0 %3048, %v2942
        %v3050 = vpop.permute.xlu0 %3049
        %3053 = vset.pattern.permute.xlu0 1
        %3054 = vperm.xlu0 %3053, %v2943
        %v3055 = vpop.permute.xlu0 %3054
        %3058 = vset.pattern.permute.xlu0 1
        %3059 = vperm.xlu0 %3058, %v2944
        %v3060 = vpop.permute.xlu0 %3059
        %3063 = vset.pattern.permute.xlu0 1
        %3064 = vperm.xlu0 %3063, %v2945
        %v3065 = vpop.permute.xlu0 %3064
        %3068 = vset.pattern.permute.xlu0 1
        %3069 = vperm.xlu0 %3068, %v2946
        %v3070 = vpop.permute.xlu0 %3069
        %3073 = vset.pattern.permute.xlu0 1
        %3074 = vperm.xlu0 %3073, %v2947
        %v3075 = vpop.permute.xlu0 %3074
        %3078 = vset.pattern.permute.xlu0 1
        %3079 = vperm.xlu0 %3078, %v2948
        %v3080 = vpop.permute.xlu0 %3079
        %3083 = vset.pattern.permute.xlu0 1
        %3084 = vperm.xlu0 %3083, %v2949
        %v3085 = vpop.permute.xlu0 %3084
        %3088 = vset.pattern.permute.xlu0 1
        %3089 = vperm.xlu0 %3088, %v2950
        %v3090 = vpop.permute.xlu0 %3089
        %3093 = vset.pattern.permute.xlu0 1
        %3094 = vperm.xlu0 %3093, %v2951
        %v3095 = vpop.permute.xlu0 %3094
        %3098 = vset.pattern.permute.xlu0 1
        %3099 = vperm.xlu0 %3098, %v2952
        %v3100 = vpop.permute.xlu0 %3099
        %3103 = vset.pattern.permute.xlu0 1
        %3104 = vperm.xlu0 %3103, %v2953
        %v3105 = vpop.permute.xlu0 %3104
        %3108 = vset.pattern.permute.xlu0 1
        %3109 = vperm.xlu0 %3108, %v2954
        %v3110 = vpop.permute.xlu0 %3109
        %3113 = vset.pattern.permute.xlu0 1
        %3114 = vperm.xlu0 %3113, %v2955
        %v3115 = vpop.permute.xlu0 %3114
        %v3117 = vmul.f32 %v2797, %v2960
        %v3118 = vmul.f32 %v2800, %v2965
        %v3119 = vmul.f32 %v2803, %v2970
        %v3120 = vmul.f32 %v2806, %v2975
        %v3121 = vmul.f32 %v2809, %v2980
        %v3122 = vmul.f32 %v2812, %v2985
        %v3123 = vmul.f32 %v2815, %v2990
        %v3124 = vmul.f32 %v2818, %v2995
        %v3125 = vmul.f32 %v2821, %v3000
        %v3126 = vmul.f32 %v2824, %v3005
        %v3127 = vmul.f32 %v2827, %v3010
        %v3128 = vmul.f32 %v2830, %v3015
        %v3129 = vmul.f32 %v2833, %v3020
        %v3130 = vmul.f32 %v2836, %v3025
        %v3131 = vmul.f32 %v2839, %v3030
        %v3132 = vmul.f32 %v2842, %v3035
        %v3133 = vmul.f32 %v2845, %v3040
        %v3134 = vmul.f32 %v2848, %v3045
        %v3135 = vmul.f32 %v2851, %v3050
        %v3136 = vmul.f32 %v2854, %v3055
        %v3137 = vmul.f32 %v2857, %v3060
        %v3138 = vmul.f32 %v2860, %v3065
        %v3139 = vmul.f32 %v2863, %v3070
        %v3140 = vmul.f32 %v2866, %v3075
        %v3141 = vmul.f32 %v2869, %v3080
        %v3142 = vmul.f32 %v2872, %v3085
        %v3143 = vmul.f32 %v2875, %v3090
        %v3144 = vmul.f32 %v2878, %v3095
        %v3145 = vmul.f32 %v2881, %v3100
        %v3146 = vmul.f32 %v2884, %v3105
        %v3147 = vmul.f32 %v2887, %v3110
        %v3148 = vmul.f32 %v2890, %v3115
        %3149 = vxpose.xlu0.b32.start [1/16] %v2892, 128
        %3150 = vxpose.xlu0.b32.cont [2/16] %v2893, 128
        %3151 = vxpose.xlu0.b32.cont [3/16] %v2894, 128
        %3152 = vxpose.xlu0.b32.cont [4/16] %v2895, 128
        %3153 = vxpose.xlu0.b32.cont [5/16] %v2896, 128
        %3154 = vxpose.xlu0.b32.cont [6/16] %v2897, 128
        %3155 = vxpose.xlu0.b32.cont [7/16] %v2898, 128
        %3156 = vxpose.xlu0.b32.cont [8/16] %v2899, 128
        %3157 = vxpose.xlu0.b32.cont [9/16] %v2900, 128
        %3158 = vxpose.xlu0.b32.cont [10/16] %v2901, 128
        %3159 = vxpose.xlu0.b32.cont [11/16] %v2902, 128
        %3160 = vxpose.xlu0.b32.cont [12/16] %v2903, 128
        %3161 = vxpose.xlu0.b32.cont [13/16] %v2904, 128
        %3162 = vxpose.xlu0.b32.cont [14/16] %v2905, 128
        %3163 = vxpose.xlu0.b32.cont [15/16] %v2906, 128
        %3164 = vxpose.xlu0.b32.end [16/16] %v2907, 128
        %v3165 = vpop.trf.xlu0
        %v3166 = vpop.trf.xlu0
        %v3167 = vpop.trf.xlu0
        %v3168 = vpop.trf.xlu0
        %v3169 = vpop.trf.xlu0
        %v3170 = vpop.trf.xlu0
        %v3171 = vpop.trf.xlu0
        %v3172 = vpop.trf.xlu0
        %v3173 = vpop.trf.xlu0
        %v3174 = vpop.trf.xlu0
        %v3175 = vpop.trf.xlu0
        %v3176 = vpop.trf.xlu0
        %v3177 = vpop.trf.xlu0
        %v3178 = vpop.trf.xlu0
        %v3179 = vpop.trf.xlu0
        %v3180 = vpop.trf.xlu0
        %3181 = vxpose.xlu0.b32.start [1/16] %v2908, 128
        %3182 = vxpose.xlu0.b32.cont [2/16] %v2909, 128
        %3183 = vxpose.xlu0.b32.cont [3/16] %v2910, 128
        %3184 = vxpose.xlu0.b32.cont [4/16] %v2911, 128
        %3185 = vxpose.xlu0.b32.cont [5/16] %v2912, 128
        %3186 = vxpose.xlu0.b32.cont [6/16] %v2913, 128
        %3187 = vxpose.xlu0.b32.cont [7/16] %v2914, 128
        %3188 = vxpose.xlu0.b32.cont [8/16] %v2915, 128
        %3189 = vxpose.xlu0.b32.cont [9/16] %v2916, 128
        %3190 = vxpose.xlu0.b32.cont [10/16] %v2917, 128
        %3191 = vxpose.xlu0.b32.cont [11/16] %v2918, 128
        %3192 = vxpose.xlu0.b32.cont [12/16] %v2919, 128
        %3193 = vxpose.xlu0.b32.cont [13/16] %v2920, 128
        %3194 = vxpose.xlu0.b32.cont [14/16] %v2921, 128
        %3195 = vxpose.xlu0.b32.cont [15/16] %v2922, 128
        %3196 = vxpose.xlu0.b32.end [16/16] %v2923, 128
        %v3197 = vpop.trf.xlu0
        %v3198 = vpop.trf.xlu0
        %v3199 = vpop.trf.xlu0
        %v3200 = vpop.trf.xlu0
        %v3201 = vpop.trf.xlu0
        %v3202 = vpop.trf.xlu0
        %v3203 = vpop.trf.xlu0
        %v3204 = vpop.trf.xlu0
        %v3205 = vpop.trf.xlu0
        %v3206 = vpop.trf.xlu0
        %v3207 = vpop.trf.xlu0
        %v3208 = vpop.trf.xlu0
        %v3209 = vpop.trf.xlu0
        %v3210 = vpop.trf.xlu0
        %v3211 = vpop.trf.xlu0
        %v3212 = vpop.trf.xlu0
        %3213 = vmatpush.msra.mxu0 %v3132
        %3214 = vmatpush.msra.mxu0 %v3131
        %3215 = vmatpush.msra.mxu0 %v3130
        %3216 = vmatpush.msra.mxu0 %v3129
        %3217 = vmatpush.msra.mxu0 %v3128
        %3218 = vmatpush.msra.mxu0 %v3127
        %3219 = vmatpush.msra.mxu0 %v3126
        %3220 = vmatpush.msra.mxu0 %v3125
        %3221 = vmatpush.msra.mxu0 %v3124
        %3222 = vmatpush.msra.mxu0 %v3123
        %3223 = vmatpush.msra.mxu0 %v3122
        %3224 = vmatpush.msra.mxu0 %v3121
        %3225 = vmatpush.msra.mxu0 %v3120
        %3226 = vmatpush.msra.mxu0 %v3119
        %3227 = vmatpush.msra.mxu0 %v3118
        %3228 = vmatpush.msra.mxu0 %v3117
        %3229 = vmatmul.f32.gmra.mxu0 %v3165
        %v3230 = vpop.f32.mrf.mxu0
        %v3231 = vadd.f32 0.0, %v3230
        %3232 = vdwg.mxu0
        %3233 = vmatpush.msra.mxu0 %v3148
        %3234 = vmatpush.msra.mxu0 %v3147
        %3235 = vmatpush.msra.mxu0 %v3146
        %3236 = vmatpush.msra.mxu0 %v3145
        %3237 = vmatpush.msra.mxu0 %v3144
        %3238 = vmatpush.msra.mxu0 %v3143
        %3239 = vmatpush.msra.mxu0 %v3142
        %3240 = vmatpush.msra.mxu0 %v3141
        %3241 = vmatpush.msra.mxu0 %v3140
        %3242 = vmatpush.msra.mxu0 %v3139
        %3243 = vmatpush.msra.mxu0 %v3138
        %3244 = vmatpush.msra.mxu0 %v3137
        %3245 = vmatpush.msra.mxu0 %v3136
        %3246 = vmatpush.msra.mxu0 %v3135
        %3247 = vmatpush.msra.mxu0 %v3134
        %3248 = vmatpush.msra.mxu0 %v3133
        %3249 = vmatmul.f32.gmra.mxu0 %v3197
        %v3250 = vpop.f32.mrf.mxu0
        %v3251 = vadd.f32 %v3231, %v3250
        %3252 = vdwg.mxu0
        %v3253 = vadd.f32 %v2956, %v3251
        %vm3254 = vcmask 254976
        %3255 = vst.msk [vmem:[%s304] sm:$0x3] %vm3254, %v3253
        %s3256 = scalar_lea.vmem %s304, 2 [#allocation2]
        %v3257 = vld [vmem:[%s3256] sm:$0x3]
        %3258 = vset.pattern.permute.xlu0 2
        %3259 = vperm.xlu0 %3258, %v2924
        %v3260 = vpop.permute.xlu0 %3259
        %3262 = vset.pattern.permute.xlu0 2
        %3263 = vperm.xlu0 %3262, %v2925
        %v3264 = vpop.permute.xlu0 %3263
        %3266 = vset.pattern.permute.xlu0 2
        %3267 = vperm.xlu0 %3266, %v2926
        %v3268 = vpop.permute.xlu0 %3267
        %3270 = vset.pattern.permute.xlu0 2
        %3271 = vperm.xlu0 %3270, %v2927
        %v3272 = vpop.permute.xlu0 %3271
        %3274 = vset.pattern.permute.xlu0 2
        %3275 = vperm.xlu0 %3274, %v2928
        %v3276 = vpop.permute.xlu0 %3275
        %3278 = vset.pattern.permute.xlu0 2
        %3279 = vperm.xlu0 %3278, %v2929
        %v3280 = vpop.permute.xlu0 %3279
        %3282 = vset.pattern.permute.xlu0 2
        %3283 = vperm.xlu0 %3282, %v2930
        %v3284 = vpop.permute.xlu0 %3283
        %3286 = vset.pattern.permute.xlu0 2
        %3287 = vperm.xlu0 %3286, %v2931
        %v3288 = vpop.permute.xlu0 %3287
        %3290 = vset.pattern.permute.xlu0 2
        %3291 = vperm.xlu0 %3290, %v2932
        %v3292 = vpop.permute.xlu0 %3291
        %3294 = vset.pattern.permute.xlu0 2
        %3295 = vperm.xlu0 %3294, %v2933
        %v3296 = vpop.permute.xlu0 %3295
        %3298 = vset.pattern.permute.xlu0 2
        %3299 = vperm.xlu0 %3298, %v2934
        %v3300 = vpop.permute.xlu0 %3299
        %3302 = vset.pattern.permute.xlu0 2
        %3303 = vperm.xlu0 %3302, %v2935
        %v3304 = vpop.permute.xlu0 %3303
        %3306 = vset.pattern.permute.xlu0 2
        %3307 = vperm.xlu0 %3306, %v2936
        %v3308 = vpop.permute.xlu0 %3307
        %3310 = vset.pattern.permute.xlu0 2
        %3311 = vperm.xlu0 %3310, %v2937
        %v3312 = vpop.permute.xlu0 %3311
        %3314 = vset.pattern.permute.xlu0 2
        %3315 = vperm.xlu0 %3314, %v2938
        %v3316 = vpop.permute.xlu0 %3315
        %3318 = vset.pattern.permute.xlu0 2
        %3319 = vperm.xlu0 %3318, %v2939
        %v3320 = vpop.permute.xlu0 %3319
        %3322 = vset.pattern.permute.xlu0 2
        %3323 = vperm.xlu0 %3322, %v2940
        %v3324 = vpop.permute.xlu0 %3323
        %3326 = vset.pattern.permute.xlu0 2
        %3327 = vperm.xlu0 %3326, %v2941
        %v3328 = vpop.permute.xlu0 %3327
        %3330 = vset.pattern.permute.xlu0 2
        %3331 = vperm.xlu0 %3330, %v2942
        %v3332 = vpop.permute.xlu0 %3331
        %3334 = vset.pattern.permute.xlu0 2
        %3335 = vperm.xlu0 %3334, %v2943
        %v3336 = vpop.permute.xlu0 %3335
        %3338 = vset.pattern.permute.xlu0 2
        %3339 = vperm.xlu0 %3338, %v2944
        %v3340 = vpop.permute.xlu0 %3339
        %3342 = vset.pattern.permute.xlu0 2
        %3343 = vperm.xlu0 %3342, %v2945
        %v3344 = vpop.permute.xlu0 %3343
        %3346 = vset.pattern.permute.xlu0 2
        %3347 = vperm.xlu0 %3346, %v2946
        %v3348 = vpop.permute.xlu0 %3347
        %3350 = vset.pattern.permute.xlu0 2
        %3351 = vperm.xlu0 %3350, %v2947
        %v3352 = vpop.permute.xlu0 %3351
        %3354 = vset.pattern.permute.xlu0 2
        %3355 = vperm.xlu0 %3354, %v2948
        %v3356 = vpop.permute.xlu0 %3355
        %3358 = vset.pattern.permute.xlu0 2
        %3359 = vperm.xlu0 %3358, %v2949
        %v3360 = vpop.permute.xlu0 %3359
        %3362 = vset.pattern.permute.xlu0 2
        %3363 = vperm.xlu0 %3362, %v2950
        %v3364 = vpop.permute.xlu0 %3363
        %3366 = vset.pattern.permute.xlu0 2
        %3367 = vperm.xlu0 %3366, %v2951
        %v3368 = vpop.permute.xlu0 %3367
        %3370 = vset.pattern.permute.xlu0 2
        %3371 = vperm.xlu0 %3370, %v2952
        %v3372 = vpop.permute.xlu0 %3371
        %3374 = vset.pattern.permute.xlu0 2
        %3375 = vperm.xlu0 %3374, %v2953
        %v3376 = vpop.permute.xlu0 %3375
        %3378 = vset.pattern.permute.xlu0 2
        %3379 = vperm.xlu0 %3378, %v2954
        %v3380 = vpop.permute.xlu0 %3379
        %3382 = vset.pattern.permute.xlu0 2
        %3383 = vperm.xlu0 %3382, %v2955
        %v3384 = vpop.permute.xlu0 %3383
        %v3386 = vmul.f32 %v2797, %v3260
        %v3387 = vmul.f32 %v2800, %v3264
        %v3388 = vmul.f32 %v2803, %v3268
        %v3389 = vmul.f32 %v2806, %v3272
        %v3390 = vmul.f32 %v2809, %v3276
        %v3391 = vmul.f32 %v2812, %v3280
        %v3392 = vmul.f32 %v2815, %v3284
        %v3393 = vmul.f32 %v2818, %v3288
        %v3394 = vmul.f32 %v2821, %v3292
        %v3395 = vmul.f32 %v2824, %v3296
        %v3396 = vmul.f32 %v2827, %v3300
        %v3397 = vmul.f32 %v2830, %v3304
        %v3398 = vmul.f32 %v2833, %v3308
        %v3399 = vmul.f32 %v2836, %v3312
        %v3400 = vmul.f32 %v2839, %v3316
        %v3401 = vmul.f32 %v2842, %v3320
        %v3402 = vmul.f32 %v2845, %v3324
        %v3403 = vmul.f32 %v2848, %v3328
        %v3404 = vmul.f32 %v2851, %v3332
        %v3405 = vmul.f32 %v2854, %v3336
        %v3406 = vmul.f32 %v2857, %v3340
        %v3407 = vmul.f32 %v2860, %v3344
        %v3408 = vmul.f32 %v2863, %v3348
        %v3409 = vmul.f32 %v2866, %v3352
        %v3410 = vmul.f32 %v2869, %v3356
        %v3411 = vmul.f32 %v2872, %v3360
        %v3412 = vmul.f32 %v2875, %v3364
        %v3413 = vmul.f32 %v2878, %v3368
        %v3414 = vmul.f32 %v2881, %v3372
        %v3415 = vmul.f32 %v2884, %v3376
        %v3416 = vmul.f32 %v2887, %v3380
        %v3417 = vmul.f32 %v2890, %v3384
        %3418 = vmatpush.msra.mxu0 %v3401
        %3419 = vmatpush.msra.mxu0 %v3400
        %3420 = vmatpush.msra.mxu0 %v3399
        %3421 = vmatpush.msra.mxu0 %v3398
        %3422 = vmatpush.msra.mxu0 %v3397
        %3423 = vmatpush.msra.mxu0 %v3396
        %3424 = vmatpush.msra.mxu0 %v3395
        %3425 = vmatpush.msra.mxu0 %v3394
        %3426 = vmatpush.msra.mxu0 %v3393
        %3427 = vmatpush.msra.mxu0 %v3392
        %3428 = vmatpush.msra.mxu0 %v3391
        %3429 = vmatpush.msra.mxu0 %v3390
        %3430 = vmatpush.msra.mxu0 %v3389
        %3431 = vmatpush.msra.mxu0 %v3388
        %3432 = vmatpush.msra.mxu0 %v3387
        %3433 = vmatpush.msra.mxu0 %v3386
        %3434 = vmatmul.f32.gmra.mxu0 %v3165
        %v3435 = vpop.f32.mrf.mxu0
        %v3436 = vadd.f32 0.0, %v3435
        %3437 = vdwg.mxu0
        %3438 = vmatpush.msra.mxu0 %v3417
        %3439 = vmatpush.msra.mxu0 %v3416
        %3440 = vmatpush.msra.mxu0 %v3415
        %3441 = vmatpush.msra.mxu0 %v3414
        %3442 = vmatpush.msra.mxu0 %v3413
        %3443 = vmatpush.msra.mxu0 %v3412
        %3444 = vmatpush.msra.mxu0 %v3411
        %3445 = vmatpush.msra.mxu0 %v3410
        %3446 = vmatpush.msra.mxu0 %v3409
        %3447 = vmatpush.msra.mxu0 %v3408
        %3448 = vmatpush.msra.mxu0 %v3407
        %3449 = vmatpush.msra.mxu0 %v3406
        %3450 = vmatpush.msra.mxu0 %v3405
        %3451 = vmatpush.msra.mxu0 %v3404
        %3452 = vmatpush.msra.mxu0 %v3403
        %3453 = vmatpush.msra.mxu0 %v3402
        %3454 = vmatmul.f32.gmra.mxu0 %v3197
        %v3455 = vpop.f32.mrf.mxu0
        %v3456 = vadd.f32 %v3436, %v3455
        %3457 = vdwg.mxu0
        %v3458 = vadd.f32 %v3257, %v3456
        %3459 = vst.msk [vmem:[%s3256] sm:$0x3] %vm3254, %v3458
        %s3460 = scalar_lea.vmem %s304, 4 [#allocation2]
        %v3461 = vld [vmem:[%s3460] sm:$0x3]
        %3462 = vset.pattern.permute.xlu0 0
        %3463 = vperm.xlu0 %3462, %v2924
        %v3464 = vpop.permute.xlu0 %3463
        %3466 = vset.pattern.permute.xlu0 0
        %3467 = vperm.xlu0 %3466, %v2925
        %v3468 = vpop.permute.xlu0 %3467
        %3470 = vset.pattern.permute.xlu0 0
        %3471 = vperm.xlu0 %3470, %v2926
        %v3472 = vpop.permute.xlu0 %3471
        %3474 = vset.pattern.permute.xlu0 0
        %3475 = vperm.xlu0 %3474, %v2927
        %v3476 = vpop.permute.xlu0 %3475
        %3478 = vset.pattern.permute.xlu0 0
        %3479 = vperm.xlu0 %3478, %v2928
        %v3480 = vpop.permute.xlu0 %3479
        %3482 = vset.pattern.permute.xlu0 0
        %3483 = vperm.xlu0 %3482, %v2929
        %v3484 = vpop.permute.xlu0 %3483
        %3486 = vset.pattern.permute.xlu0 0
        %3487 = vperm.xlu0 %3486, %v2930
        %v3488 = vpop.permute.xlu0 %3487
        %3490 = vset.pattern.permute.xlu0 0
        %3491 = vperm.xlu0 %3490, %v2931
        %v3492 = vpop.permute.xlu0 %3491
        %3494 = vset.pattern.permute.xlu0 0
        %3495 = vperm.xlu0 %3494, %v2932
        %v3496 = vpop.permute.xlu0 %3495
        %3498 = vset.pattern.permute.xlu0 0
        %3499 = vperm.xlu0 %3498, %v2933
        %v3500 = vpop.permute.xlu0 %3499
        %3502 = vset.pattern.permute.xlu0 0
        %3503 = vperm.xlu0 %3502, %v2934
        %v3504 = vpop.permute.xlu0 %3503
        %3506 = vset.pattern.permute.xlu0 0
        %3507 = vperm.xlu0 %3506, %v2935
        %v3508 = vpop.permute.xlu0 %3507
        %3510 = vset.pattern.permute.xlu0 0
        %3511 = vperm.xlu0 %3510, %v2936
        %v3512 = vpop.permute.xlu0 %3511
        %3514 = vset.pattern.permute.xlu0 0
        %3515 = vperm.xlu0 %3514, %v2937
        %v3516 = vpop.permute.xlu0 %3515
        %3518 = vset.pattern.permute.xlu0 0
        %3519 = vperm.xlu0 %3518, %v2938
        %v3520 = vpop.permute.xlu0 %3519
        %3522 = vset.pattern.permute.xlu0 0
        %3523 = vperm.xlu0 %3522, %v2939
        %v3524 = vpop.permute.xlu0 %3523
        %3526 = vset.pattern.permute.xlu0 0
        %3527 = vperm.xlu0 %3526, %v2940
        %v3528 = vpop.permute.xlu0 %3527
        %3530 = vset.pattern.permute.xlu0 0
        %3531 = vperm.xlu0 %3530, %v2941
        %v3532 = vpop.permute.xlu0 %3531
        %3534 = vset.pattern.permute.xlu0 0
        %3535 = vperm.xlu0 %3534, %v2942
        %v3536 = vpop.permute.xlu0 %3535
        %3538 = vset.pattern.permute.xlu0 0
        %3539 = vperm.xlu0 %3538, %v2943
        %v3540 = vpop.permute.xlu0 %3539
        %3542 = vset.pattern.permute.xlu0 0
        %3543 = vperm.xlu0 %3542, %v2944
        %v3544 = vpop.permute.xlu0 %3543
        %3546 = vset.pattern.permute.xlu0 0
        %3547 = vperm.xlu0 %3546, %v2945
        %v3548 = vpop.permute.xlu0 %3547
        %3550 = vset.pattern.permute.xlu0 0
        %3551 = vperm.xlu0 %3550, %v2946
        %v3552 = vpop.permute.xlu0 %3551
        %3554 = vset.pattern.permute.xlu0 0
        %3555 = vperm.xlu0 %3554, %v2947
        %v3556 = vpop.permute.xlu0 %3555
        %3558 = vset.pattern.permute.xlu0 0
        %3559 = vperm.xlu0 %3558, %v2948
        %v3560 = vpop.permute.xlu0 %3559
        %3562 = vset.pattern.permute.xlu0 0
        %3563 = vperm.xlu0 %3562, %v2949
        %v3564 = vpop.permute.xlu0 %3563
        %3566 = vset.pattern.permute.xlu0 0
        %3567 = vperm.xlu0 %3566, %v2950
        %v3568 = vpop.permute.xlu0 %3567
        %3570 = vset.pattern.permute.xlu0 0
        %3571 = vperm.xlu0 %3570, %v2951
        %v3572 = vpop.permute.xlu0 %3571
        %3574 = vset.pattern.permute.xlu0 0
        %3575 = vperm.xlu0 %3574, %v2952
        %v3576 = vpop.permute.xlu0 %3575
        %3578 = vset.pattern.permute.xlu0 0
        %3579 = vperm.xlu0 %3578, %v2953
        %v3580 = vpop.permute.xlu0 %3579
        %3582 = vset.pattern.permute.xlu0 0
        %3583 = vperm.xlu0 %3582, %v2954
        %v3584 = vpop.permute.xlu0 %3583
        %3586 = vset.pattern.permute.xlu0 0
        %3587 = vperm.xlu0 %3586, %v2955
        %v3588 = vpop.permute.xlu0 %3587
        %v3590 = vmul.f32 %v2797, %v3464
        %v3591 = vmul.f32 %v2800, %v3468
        %v3592 = vmul.f32 %v2803, %v3472
        %v3593 = vmul.f32 %v2806, %v3476
        %v3594 = vmul.f32 %v2809, %v3480
        %v3595 = vmul.f32 %v2812, %v3484
        %v3596 = vmul.f32 %v2815, %v3488
        %v3597 = vmul.f32 %v2818, %v3492
        %v3598 = vmul.f32 %v2821, %v3496
        %v3599 = vmul.f32 %v2824, %v3500
        %v3600 = vmul.f32 %v2827, %v3504
        %v3601 = vmul.f32 %v2830, %v3508
        %v3602 = vmul.f32 %v2833, %v3512
        %v3603 = vmul.f32 %v2836, %v3516
        %v3604 = vmul.f32 %v2839, %v3520
        %v3605 = vmul.f32 %v2842, %v3524
        %v3606 = vmul.f32 %v2845, %v3528
        %v3607 = vmul.f32 %v2848, %v3532
        %v3608 = vmul.f32 %v2851, %v3536
        %v3609 = vmul.f32 %v2854, %v3540
        %v3610 = vmul.f32 %v2857, %v3544
        %v3611 = vmul.f32 %v2860, %v3548
        %v3612 = vmul.f32 %v2863, %v3552
        %v3613 = vmul.f32 %v2866, %v3556
        %v3614 = vmul.f32 %v2869, %v3560
        %v3615 = vmul.f32 %v2872, %v3564
        %v3616 = vmul.f32 %v2875, %v3568
        %v3617 = vmul.f32 %v2878, %v3572
        %v3618 = vmul.f32 %v2881, %v3576
        %v3619 = vmul.f32 %v2884, %v3580
        %v3620 = vmul.f32 %v2887, %v3584
        %v3621 = vmul.f32 %v2890, %v3588
        %3622 = vmatpush.msra.mxu0 %v3605
        %3623 = vmatpush.msra.mxu0 %v3604
        %3624 = vmatpush.msra.mxu0 %v3603
        %3625 = vmatpush.msra.mxu0 %v3602
        %3626 = vmatpush.msra.mxu0 %v3601
        %3627 = vmatpush.msra.mxu0 %v3600
        %3628 = vmatpush.msra.mxu0 %v3599
        %3629 = vmatpush.msra.mxu0 %v3598
        %3630 = vmatpush.msra.mxu0 %v3597
        %3631 = vmatpush.msra.mxu0 %v3596
        %3632 = vmatpush.msra.mxu0 %v3595
        %3633 = vmatpush.msra.mxu0 %v3594
        %3634 = vmatpush.msra.mxu0 %v3593
        %3635 = vmatpush.msra.mxu0 %v3592
        %3636 = vmatpush.msra.mxu0 %v3591
        %3637 = vmatpush.msra.mxu0 %v3590
        %3638 = vmatmul.f32.gmra.mxu0 %v3165
        %v3639 = vpop.f32.mrf.mxu0
        %v3640 = vadd.f32 0.0, %v3639
        %3641 = vdwg.mxu0
        %3642 = vmatpush.msra.mxu0 %v3621
        %3643 = vmatpush.msra.mxu0 %v3620
        %3644 = vmatpush.msra.mxu0 %v3619
        %3645 = vmatpush.msra.mxu0 %v3618
        %3646 = vmatpush.msra.mxu0 %v3617
        %3647 = vmatpush.msra.mxu0 %v3616
        %3648 = vmatpush.msra.mxu0 %v3615
        %3649 = vmatpush.msra.mxu0 %v3614
        %3650 = vmatpush.msra.mxu0 %v3613
        %3651 = vmatpush.msra.mxu0 %v3612
        %3652 = vmatpush.msra.mxu0 %v3611
        %3653 = vmatpush.msra.mxu0 %v3610
        %3654 = vmatpush.msra.mxu0 %v3609
        %3655 = vmatpush.msra.mxu0 %v3608
        %3656 = vmatpush.msra.mxu0 %v3607
        %3657 = vmatpush.msra.mxu0 %v3606
        %3658 = vmatmul.f32.gmra.mxu0 %v3197
        %v3659 = vpop.f32.mrf.mxu0
        %v3660 = vadd.f32 %v3640, %v3659
        %3661 = vdwg.mxu0
        %v3662 = vadd.f32 %v3461, %v3660
        %3663 = vst.msk [vmem:[%s3460] sm:$0x3] %vm3254, %v3662
        %s3664 = sand.u32 %s187, 1
        %s3665 = scalar_lea.sflag [#allocation3], %s3664
        %s3666 = sand.u32 %s187, 1
        %s3667 = smul.addr %s3666, 6
        %s3668 = scalar_lea.vmem [#allocation2], %s3667
        // Predicated region
        $region49: #{tpu_custom_call.1} parent=43 // pred_check
          %p3669 = pneg %p197
        $region50: #{tpu_custom_call.1} parent=43 // pred_check_branch
          %3671 = sbr.rel (%p3669) target = $region52
        $region51: #{tpu_custom_call.1} parent=43 // pred_region
          %s3672 = smul.u32 3, %s24
          %3674 = vsyncadd %s3665, 0
          %s3675 = smul.addr %s3672, 2
          %s3676 = scalar_lea.hbm %s6, %s3675
          %s3677 = sshll.u32 %s3668, 4
          %s3678 = int_to_ptr.vmem [resolvable:$true] %s3677
          %s3679 = sshll.u32 %s3676, 4
          %s3680 = int_to_ptr.hbm [resolvable:$true] %s3679
          %3685 = dma.vmem_to_hbm [thread:$0]  %s3678, 96, %s3680, %s3665, 32, 32, 2
        $region52: #{tpu_custom_call.1} parent=43 // pred_fallthru
          _
      $region44: #{tpu_custom_call.1} parent=5 // pred_fallthru
        _
      %p3686 = scmp.le.s32.totalorder 2, %s15
      // Predicated region
      $region53: #{tpu_custom_call.1} parent=5 // pred_check
        %p3687 = pneg %p3686
      $region54: #{tpu_custom_call.1} parent=5 // pred_check_branch
        %3689 = sbr.rel (%p3687) target = $region56
      $region55: #{tpu_custom_call.1} parent=5 // pred_region
        %s3690 = ssub.s32 %s15, 2
        // Predicated region
        $region57: #{tpu_custom_call.1} parent=55 // pred_check
          %p3691 = pneg %p203
        $region58: #{tpu_custom_call.1} parent=55 // pred_check_branch
          %3693 = sbr.rel (%p3691) target = $region60
        $region59: #{tpu_custom_call.1} parent=55 // pred_region
          %s3694 = sand.u32 %s188, 1
          %s3695 = scalar_lea.sflag [#allocation3], %s3694
          %s3696 = sand.u32 %s188, 1
          %s3697 = smul.addr %s3696, 6
          %s3698 = scalar_lea.vmem [#allocation2], %s3697
          %3700 = dma.done %s3695, 96
        $region60: #{tpu_custom_call.1} parent=55 // pred_fallthru
          _
      $region56: #{tpu_custom_call.1} parent=5 // pred_fallthru
        _
    $region6: #{tpu_custom_call.1} parent=1 // loop_footer
      %s19 = sadd.s32 1, %s15
    $region7: #{tpu_custom_call.1} parent=1 // loop_footer_branch
      %14 = sbr.rel target = $region3
    $region8: #{tpu_custom_call.1} parent=1 // loop_exit
      _
    %3701 = vsyncpa [#allocation3], 1
    %s3702 = scalar_lea.sflag [#allocation3], 1
    %3703 = vsyncpa %s3702, 1

</llo_original>
